<compile_context>
chip_gen: v6e
topology: v6e:2x2x1
jax: 0.10.0
libtpu: 0.0.40
codegen_flags: <defaults>
</compile_context>

<pallas_src>
import jax
import jax.numpy as jnp
from jax import lax
from jax.experimental import pallas as pl
from jax.experimental.pallas import tpu as pltpu

# ----------------------------- config (synthetic "t5-small"-like, tiny) ---------------
VOCAB = 128
D_MODEL = 64
N_HEADS = 4
D_HEAD = 16
D_INNER = N_HEADS * D_HEAD        # 64
D_FF = 128
NUM_BUCKETS = 32
MAX_DISTANCE = 128
EPS = 1e-6
NEG = -1e9

B = 2                              # batch
T_ENC = 16                         # max_input_length (scaled down)
T_DEC = 8                          # max_target_length (scaled down)
R_ENC = B * T_ENC                  # encoder rows after batch folding (32)
R_DEC = B * T_DEC                  # decoder rows after batch folding (16)

# rows of the stacked RMSNorm-weight table
(LN_ENC_SELF, LN_ENC_FF, LN_ENC_FINAL,
 LN_DEC_SELF, LN_DEC_CROSS, LN_DEC_FF, LN_DEC_FINAL) = range(7)

# column ranges inside the packed (D_MODEL, 1024) bf16 weight slab "w64"
_ENC_WQKV = (0, 192)
_ENC_WO = (192, 256)
_ENC_WI = (256, 384)
_DEC_WQKV = (384, 576)
_DEC_WO = (576, 640)
_DEC_WQ_C = (640, 704)
_DEC_WKV_C = (704, 832)
_DEC_WO_C = (832, 896)
_DEC_WI = (896, 1024)
W64_COLS = 1024
# column ranges inside the packed (128, 192) bf16 weight slab "w128"
_EMB = (0, 64)
_ENC_WOFF = (64, 128)
_DEC_WOFF = (128, 192)
W128_COLS = 192


# ----------------------------- in-kernel helpers ---------------------------------------
def _mm(a, b):
    """MXU matmul a (M,K) @ b (K,N): bf16 operands, f32 accumulation."""
    return lax.dot_general(
        a.astype(jnp.bfloat16), b.astype(jnp.bfloat16),
        dimension_numbers=(((1,), (0,)), ((), ())),
        preferred_element_type=jnp.float32)


def _mm_nt(a, b):
    """a (M,K) @ b (N,K)^T -> (M,N) without materializing a transpose."""
    return lax.dot_general(
        a.astype(jnp.bfloat16), b.astype(jnp.bfloat16),
        dimension_numbers=(((1,), (1,)), ((), ())),
        preferred_element_type=jnp.float32)


def _rmsnorm(x, w):
    var = jnp.mean(x * x, axis=-1, keepdims=True)
    return x * lax.rsqrt(var + EPS) * w


def _softmax_rows(s):
    m = jnp.max(s, axis=-1, keepdims=True)
    p = jnp.exp(s - m)
    return p * pl.reciprocal(jnp.sum(p, axis=-1, keepdims=True), approx=True)


def _attend(q_all, k_all, v_all, wo, bias):
    """Multi-head attention (T5: no 1/sqrt(dk) scaling), batch folded into rows.
    q_all (Rq, H*Dh), k_all/v_all (Rk, H*Dh), wo (H*Dh, D).
    bias: (H, Rq, Rk) or (Rq, Rk) -- rel-pos + causal + pad + block-diag batch mask,
    all pre-baked host-side.  Wo is applied ONCE on the concatenated context."""
    ctx = []
    for h in range(N_HEADS):                       # static unroll, 2-D MXU tiles only
        sl = slice(h * D_HEAD, (h + 1) * D_HEAD)
        s = _mm_nt(q_all[:, sl], k_all[:, sl])     # (Rq, Rk)
        s = s + (bias[h] if bias.ndim == 3 else bias)
        ctx.append(_mm(_softmax_rows(s), v_all[:, sl]))
    return _mm(jnp.concatenate(ctx, axis=-1), wo)  # single (Rq, DI) @ (DI, D)


def _embed(ids_col, emb_w):
    """Embedding lookup as a one-hot matmul on the MXU; ids_col (rows, 1) int32."""
    rows = ids_col.shape[0]
    onehot = (lax.broadcasted_iota(jnp.int32, (rows, VOCAB), 1)
              == ids_col).astype(jnp.float32)
    return _mm(onehot, emb_w)                      # (rows, D_MODEL) f32


# ----------------------------- the fused forward kernel ---------------------------------
def _t5_forward_kernel(ids_ref, w64_ref, w128_ref, ln_ref,
                       enc_bias_ref, dec_bias_ref, cross_bias_ref,
                       logits_ref, loss_ref):
    # packed ids column: [enc ids (R_ENC) | shifted dec ids (R_DEC) | labels (R_DEC)]
    ids_enc = ids_ref[0:R_ENC, :]                                   # (32, 1)
    ids_dec = ids_ref[R_ENC:R_ENC + R_DEC, :]                       # (16, 1)
    labels = ids_ref[R_ENC + R_DEC:R_ENC + 2 * R_DEC, :]            # (16, 1)

    w64 = lambda r: w64_ref[:, r[0]:r[1]]          # static slab slices (VMEM loads)
    w128 = lambda r: w128_ref[:, r[0]:r[1]]
    ln = lambda i: ln_ref[i:i + 1, :]              # (1, D) f32
    emb_w = w128(_EMB)                             # (VOCAB, D) bf16 -- tied embedding

    enc_bias = enc_bias_ref[...]                   # (H, R_ENC, R_ENC) f32
    dec_bias = dec_bias_ref[...]                   # (H, R_DEC, R_DEC) f32
    cross_bias = cross_bias_ref[...]               # (R_DEC, R_ENC)   f32

    # -------------------- encoder (1 layer + final LN), batch folded --------------------
    x = _embed(ids_enc, emb_w)                     # (32, D)
    xn = _rmsnorm(x, ln(LN_ENC_SELF))
    qkv = _mm(xn, w64(_ENC_WQKV))                  # fused QKV: (32, 3*DI)
    x = x + _attend(qkv[:, :D_INNER], qkv[:, D_INNER:2 * D_INNER], qkv[:, 2 * D_INNER:],
                    w64(_ENC_WO), enc_bias)
    hn = _rmsnorm(x, ln(LN_ENC_FF))
    x = x + _mm(jnp.maximum(_mm(hn, w64(_ENC_WI)), 0.0), w128(_ENC_WOFF))
    enc_out = _rmsnorm(x, ln(LN_ENC_FINAL))        # (32, D)

    # -------------------- decoder (1 layer + final LN), batch folded --------------------
    y = _embed(ids_dec, emb_w)                     # (16, D)
    yn = _rmsnorm(y, ln(LN_DEC_SELF))
    qkv = _mm(yn, w64(_DEC_WQKV))                  # fused QKV: (16, 3*DI)
    y = y + _attend(qkv[:, :D_INNER], qkv[:, D_INNER:2 * D_INNER], qkv[:, 2 * D_INNER:],
                    w64(_DEC_WO), dec_bias)        # rel + causal + block-diag baked in

    yn2 = _rmsnorm(y, ln(LN_DEC_CROSS))
    q_c = _mm(yn2, w64(_DEC_WQ_C))                 # (16, DI)
    kv_c = _mm(enc_out, w64(_DEC_WKV_C))           # fused KV: (32, 2*DI)
    y = y + _attend(q_c, kv_c[:, :D_INNER], kv_c[:, D_INNER:],
                    w64(_DEC_WO_C), cross_bias)    # cross-attn: no rel bias

    yn3 = _rmsnorm(y, ln(LN_DEC_FF))
    y = y + _mm(jnp.maximum(_mm(yn3, w64(_DEC_WI)), 0.0), w128(_DEC_WOFF))
    y = _rmsnorm(y, ln(LN_DEC_FINAL))

    # -------------------- tied LM head + cross-entropy --------------------
    logits = _mm_nt(y * (D_MODEL ** -0.5), emb_w)  # (16, VOCAB) f32, lane-dense
    m = jnp.max(logits, axis=-1, keepdims=True)
    lse = m + jnp.log(jnp.sum(jnp.exp(logits - m), axis=-1, keepdims=True))
    lab_onehot = (lax.broadcasted_iota(jnp.int32, (R_DEC, VOCAB), 1)
                  == labels).astype(jnp.float32)
    tgt = jnp.sum(lab_onehot * logits, axis=-1, keepdims=True)

    logits_ref[...] = logits
    # TODO(synk): HF ignores labels == -100; the original module passes raw tokenizer
    # ids (no -100 replacement), so pad tokens contribute to the mean loss here too.
    loss_ref[0, 0] = jnp.sum(lse - tgt)            # scalar NLL sum -> SMEM


_VMEM = pl.BlockSpec(memory_space=pltpu.MemorySpace.VMEM)
_SMEM = pl.BlockSpec(memory_space=pltpu.MemorySpace.SMEM)

_FWD = pl.pallas_call(
    _t5_forward_kernel,
    out_shape=(jax.ShapeDtypeStruct((R_DEC, VOCAB), jnp.float32),   # logits (lane-dense)
               jax.ShapeDtypeStruct((1, 1), jnp.float32)),          # NLL sum (scalar)
    in_specs=[_VMEM,    # packed ids column (B*(T_ENC+2*T_DEC), 1) int32
              _VMEM,    # w64  slab (D_MODEL, 1024) bf16
              _VMEM,    # w128 slab (128, 192) bf16 (emb + FF down-projections)
              _VMEM,    # ln table (8, D_MODEL) f32
              _VMEM,    # enc bias (H, R_ENC, R_ENC) f32
              _VMEM,    # dec bias (H, R_DEC, R_DEC) f32
              _VMEM],   # cross bias (R_DEC, R_ENC) f32
    out_specs=(_VMEM, _SMEM),
)


# ----------------------------- host-side glue (static tables, id plumbing) -------------
def _relative_position_bucket(relative_position, bidirectional, num_buckets=NUM_BUCKETS,
                              max_distance=MAX_DISTANCE):
    # Follows HuggingFace T5Attention._relative_position_bucket.
    relative_buckets = jnp.zeros_like(relative_position)
    if bidirectional:
        num_buckets //= 2
        relative_buckets += (relative_position > 0).astype(jnp.int32) * num_buckets
        relative_position = jnp.abs(relative_position)
    else:
        relative_position = -jnp.minimum(relative_position, 0)
    max_exact = num_buckets // 2
    is_small = relative_position < max_exact
    rel_if_large = max_exact + (
        jnp.log(relative_position.astype(jnp.float32) / max_exact + 1e-9)  # eps masked by is_small
        / jnp.log(max_distance / max_exact)
        * (num_buckets - max_exact)
    ).astype(jnp.int32)
    rel_if_large = jnp.minimum(rel_if_large, num_buckets - 1)
    relative_buckets += jnp.where(is_small, relative_position, rel_if_large)
    return relative_buckets


def _rel_pos_bias(rel_table, tq, tk, bidirectional):
    ctx = jnp.arange(tq, dtype=jnp.int32)[:, None]
    mem = jnp.arange(tk, dtype=jnp.int32)[None, :]
    buckets = _relative_position_bucket(mem - ctx, bidirectional)
    bias = rel_table[buckets]                       # (tq, tk, H)
    return jnp.transpose(bias, (2, 0, 1))           # (H, tq, tk)


def _shift_right(labels):
    # decoder_start_token_id = pad_token_id = 0 (T5 convention)
    start = jnp.zeros((labels.shape[0], 1), dtype=labels.dtype)
    return jnp.concatenate([start, labels[:, :-1]], axis=1)


@jax.jit
def code_summary_forward(params, input_ids, attention_mask, labels):
    dec_ids = _shift_right(labels)
    # one tiny id DMA: [enc ids | shifted dec ids | labels], batch-major flattened column
    ids_packed = jnp.concatenate(
        [input_ids.reshape(-1), dec_ids.reshape(-1), labels.reshape(-1)],
        axis=0).astype(jnp.int32)[:, None]                          # (R_ENC + 2*R_DEC, 1)

    # block-diagonal bias tables (batch is folded into matmul rows inside the kernel)
    rel_enc = _rel_pos_bias(params["rel_enc"], T_ENC, T_ENC, True)  # (H, Te, Te)
    rel_dec = _rel_pos_bias(params["rel_dec"], T_DEC, T_DEC, False)
    causal = jnp.where(jnp.arange(T_DEC)[None, :] <= jnp.arange(T_DEC)[:, None],
                       0.0, NEG).astype(jnp.float32)

    b_enc = jnp.repeat(jnp.arange(B), T_ENC)                        # (R_ENC,)
    b_dec = jnp.repeat(jnp.arange(B), T_DEC)                        # (R_DEC,)
    pad_enc = (1.0 - attention_mask.astype(jnp.float32)).reshape(R_ENC) * NEG
    off_ee = jnp.where(b_enc[:, None] == b_enc[None, :], 0.0, NEG)  # (R_ENC, R_ENC)
    off_dd = jnp.where(b_dec[:, None] == b_dec[None, :], 0.0, NEG)  # (R_DEC, R_DEC)
    off_de = jnp.where(b_dec[:, None] == b_enc[None, :], 0.0, NEG)  # (R_DEC, R_ENC)

    enc_bias = jnp.tile(rel_enc, (1, B, B)) + (off_ee + pad_enc[None, :])[None]
    dec_bias = jnp.tile(rel_dec + causal[None], (1, B, B)) + off_dd[None]
    cross_bias = off_de + pad_enc[None, :]

    logits2d, loss_sum = _FWD(ids_packed, params["w64"], params["w128"], params["ln"],
                              enc_bias, dec_bias, cross_bias)
    loss = loss_sum[0, 0] / (B * T_DEC)   # CrossEntropyLoss(mean) over all positions
    return loss, logits2d.reshape(B, T_DEC, VOCAB)


# ----------------------------- deterministic parameter init ----------------------------
def _init_params(key):
    """Weights are generated directly into the two packed slabs the kernel consumes."""
    def nrm(k, shape, scale=0.02):
        return (scale * jax.random.normal(k, shape, jnp.float32)).astype(jnp.bfloat16)

    ks = iter(jax.random.split(key, 16))
    emb = nrm(next(ks), (VOCAB, D_MODEL), scale=1.0)
    w64 = jnp.concatenate([                       # (D_MODEL, 1024) bf16
        nrm(next(ks), (D_MODEL, 3 * D_INNER)),    # enc_wqkv
        nrm(next(ks), (D_INNER, D_MODEL)),        # enc_wo
        nrm(next(ks), (D_MODEL, D_FF)),           # enc_wi
        nrm(next(ks), (D_MODEL, 3 * D_INNER)),    # dec_wqkv (self)
        nrm(next(ks), (D_INNER, D_MODEL)),        # dec_wo   (self)
        nrm(next(ks), (D_MODEL, D_INNER)),        # dec_wq   (cross)
        nrm(next(ks), (D_MODEL, 2 * D_INNER)),    # dec_wkv  (cross)
        nrm(next(ks), (D_INNER, D_MODEL)),        # dec_wo   (cross)
        nrm(next(ks), (D_MODEL, D_FF)),           # dec_wi
    ], axis=1)
    w128 = jnp.concatenate([                      # (128, 192) bf16
        emb,                                      # tied embedding / LM head
        nrm(next(ks), (D_FF, D_MODEL)),           # enc_wo_ff
        nrm(next(ks), (D_FF, D_MODEL)),           # dec_wo_ff
    ], axis=1)
    assert w64.shape == (D_MODEL, W64_COLS) and w128.shape == (VOCAB, W128_COLS)
    return {
        "w64": w64,
        "w128": w128,
        "ln": jnp.ones((8, D_MODEL), jnp.float32),   # 7 used rows + 1 pad row
        "rel_enc": 0.02 * jax.random.normal(next(ks), (NUM_BUCKETS, N_HEADS), jnp.float32),
        "rel_dec": 0.02 * jax.random.normal(next(ks), (NUM_BUCKETS, N_HEADS), jnp.float32),
    }


# ----------------------------- main -----------------------------------------------------
if __name__ == "__main__":
    key = jax.random.PRNGKey(0)
    pkey, ikey, lkey = jax.random.split(key, 3)

    params = _init_params(pkey)

    # synthetic "tokenized" inputs (tokenizer itself is untranslatable string glue)
    input_ids = jax.random.randint(ikey, (B, T_ENC), 1, VOCAB, dtype=jnp.int32)
    lengths = jnp.array([T_ENC, T_ENC - 4], dtype=jnp.int32)
    attention_mask = (jnp.arange(T_ENC)[None, :] < lengths[:, None]).astype(jnp.int32)
    input_ids = input_ids * attention_mask                      # pad_token_id = 0
    labels = jax.random.randint(lkey, (B, T_DEC), 1, VOCAB, dtype=jnp.int32)

    loss, logits = code_summary_forward(params, input_ids, attention_mask, labels)
    jax.block_until_ready((loss, logits))
    assert logits.shape == (B, T_DEC, VOCAB)
    assert bool(jnp.isfinite(loss))
    print("KERNEL_OK")
</pallas_src>

<mosaic_0001>
module attributes {stable_mosaic.version = 11 : i64} {
  func.func @_t5_forward_kernel(%arg0: memref<64x1xi32, #tpu.memory_space<vmem>>, %arg1: memref<64x1024xbf16, #tpu.memory_space<vmem>>, %arg2: memref<128x192xbf16, #tpu.memory_space<vmem>>, %arg3: memref<8x64xf32, #tpu.memory_space<vmem>>, %arg4: memref<4x32x32xf32, #tpu.memory_space<vmem>>, %arg5: memref<4x16x16xf32, #tpu.memory_space<vmem>>, %arg6: memref<16x32xf32, #tpu.memory_space<vmem>>, %arg7: memref<16x128xf32, #tpu.memory_space<vmem>>, %arg8: memref<1x1xf32, #tpu.memory_space<smem>>) attributes {dimension_semantics = [], scalar_prefetch = 0 : i64, scratch_operands = 0 : i64, tpu.core_type = #tpu.core_type<tc>} {
    %c0 = arith.constant 0 : index
    %c0_0 = arith.constant 0 : index
    %0 = vector.load %arg0[%c0, %c0_0] : memref<64x1xi32, #tpu.memory_space<vmem>>, vector<32x1xi32>
    %c32 = arith.constant 32 : index
    %c0_1 = arith.constant 0 : index
    %1 = vector.load %arg0[%c32, %c0_1] : memref<64x1xi32, #tpu.memory_space<vmem>>, vector<16x1xi32>
    %c48 = arith.constant 48 : index
    %c0_2 = arith.constant 0 : index
    %2 = vector.load %arg0[%c48, %c0_2] : memref<64x1xi32, #tpu.memory_space<vmem>>, vector<16x1xi32>
    %c0_3 = arith.constant 0 : index
    %c0_4 = arith.constant 0 : index
    %3 = vector.load %arg2[%c0_3, %c0_4] : memref<128x192xbf16, #tpu.memory_space<vmem>>, vector<128x64xbf16>
    %c0_5 = arith.constant 0 : index
    %c0_6 = arith.constant 0 : index
    %c0_7 = arith.constant 0 : index
    %4 = vector.load %arg4[%c0_5, %c0_6, %c0_7] : memref<4x32x32xf32, #tpu.memory_space<vmem>>, vector<4x32x32xf32>
    %c0_8 = arith.constant 0 : index
    %c0_9 = arith.constant 0 : index
    %c0_10 = arith.constant 0 : index
    %5 = vector.load %arg5[%c0_8, %c0_9, %c0_10] : memref<4x16x16xf32, #tpu.memory_space<vmem>>, vector<4x16x16xf32>
    %c0_11 = arith.constant 0 : index
    %c0_12 = arith.constant 0 : index
    %6 = vector.load %arg6[%c0_11, %c0_12] : memref<16x32xf32, #tpu.memory_space<vmem>>, vector<16x32xf32>
    %7 = tpu.iota {dimensions = array<i32: 1>} : vector<32x128xi32>
    %8 = vector.broadcast %0 : vector<32x1xi32> to vector<32x128xi32>
    %9 = arith.cmpi eq, %7, %8 : vector<32x128xi32>
    %10 = arith.extui %9 : vector<32x128xi1> to vector<32x128xi32>
    %11 = arith.sitofp %10 : vector<32x128xi32> to vector<32x128xf32>
    %12 = arith.truncf %11 : vector<32x128xf32> to vector<32x128xbf16>
    %cst = arith.constant dense<0.000000e+00> : vector<32x64xf32>
    %13 = tpu.matmul %12, %3, %cst {dimension_numbers = #tpu.dot_dimension_numbers<[1], [0], [0], [1], [0, 0, 1, 1], [], []>} : vector<32x128xbf16>, vector<128x64xbf16>, vector<32x64xf32> -> vector<32x64xf32>
    %c0_13 = arith.constant 0 : index
    %c0_14 = arith.constant 0 : index
    %14 = vector.load %arg3[%c0_13, %c0_14] : memref<8x64xf32, #tpu.memory_space<vmem>>, vector<1x64xf32>
    %15 = arith.mulf %13, %13 : vector<32x64xf32>
    %cst_15 = arith.constant dense<0.000000e+00> : vector<32xf32>
    %16 = vector.multi_reduction <add>, %15, %cst_15 [1] : vector<32x64xf32> to vector<32xf32>
    %17 = vector.shape_cast %16 : vector<32xf32> to vector<32x1xf32>
    %cst_16 = arith.constant 6.400000e+01 : f32
    %18 = vector.broadcast %cst_16 : f32 to vector<32x1xf32>
    %19 = arith.divf %17, %18 : vector<32x1xf32>
    %cst_17 = arith.constant 9.99999997E-7 : f32
    %20 = vector.broadcast %cst_17 : f32 to vector<32x1xf32>
    %21 = arith.addf %19, %20 : vector<32x1xf32>
    %22 = math.rsqrt %21 : vector<32x1xf32>
    %23 = vector.broadcast %22 : vector<32x1xf32> to vector<32x64xf32>
    %24 = arith.mulf %13, %23 : vector<32x64xf32>
    %25 = vector.broadcast %14 : vector<1x64xf32> to vector<32x64xf32>
    %26 = arith.mulf %24, %25 : vector<32x64xf32>
    %c0_18 = arith.constant 0 : index
    %c0_19 = arith.constant 0 : index
    %27 = vector.load %arg1[%c0_18, %c0_19] : memref<64x1024xbf16, #tpu.memory_space<vmem>>, vector<64x192xbf16>
    %28 = arith.truncf %26 : vector<32x64xf32> to vector<32x64xbf16>
    %cst_20 = arith.constant dense<0.000000e+00> : vector<32x192xf32>
    %29 = tpu.matmul %28, %27, %cst_20 {dimension_numbers = #tpu.dot_dimension_numbers<[1], [0], [0], [1], [0, 0, 1, 1], [], []>} : vector<32x64xbf16>, vector<64x192xbf16>, vector<32x192xf32> -> vector<32x192xf32>
    %30 = vector.extract_strided_slice %29 {offsets = [0, 0], sizes = [32, 64], strides = [1, 1]} : vector<32x192xf32> to vector<32x64xf32>
    %31 = vector.extract_strided_slice %29 {offsets = [0, 64], sizes = [32, 64], strides = [1, 1]} : vector<32x192xf32> to vector<32x64xf32>
    %32 = vector.extract_strided_slice %29 {offsets = [0, 128], sizes = [32, 64], strides = [1, 1]} : vector<32x192xf32> to vector<32x64xf32>
    %c0_21 = arith.constant 0 : index
    %c192 = arith.constant 192 : index
    %33 = vector.load %arg1[%c0_21, %c192] : memref<64x1024xbf16, #tpu.memory_space<vmem>>, vector<64x64xbf16>
    %34 = vector.extract_strided_slice %30 {offsets = [0, 0], sizes = [32, 16], strides = [1, 1]} : vector<32x64xf32> to vector<32x16xf32>
    %35 = vector.extract_strided_slice %31 {offsets = [0, 0], sizes = [32, 16], strides = [1, 1]} : vector<32x64xf32> to vector<32x16xf32>
    %36 = arith.truncf %34 : vector<32x16xf32> to vector<32x16xbf16>
    %37 = arith.truncf %35 : vector<32x16xf32> to vector<32x16xbf16>
    %cst_22 = arith.constant dense<0.000000e+00> : vector<32x32xf32>
    %38 = tpu.matmul %36, %37, %cst_22 {dimension_numbers = #tpu.dot_dimension_numbers<[1], [1], [0], [0], [0, 0, 1, 0], [], []>} : vector<32x16xbf16>, vector<32x16xbf16>, vector<32x32xf32> -> vector<32x32xf32>
    %39 = vector.extract_strided_slice %4 {offsets = [0, 0, 0], sizes = [1, 32, 32], strides = [1, 1, 1]} : vector<4x32x32xf32> to vector<1x32x32xf32>
    %40 = vector.shape_cast %39 : vector<1x32x32xf32> to vector<32x32xf32>
    %41 = arith.addf %38, %40 : vector<32x32xf32>
    %cst_23 = arith.constant dense<0xFF800000> : vector<32xf32>
    %42 = vector.multi_reduction <maximumf>, %41, %cst_23 [1] : vector<32x32xf32> to vector<32xf32>
    %43 = vector.shape_cast %42 : vector<32xf32> to vector<32x1xf32>
    %44 = vector.broadcast %43 : vector<32x1xf32> to vector<32x32xf32>
    %45 = arith.subf %41, %44 : vector<32x32xf32>
    %46 = math.exp %45 : vector<32x32xf32>
    %cst_24 = arith.constant dense<0.000000e+00> : vector<32xf32>
    %47 = vector.multi_reduction <add>, %46, %cst_24 [1] : vector<32x32xf32> to vector<32xf32>
    %48 = vector.shape_cast %47 : vector<32xf32> to vector<32x1xf32>
    %49 = tpu.reciprocal %48 {approx = true} : vector<32x1xf32> -> vector<32x1xf32>
    %50 = vector.broadcast %49 : vector<32x1xf32> to vector<32x32xf32>
    %51 = arith.mulf %46, %50 : vector<32x32xf32>
    %52 = vector.extract_strided_slice %32 {offsets = [0, 0], sizes = [32, 16], strides = [1, 1]} : vector<32x64xf32> to vector<32x16xf32>
    %53 = arith.truncf %51 : vector<32x32xf32> to vector<32x32xbf16>
    %54 = arith.truncf %52 : vector<32x16xf32> to vector<32x16xbf16>
    %cst_25 = arith.constant dense<0.000000e+00> : vector<32x16xf32>
    %55 = tpu.matmul %53, %54, %cst_25 {dimension_numbers = #tpu.dot_dimension_numbers<[1], [0], [0], [1], [0, 0, 1, 1], [], []>} : vector<32x32xbf16>, vector<32x16xbf16>, vector<32x16xf32> -> vector<32x16xf32>
    %56 = vector.extract_strided_slice %30 {offsets = [0, 16], sizes = [32, 16], strides = [1, 1]} : vector<32x64xf32> to vector<32x16xf32>
    %57 = vector.extract_strided_slice %31 {offsets = [0, 16], sizes = [32, 16], strides = [1, 1]} : vector<32x64xf32> to vector<32x16xf32>
    %58 = arith.truncf %56 : vector<32x16xf32> to vector<32x16xbf16>
    %59 = arith.truncf %57 : vector<32x16xf32> to vector<32x16xbf16>
    %cst_26 = arith.constant dense<0.000000e+00> : vector<32x32xf32>
    %60 = tpu.matmul %58, %59, %cst_26 {dimension_numbers = #tpu.dot_dimension_numbers<[1], [1], [0], [0], [0, 0, 1, 0], [], []>} : vector<32x16xbf16>, vector<32x16xbf16>, vector<32x32xf32> -> vector<32x32xf32>
    %61 = vector.extract_strided_slice %4 {offsets = [1, 0, 0], sizes = [1, 32, 32], strides = [1, 1, 1]} : vector<4x32x32xf32> to vector<1x32x32xf32>
    %62 = vector.shape_cast %61 : vector<1x32x32xf32> to vector<32x32xf32>
    %63 = arith.addf %60, %62 : vector<32x32xf32>
    %cst_27 = arith.constant dense<0xFF800000> : vector<32xf32>
    %64 = vector.multi_reduction <maximumf>, %63, %cst_27 [1] : vector<32x32xf32> to vector<32xf32>
    %65 = vector.shape_cast %64 : vector<32xf32> to vector<32x1xf32>
    %66 = vector.broadcast %65 : vector<32x1xf32> to vector<32x32xf32>
    %67 = arith.subf %63, %66 : vector<32x32xf32>
    %68 = math.exp %67 : vector<32x32xf32>
    %cst_28 = arith.constant dense<0.000000e+00> : vector<32xf32>
    %69 = vector.multi_reduction <add>, %68, %cst_28 [1] : vector<32x32xf32> to vector<32xf32>
    %70 = vector.shape_cast %69 : vector<32xf32> to vector<32x1xf32>
    %71 = tpu.reciprocal %70 {approx = true} : vector<32x1xf32> -> vector<32x1xf32>
    %72 = vector.broadcast %71 : vector<32x1xf32> to vector<32x32xf32>
    %73 = arith.mulf %68, %72 : vector<32x32xf32>
    %74 = vector.extract_strided_slice %32 {offsets = [0, 16], sizes = [32, 16], strides = [1, 1]} : vector<32x64xf32> to vector<32x16xf32>
    %75 = arith.truncf %73 : vector<32x32xf32> to vector<32x32xbf16>
    %76 = arith.truncf %74 : vector<32x16xf32> to vector<32x16xbf16>
    %cst_29 = arith.constant dense<0.000000e+00> : vector<32x16xf32>
    %77 = tpu.matmul %75, %76, %cst_29 {dimension_numbers = #tpu.dot_dimension_numbers<[1], [0], [0], [1], [0, 0, 1, 1], [], []>} : vector<32x32xbf16>, vector<32x16xbf16>, vector<32x16xf32> -> vector<32x16xf32>
    %78 = vector.extract_strided_slice %30 {offsets = [0, 32], sizes = [32, 16], strides = [1, 1]} : vector<32x64xf32> to vector<32x16xf32>
    %79 = vector.extract_strided_slice %31 {offsets = [0, 32], sizes = [32, 16], strides = [1, 1]} : vector<32x64xf32> to vector<32x16xf32>
    %80 = arith.truncf %78 : vector<32x16xf32> to vector<32x16xbf16>
    %81 = arith.truncf %79 : vector<32x16xf32> to vector<32x16xbf16>
    %cst_30 = arith.constant dense<0.000000e+00> : vector<32x32xf32>
    %82 = tpu.matmul %80, %81, %cst_30 {dimension_numbers = #tpu.dot_dimension_numbers<[1], [1], [0], [0], [0, 0, 1, 0], [], []>} : vector<32x16xbf16>, vector<32x16xbf16>, vector<32x32xf32> -> vector<32x32xf32>
    %83 = vector.extract_strided_slice %4 {offsets = [2, 0, 0], sizes = [1, 32, 32], strides = [1, 1, 1]} : vector<4x32x32xf32> to vector<1x32x32xf32>
    %84 = vector.shape_cast %83 : vector<1x32x32xf32> to vector<32x32xf32>
    %85 = arith.addf %82, %84 : vector<32x32xf32>
    %cst_31 = arith.constant dense<0xFF800000> : vector<32xf32>
    %86 = vector.multi_reduction <maximumf>, %85, %cst_31 [1] : vector<32x32xf32> to vector<32xf32>
    %87 = vector.shape_cast %86 : vector<32xf32> to vector<32x1xf32>
    %88 = vector.broadcast %87 : vector<32x1xf32> to vector<32x32xf32>
    %89 = arith.subf %85, %88 : vector<32x32xf32>
    %90 = math.exp %89 : vector<32x32xf32>
    %cst_32 = arith.constant dense<0.000000e+00> : vector<32xf32>
    %91 = vector.multi_reduction <add>, %90, %cst_32 [1] : vector<32x32xf32> to vector<32xf32>
    %92 = vector.shape_cast %91 : vector<32xf32> to vector<32x1xf32>
    %93 = tpu.reciprocal %92 {approx = true} : vector<32x1xf32> -> vector<32x1xf32>
    %94 = vector.broadcast %93 : vector<32x1xf32> to vector<32x32xf32>
    %95 = arith.mulf %90, %94 : vector<32x32xf32>
    %96 = vector.extract_strided_slice %32 {offsets = [0, 32], sizes = [32, 16], strides = [1, 1]} : vector<32x64xf32> to vector<32x16xf32>
    %97 = arith.truncf %95 : vector<32x32xf32> to vector<32x32xbf16>
    %98 = arith.truncf %96 : vector<32x16xf32> to vector<32x16xbf16>
    %cst_33 = arith.constant dense<0.000000e+00> : vector<32x16xf32>
    %99 = tpu.matmul %97, %98, %cst_33 {dimension_numbers = #tpu.dot_dimension_numbers<[1], [0], [0], [1], [0, 0, 1, 1], [], []>} : vector<32x32xbf16>, vector<32x16xbf16>, vector<32x16xf32> -> vector<32x16xf32>
    %100 = vector.extract_strided_slice %30 {offsets = [0, 48], sizes = [32, 16], strides = [1, 1]} : vector<32x64xf32> to vector<32x16xf32>
    %101 = vector.extract_strided_slice %31 {offsets = [0, 48], sizes = [32, 16], strides = [1, 1]} : vector<32x64xf32> to vector<32x16xf32>
    %102 = arith.truncf %100 : vector<32x16xf32> to vector<32x16xbf16>
    %103 = arith.truncf %101 : vector<32x16xf32> to vector<32x16xbf16>
    %cst_34 = arith.constant dense<0.000000e+00> : vector<32x32xf32>
    %104 = tpu.matmul %102, %103, %cst_34 {dimension_numbers = #tpu.dot_dimension_numbers<[1], [1], [0], [0], [0, 0, 1, 0], [], []>} : vector<32x16xbf16>, vector<32x16xbf16>, vector<32x32xf32> -> vector<32x32xf32>
    %105 = vector.extract_strided_slice %4 {offsets = [3, 0, 0], sizes = [1, 32, 32], strides = [1, 1, 1]} : vector<4x32x32xf32> to vector<1x32x32xf32>
    %106 = vector.shape_cast %105 : vector<1x32x32xf32> to vector<32x32xf32>
    %107 = arith.addf %104, %106 : vector<32x32xf32>
    %cst_35 = arith.constant dense<0xFF800000> : vector<32xf32>
    %108 = vector.multi_reduction <maximumf>, %107, %cst_35 [1] : vector<32x32xf32> to vector<32xf32>
    %109 = vector.shape_cast %108 : vector<32xf32> to vector<32x1xf32>
    %110 = vector.broadcast %109 : vector<32x1xf32> to vector<32x32xf32>
    %111 = arith.subf %107, %110 : vector<32x32xf32>
    %112 = math.exp %111 : vector<32x32xf32>
    %cst_36 = arith.constant dense<0.000000e+00> : vector<32xf32>
    %113 = vector.multi_reduction <add>, %112, %cst_36 [1] : vector<32x32xf32> to vector<32xf32>
    %114 = vector.shape_cast %113 : vector<32xf32> to vector<32x1xf32>
    %115 = tpu.reciprocal %114 {approx = true} : vector<32x1xf32> -> vector<32x1xf32>
    %116 = vector.broadcast %115 : vector<32x1xf32> to vector<32x32xf32>
    %117 = arith.mulf %112, %116 : vector<32x32xf32>
    %118 = vector.extract_strided_slice %32 {offsets = [0, 48], sizes = [32, 16], strides = [1, 1]} : vector<32x64xf32> to vector<32x16xf32>
    %119 = arith.truncf %117 : vector<32x32xf32> to vector<32x32xbf16>
    %120 = arith.truncf %118 : vector<32x16xf32> to vector<32x16xbf16>
    %cst_37 = arith.constant dense<0.000000e+00> : vector<32x16xf32>
    %121 = tpu.matmul %119, %120, %cst_37 {dimension_numbers = #tpu.dot_dimension_numbers<[1], [0], [0], [1], [0, 0, 1, 1], [], []>} : vector<32x32xbf16>, vector<32x16xbf16>, vector<32x16xf32> -> vector<32x16xf32>
    %122 = tpu.concatenate %55, %77, %99, %121 in 1 : vector<32x16xf32>, vector<32x16xf32>, vector<32x16xf32>, vector<32x16xf32> -> vector<32x64xf32>
    %123 = arith.truncf %122 : vector<32x64xf32> to vector<32x64xbf16>
    %cst_38 = arith.constant dense<0.000000e+00> : vector<32x64xf32>
    %124 = tpu.matmul %123, %33, %cst_38 {dimension_numbers = #tpu.dot_dimension_numbers<[1], [0], [0], [1], [0, 0, 1, 1], [], []>} : vector<32x64xbf16>, vector<64x64xbf16>, vector<32x64xf32> -> vector<32x64xf32>
    %125 = arith.addf %13, %124 : vector<32x64xf32>
    %c1 = arith.constant 1 : index
    %c0_39 = arith.constant 0 : index
    %126 = vector.load %arg3[%c1, %c0_39] : memref<8x64xf32, #tpu.memory_space<vmem>>, vector<1x64xf32>
    %127 = arith.mulf %125, %125 : vector<32x64xf32>
    %cst_40 = arith.constant dense<0.000000e+00> : vector<32xf32>
    %128 = vector.multi_reduction <add>, %127, %cst_40 [1] : vector<32x64xf32> to vector<32xf32>
    %129 = vector.shape_cast %128 : vector<32xf32> to vector<32x1xf32>
    %cst_41 = arith.constant 6.400000e+01 : f32
    %130 = vector.broadcast %cst_41 : f32 to vector<32x1xf32>
    %131 = arith.divf %129, %130 : vector<32x1xf32>
    %cst_42 = arith.constant 9.99999997E-7 : f32
    %132 = vector.broadcast %cst_42 : f32 to vector<32x1xf32>
    %133 = arith.addf %131, %132 : vector<32x1xf32>
    %134 = math.rsqrt %133 : vector<32x1xf32>
    %135 = vector.broadcast %134 : vector<32x1xf32> to vector<32x64xf32>
    %136 = arith.mulf %125, %135 : vector<32x64xf32>
    %137 = vector.broadcast %126 : vector<1x64xf32> to vector<32x64xf32>
    %138 = arith.mulf %136, %137 : vector<32x64xf32>
    %c0_43 = arith.constant 0 : index
    %c256 = arith.constant 256 : index
    %139 = vector.load %arg1[%c0_43, %c256] : memref<64x1024xbf16, #tpu.memory_space<vmem>>, vector<64x128xbf16>
    %140 = arith.truncf %138 : vector<32x64xf32> to vector<32x64xbf16>
    %cst_44 = arith.constant dense<0.000000e+00> : vector<32x128xf32>
    %141 = tpu.matmul %140, %139, %cst_44 {dimension_numbers = #tpu.dot_dimension_numbers<[1], [0], [0], [1], [0, 0, 1, 1], [], []>} : vector<32x64xbf16>, vector<64x128xbf16>, vector<32x128xf32> -> vector<32x128xf32>
    %cst_45 = arith.constant 0.000000e+00 : f32
    %142 = vector.broadcast %cst_45 : f32 to vector<32x128xf32>
    %143 = arith.maximumf %141, %142 : vector<32x128xf32>
    %c0_46 = arith.constant 0 : index
    %c64 = arith.constant 64 : index
    %144 = vector.load %arg2[%c0_46, %c64] : memref<128x192xbf16, #tpu.memory_space<vmem>>, vector<128x64xbf16>
    %145 = arith.truncf %143 : vector<32x128xf32> to vector<32x128xbf16>
    %cst_47 = arith.constant dense<0.000000e+00> : vector<32x64xf32>
    %146 = tpu.matmul %145, %144, %cst_47 {dimension_numbers = #tpu.dot_dimension_numbers<[1], [0], [0], [1], [0, 0, 1, 1], [], []>} : vector<32x128xbf16>, vector<128x64xbf16>, vector<32x64xf32> -> vector<32x64xf32>
    %147 = arith.addf %125, %146 : vector<32x64xf32>
    %c2 = arith.constant 2 : index
    %c0_48 = arith.constant 0 : index
    %148 = vector.load %arg3[%c2, %c0_48] : memref<8x64xf32, #tpu.memory_space<vmem>>, vector<1x64xf32>
    %149 = arith.mulf %147, %147 : vector<32x64xf32>
    %cst_49 = arith.constant dense<0.000000e+00> : vector<32xf32>
    %150 = vector.multi_reduction <add>, %149, %cst_49 [1] : vector<32x64xf32> to vector<32xf32>
    %151 = vector.shape_cast %150 : vector<32xf32> to vector<32x1xf32>
    %cst_50 = arith.constant 6.400000e+01 : f32
    %152 = vector.broadcast %cst_50 : f32 to vector<32x1xf32>
    %153 = arith.divf %151, %152 : vector<32x1xf32>
    %cst_51 = arith.constant 9.99999997E-7 : f32
    %154 = vector.broadcast %cst_51 : f32 to vector<32x1xf32>
    %155 = arith.addf %153, %154 : vector<32x1xf32>
    %156 = math.rsqrt %155 : vector<32x1xf32>
    %157 = vector.broadcast %156 : vector<32x1xf32> to vector<32x64xf32>
    %158 = arith.mulf %147, %157 : vector<32x64xf32>
    %159 = vector.broadcast %148 : vector<1x64xf32> to vector<32x64xf32>
    %160 = arith.mulf %158, %159 : vector<32x64xf32>
    %161 = tpu.iota {dimensions = array<i32: 1>} : vector<16x128xi32>
    %162 = vector.broadcast %1 : vector<16x1xi32> to vector<16x128xi32>
    %163 = arith.cmpi eq, %161, %162 : vector<16x128xi32>
    %164 = arith.extui %163 : vector<16x128xi1> to vector<16x128xi32>
    %165 = arith.sitofp %164 : vector<16x128xi32> to vector<16x128xf32>
    %166 = arith.truncf %165 : vector<16x128xf32> to vector<16x128xbf16>
    %cst_52 = arith.constant dense<0.000000e+00> : vector<16x64xf32>
    %167 = tpu.matmul %166, %3, %cst_52 {dimension_numbers = #tpu.dot_dimension_numbers<[1], [0], [0], [1], [0, 0, 1, 1], [], []>} : vector<16x128xbf16>, vector<128x64xbf16>, vector<16x64xf32> -> vector<16x64xf32>
    %c3 = arith.constant 3 : index
    %c0_53 = arith.constant 0 : index
    %168 = vector.load %arg3[%c3, %c0_53] : memref<8x64xf32, #tpu.memory_space<vmem>>, vector<1x64xf32>
    %169 = arith.mulf %167, %167 : vector<16x64xf32>
    %cst_54 = arith.constant dense<0.000000e+00> : vector<16xf32>
    %170 = vector.multi_reduction <add>, %169, %cst_54 [1] : vector<16x64xf32> to vector<16xf32>
    %171 = vector.shape_cast %170 : vector<16xf32> to vector<16x1xf32>
    %cst_55 = arith.constant 6.400000e+01 : f32
    %172 = vector.broadcast %cst_55 : f32 to vector<16x1xf32>
    %173 = arith.divf %171, %172 : vector<16x1xf32>
    %cst_56 = arith.constant 9.99999997E-7 : f32
    %174 = vector.broadcast %cst_56 : f32 to vector<16x1xf32>
    %175 = arith.addf %173, %174 : vector<16x1xf32>
    %176 = math.rsqrt %175 : vector<16x1xf32>
    %177 = vector.broadcast %176 : vector<16x1xf32> to vector<16x64xf32>
    %178 = arith.mulf %167, %177 : vector<16x64xf32>
    %179 = vector.broadcast %168 : vector<1x64xf32> to vector<16x64xf32>
    %180 = arith.mulf %178, %179 : vector<16x64xf32>
    %c0_57 = arith.constant 0 : index
    %c384 = arith.constant 384 : index
    %181 = vector.load %arg1[%c0_57, %c384] : memref<64x1024xbf16, #tpu.memory_space<vmem>>, vector<64x192xbf16>
    %182 = arith.truncf %180 : vector<16x64xf32> to vector<16x64xbf16>
    %cst_58 = arith.constant dense<0.000000e+00> : vector<16x192xf32>
    %183 = tpu.matmul %182, %181, %cst_58 {dimension_numbers = #tpu.dot_dimension_numbers<[1], [0], [0], [1], [0, 0, 1, 1], [], []>} : vector<16x64xbf16>, vector<64x192xbf16>, vector<16x192xf32> -> vector<16x192xf32>
    %184 = vector.extract_strided_slice %183 {offsets = [0, 0], sizes = [16, 64], strides = [1, 1]} : vector<16x192xf32> to vector<16x64xf32>
    %185 = vector.extract_strided_slice %183 {offsets = [0, 64], sizes = [16, 64], strides = [1, 1]} : vector<16x192xf32> to vector<16x64xf32>
    %186 = vector.extract_strided_slice %183 {offsets = [0, 128], sizes = [16, 64], strides = [1, 1]} : vector<16x192xf32> to vector<16x64xf32>
    %c0_59 = arith.constant 0 : index
    %c576 = arith.constant 576 : index
    %187 = vector.load %arg1[%c0_59, %c576] : memref<64x1024xbf16, #tpu.memory_space<vmem>>, vector<64x64xbf16>
    %188 = vector.extract_strided_slice %184 {offsets = [0, 0], sizes = [16, 16], strides = [1, 1]} : vector<16x64xf32> to vector<16x16xf32>
    %189 = vector.extract_strided_slice %185 {offsets = [0, 0], sizes = [16, 16], strides = [1, 1]} : vector<16x64xf32> to vector<16x16xf32>
    %190 = arith.truncf %188 : vector<16x16xf32> to vector<16x16xbf16>
    %191 = arith.truncf %189 : vector<16x16xf32> to vector<16x16xbf16>
    %cst_60 = arith.constant dense<0.000000e+00> : vector<16x16xf32>
    %192 = tpu.matmul %190, %191, %cst_60 {dimension_numbers = #tpu.dot_dimension_numbers<[1], [1], [0], [0], [0, 0, 1, 0], [], []>} : vector<16x16xbf16>, vector<16x16xbf16>, vector<16x16xf32> -> vector<16x16xf32>
    %193 = vector.extract_strided_slice %5 {offsets = [0, 0, 0], sizes = [1, 16, 16], strides = [1, 1, 1]} : vector<4x16x16xf32> to vector<1x16x16xf32>
    %194 = vector.shape_cast %193 : vector<1x16x16xf32> to vector<16x16xf32>
    %195 = arith.addf %192, %194 : vector<16x16xf32>
    %cst_61 = arith.constant dense<0xFF800000> : vector<16xf32>
    %196 = vector.multi_reduction <maximumf>, %195, %cst_61 [1] : vector<16x16xf32> to vector<16xf32>
    %197 = vector.shape_cast %196 : vector<16xf32> to vector<16x1xf32>
    %198 = vector.broadcast %197 : vector<16x1xf32> to vector<16x16xf32>
    %199 = arith.subf %195, %198 : vector<16x16xf32>
    %200 = math.exp %199 : vector<16x16xf32>
    %cst_62 = arith.constant dense<0.000000e+00> : vector<16xf32>
    %201 = vector.multi_reduction <add>, %200, %cst_62 [1] : vector<16x16xf32> to vector<16xf32>
    %202 = vector.shape_cast %201 : vector<16xf32> to vector<16x1xf32>
    %203 = tpu.reciprocal %202 {approx = true} : vector<16x1xf32> -> vector<16x1xf32>
    %204 = vector.broadcast %203 : vector<16x1xf32> to vector<16x16xf32>
    %205 = arith.mulf %200, %204 : vector<16x16xf32>
    %206 = vector.extract_strided_slice %186 {offsets = [0, 0], sizes = [16, 16], strides = [1, 1]} : vector<16x64xf32> to vector<16x16xf32>
    %207 = arith.truncf %205 : vector<16x16xf32> to vector<16x16xbf16>
    %208 = arith.truncf %206 : vector<16x16xf32> to vector<16x16xbf16>
    %cst_63 = arith.constant dense<0.000000e+00> : vector<16x16xf32>
    %209 = tpu.matmul %207, %208, %cst_63 {dimension_numbers = #tpu.dot_dimension_numbers<[1], [0], [0], [1], [0, 0, 1, 1], [], []>} : vector<16x16xbf16>, vector<16x16xbf16>, vector<16x16xf32> -> vector<16x16xf32>
    %210 = vector.extract_strided_slice %184 {offsets = [0, 16], sizes = [16, 16], strides = [1, 1]} : vector<16x64xf32> to vector<16x16xf32>
    %211 = vector.extract_strided_slice %185 {offsets = [0, 16], sizes = [16, 16], strides = [1, 1]} : vector<16x64xf32> to vector<16x16xf32>
    %212 = arith.truncf %210 : vector<16x16xf32> to vector<16x16xbf16>
    %213 = arith.truncf %211 : vector<16x16xf32> to vector<16x16xbf16>
    %cst_64 = arith.constant dense<0.000000e+00> : vector<16x16xf32>
    %214 = tpu.matmul %212, %213, %cst_64 {dimension_numbers = #tpu.dot_dimension_numbers<[1], [1], [0], [0], [0, 0, 1, 0], [], []>} : vector<16x16xbf16>, vector<16x16xbf16>, vector<16x16xf32> -> vector<16x16xf32>
    %215 = vector.extract_strided_slice %5 {offsets = [1, 0, 0], sizes = [1, 16, 16], strides = [1, 1, 1]} : vector<4x16x16xf32> to vector<1x16x16xf32>
    %216 = vector.shape_cast %215 : vector<1x16x16xf32> to vector<16x16xf32>
    %217 = arith.addf %214, %216 : vector<16x16xf32>
    %cst_65 = arith.constant dense<0xFF800000> : vector<16xf32>
    %218 = vector.multi_reduction <maximumf>, %217, %cst_65 [1] : vector<16x16xf32> to vector<16xf32>
    %219 = vector.shape_cast %218 : vector<16xf32> to vector<16x1xf32>
    %220 = vector.broadcast %219 : vector<16x1xf32> to vector<16x16xf32>
    %221 = arith.subf %217, %220 : vector<16x16xf32>
    %222 = math.exp %221 : vector<16x16xf32>
    %cst_66 = arith.constant dense<0.000000e+00> : vector<16xf32>
    %223 = vector.multi_reduction <add>, %222, %cst_66 [1] : vector<16x16xf32> to vector<16xf32>
    %224 = vector.shape_cast %223 : vector<16xf32> to vector<16x1xf32>
    %225 = tpu.reciprocal %224 {approx = true} : vector<16x1xf32> -> vector<16x1xf32>
    %226 = vector.broadcast %225 : vector<16x1xf32> to vector<16x16xf32>
    %227 = arith.mulf %222, %226 : vector<16x16xf32>
    %228 = vector.extract_strided_slice %186 {offsets = [0, 16], sizes = [16, 16], strides = [1, 1]} : vector<16x64xf32> to vector<16x16xf32>
    %229 = arith.truncf %227 : vector<16x16xf32> to vector<16x16xbf16>
    %230 = arith.truncf %228 : vector<16x16xf32> to vector<16x16xbf16>
    %cst_67 = arith.constant dense<0.000000e+00> : vector<16x16xf32>
    %231 = tpu.matmul %229, %230, %cst_67 {dimension_numbers = #tpu.dot_dimension_numbers<[1], [0], [0], [1], [0, 0, 1, 1], [], []>} : vector<16x16xbf16>, vector<16x16xbf16>, vector<16x16xf32> -> vector<16x16xf32>
    %232 = vector.extract_strided_slice %184 {offsets = [0, 32], sizes = [16, 16], strides = [1, 1]} : vector<16x64xf32> to vector<16x16xf32>
    %233 = vector.extract_strided_slice %185 {offsets = [0, 32], sizes = [16, 16], strides = [1, 1]} : vector<16x64xf32> to vector<16x16xf32>
    %234 = arith.truncf %232 : vector<16x16xf32> to vector<16x16xbf16>
    %235 = arith.truncf %233 : vector<16x16xf32> to vector<16x16xbf16>
    %cst_68 = arith.constant dense<0.000000e+00> : vector<16x16xf32>
    %236 = tpu.matmul %234, %235, %cst_68 {dimension_numbers = #tpu.dot_dimension_numbers<[1], [1], [0], [0], [0, 0, 1, 0], [], []>} : vector<16x16xbf16>, vector<16x16xbf16>, vector<16x16xf32> -> vector<16x16xf32>
    %237 = vector.extract_strided_slice %5 {offsets = [2, 0, 0], sizes = [1, 16, 16], strides = [1, 1, 1]} : vector<4x16x16xf32> to vector<1x16x16xf32>
    %238 = vector.shape_cast %237 : vector<1x16x16xf32> to vector<16x16xf32>
    %239 = arith.addf %236, %238 : vector<16x16xf32>
    %cst_69 = arith.constant dense<0xFF800000> : vector<16xf32>
    %240 = vector.multi_reduction <maximumf>, %239, %cst_69 [1] : vector<16x16xf32> to vector<16xf32>
    %241 = vector.shape_cast %240 : vector<16xf32> to vector<16x1xf32>
    %242 = vector.broadcast %241 : vector<16x1xf32> to vector<16x16xf32>
    %243 = arith.subf %239, %242 : vector<16x16xf32>
    %244 = math.exp %243 : vector<16x16xf32>
    %cst_70 = arith.constant dense<0.000000e+00> : vector<16xf32>
    %245 = vector.multi_reduction <add>, %244, %cst_70 [1] : vector<16x16xf32> to vector<16xf32>
    %246 = vector.shape_cast %245 : vector<16xf32> to vector<16x1xf32>
    %247 = tpu.reciprocal %246 {approx = true} : vector<16x1xf32> -> vector<16x1xf32>
    %248 = vector.broadcast %247 : vector<16x1xf32> to vector<16x16xf32>
    %249 = arith.mulf %244, %248 : vector<16x16xf32>
    %250 = vector.extract_strided_slice %186 {offsets = [0, 32], sizes = [16, 16], strides = [1, 1]} : vector<16x64xf32> to vector<16x16xf32>
    %251 = arith.truncf %249 : vector<16x16xf32> to vector<16x16xbf16>
    %252 = arith.truncf %250 : vector<16x16xf32> to vector<16x16xbf16>
    %cst_71 = arith.constant dense<0.000000e+00> : vector<16x16xf32>
    %253 = tpu.matmul %251, %252, %cst_71 {dimension_numbers = #tpu.dot_dimension_numbers<[1], [0], [0], [1], [0, 0, 1, 1], [], []>} : vector<16x16xbf16>, vector<16x16xbf16>, vector<16x16xf32> -> vector<16x16xf32>
    %254 = vector.extract_strided_slice %184 {offsets = [0, 48], sizes = [16, 16], strides = [1, 1]} : vector<16x64xf32> to vector<16x16xf32>
    %255 = vector.extract_strided_slice %185 {offsets = [0, 48], sizes = [16, 16], strides = [1, 1]} : vector<16x64xf32> to vector<16x16xf32>
    %256 = arith.truncf %254 : vector<16x16xf32> to vector<16x16xbf16>
    %257 = arith.truncf %255 : vector<16x16xf32> to vector<16x16xbf16>
    %cst_72 = arith.constant dense<0.000000e+00> : vector<16x16xf32>
    %258 = tpu.matmul %256, %257, %cst_72 {dimension_numbers = #tpu.dot_dimension_numbers<[1], [1], [0], [0], [0, 0, 1, 0], [], []>} : vector<16x16xbf16>, vector<16x16xbf16>, vector<16x16xf32> -> vector<16x16xf32>
    %259 = vector.extract_strided_slice %5 {offsets = [3, 0, 0], sizes = [1, 16, 16], strides = [1, 1, 1]} : vector<4x16x16xf32> to vector<1x16x16xf32>
    %260 = vector.shape_cast %259 : vector<1x16x16xf32> to vector<16x16xf32>
    %261 = arith.addf %258, %260 : vector<16x16xf32>
    %cst_73 = arith.constant dense<0xFF800000> : vector<16xf32>
    %262 = vector.multi_reduction <maximumf>, %261, %cst_73 [1] : vector<16x16xf32> to vector<16xf32>
    %263 = vector.shape_cast %262 : vector<16xf32> to vector<16x1xf32>
    %264 = vector.broadcast %263 : vector<16x1xf32> to vector<16x16xf32>
    %265 = arith.subf %261, %264 : vector<16x16xf32>
    %266 = math.exp %265 : vector<16x16xf32>
    %cst_74 = arith.constant dense<0.000000e+00> : vector<16xf32>
    %267 = vector.multi_reduction <add>, %266, %cst_74 [1] : vector<16x16xf32> to vector<16xf32>
    %268 = vector.shape_cast %267 : vector<16xf32> to vector<16x1xf32>
    %269 = tpu.reciprocal %268 {approx = true} : vector<16x1xf32> -> vector<16x1xf32>
    %270 = vector.broadcast %269 : vector<16x1xf32> to vector<16x16xf32>
    %271 = arith.mulf %266, %270 : vector<16x16xf32>
    %272 = vector.extract_strided_slice %186 {offsets = [0, 48], sizes = [16, 16], strides = [1, 1]} : vector<16x64xf32> to vector<16x16xf32>
    %273 = arith.truncf %271 : vector<16x16xf32> to vector<16x16xbf16>
    %274 = arith.truncf %272 : vector<16x16xf32> to vector<16x16xbf16>
    %cst_75 = arith.constant dense<0.000000e+00> : vector<16x16xf32>
    %275 = tpu.matmul %273, %274, %cst_75 {dimension_numbers = #tpu.dot_dimension_numbers<[1], [0], [0], [1], [0, 0, 1, 1], [], []>} : vector<16x16xbf16>, vector<16x16xbf16>, vector<16x16xf32> -> vector<16x16xf32>
    %276 = tpu.concatenate %209, %231, %253, %275 in 1 : vector<16x16xf32>, vector<16x16xf32>, vector<16x16xf32>, vector<16x16xf32> -> vector<16x64xf32>
    %277 = arith.truncf %276 : vector<16x64xf32> to vector<16x64xbf16>
    %cst_76 = arith.constant dense<0.000000e+00> : vector<16x64xf32>
    %278 = tpu.matmul %277, %187, %cst_76 {dimension_numbers = #tpu.dot_dimension_numbers<[1], [0], [0], [1], [0, 0, 1, 1], [], []>} : vector<16x64xbf16>, vector<64x64xbf16>, vector<16x64xf32> -> vector<16x64xf32>
    %279 = arith.addf %167, %278 : vector<16x64xf32>
    %c4 = arith.constant 4 : index
    %c0_77 = arith.constant 0 : index
    %280 = vector.load %arg3[%c4, %c0_77] : memref<8x64xf32, #tpu.memory_space<vmem>>, vector<1x64xf32>
    %281 = arith.mulf %279, %279 : vector<16x64xf32>
    %cst_78 = arith.constant dense<0.000000e+00> : vector<16xf32>
    %282 = vector.multi_reduction <add>, %281, %cst_78 [1] : vector<16x64xf32> to vector<16xf32>
    %283 = vector.shape_cast %282 : vector<16xf32> to vector<16x1xf32>
    %cst_79 = arith.constant 6.400000e+01 : f32
    %284 = vector.broadcast %cst_79 : f32 to vector<16x1xf32>
    %285 = arith.divf %283, %284 : vector<16x1xf32>
    %cst_80 = arith.constant 9.99999997E-7 : f32
    %286 = vector.broadcast %cst_80 : f32 to vector<16x1xf32>
    %287 = arith.addf %285, %286 : vector<16x1xf32>
    %288 = math.rsqrt %287 : vector<16x1xf32>
    %289 = vector.broadcast %288 : vector<16x1xf32> to vector<16x64xf32>
    %290 = arith.mulf %279, %289 : vector<16x64xf32>
    %291 = vector.broadcast %280 : vector<1x64xf32> to vector<16x64xf32>
    %292 = arith.mulf %290, %291 : vector<16x64xf32>
    %c0_81 = arith.constant 0 : index
    %c640 = arith.constant 640 : index
    %293 = vector.load %arg1[%c0_81, %c640] : memref<64x1024xbf16, #tpu.memory_space<vmem>>, vector<64x64xbf16>
    %294 = arith.truncf %292 : vector<16x64xf32> to vector<16x64xbf16>
    %cst_82 = arith.constant dense<0.000000e+00> : vector<16x64xf32>
    %295 = tpu.matmul %294, %293, %cst_82 {dimension_numbers = #tpu.dot_dimension_numbers<[1], [0], [0], [1], [0, 0, 1, 1], [], []>} : vector<16x64xbf16>, vector<64x64xbf16>, vector<16x64xf32> -> vector<16x64xf32>
    %c0_83 = arith.constant 0 : index
    %c704 = arith.constant 704 : index
    %296 = vector.load %arg1[%c0_83, %c704] : memref<64x1024xbf16, #tpu.memory_space<vmem>>, vector<64x128xbf16>
    %297 = arith.truncf %160 : vector<32x64xf32> to vector<32x64xbf16>
    %cst_84 = arith.constant dense<0.000000e+00> : vector<32x128xf32>
    %298 = tpu.matmul %297, %296, %cst_84 {dimension_numbers = #tpu.dot_dimension_numbers<[1], [0], [0], [1], [0, 0, 1, 1], [], []>} : vector<32x64xbf16>, vector<64x128xbf16>, vector<32x128xf32> -> vector<32x128xf32>
    %299 = vector.extract_strided_slice %298 {offsets = [0, 0], sizes = [32, 64], strides = [1, 1]} : vector<32x128xf32> to vector<32x64xf32>
    %300 = vector.extract_strided_slice %298 {offsets = [0, 64], sizes = [32, 64], strides = [1, 1]} : vector<32x128xf32> to vector<32x64xf32>
    %c0_85 = arith.constant 0 : index
    %c832 = arith.constant 832 : index
    %301 = vector.load %arg1[%c0_85, %c832] : memref<64x1024xbf16, #tpu.memory_space<vmem>>, vector<64x64xbf16>
    %302 = vector.extract_strided_slice %295 {offsets = [0, 0], sizes = [16, 16], strides = [1, 1]} : vector<16x64xf32> to vector<16x16xf32>
    %303 = vector.extract_strided_slice %299 {offsets = [0, 0], sizes = [32, 16], strides = [1, 1]} : vector<32x64xf32> to vector<32x16xf32>
    %304 = arith.truncf %302 : vector<16x16xf32> to vector<16x16xbf16>
    %305 = arith.truncf %303 : vector<32x16xf32> to vector<32x16xbf16>
    %cst_86 = arith.constant dense<0.000000e+00> : vector<16x32xf32>
    %306 = tpu.matmul %304, %305, %cst_86 {dimension_numbers = #tpu.dot_dimension_numbers<[1], [1], [0], [0], [0, 0, 1, 0], [], []>} : vector<16x16xbf16>, vector<32x16xbf16>, vector<16x32xf32> -> vector<16x32xf32>
    %307 = arith.addf %306, %6 : vector<16x32xf32>
    %cst_87 = arith.constant dense<0xFF800000> : vector<16xf32>
    %308 = vector.multi_reduction <maximumf>, %307, %cst_87 [1] : vector<16x32xf32> to vector<16xf32>
    %309 = vector.shape_cast %308 : vector<16xf32> to vector<16x1xf32>
    %310 = vector.broadcast %309 : vector<16x1xf32> to vector<16x32xf32>
    %311 = arith.subf %307, %310 : vector<16x32xf32>
    %312 = math.exp %311 : vector<16x32xf32>
    %cst_88 = arith.constant dense<0.000000e+00> : vector<16xf32>
    %313 = vector.multi_reduction <add>, %312, %cst_88 [1] : vector<16x32xf32> to vector<16xf32>
    %314 = vector.shape_cast %313 : vector<16xf32> to vector<16x1xf32>
    %315 = tpu.reciprocal %314 {approx = true} : vector<16x1xf32> -> vector<16x1xf32>
    %316 = vector.broadcast %315 : vector<16x1xf32> to vector<16x32xf32>
    %317 = arith.mulf %312, %316 : vector<16x32xf32>
    %318 = vector.extract_strided_slice %300 {offsets = [0, 0], sizes = [32, 16], strides = [1, 1]} : vector<32x64xf32> to vector<32x16xf32>
    %319 = arith.truncf %317 : vector<16x32xf32> to vector<16x32xbf16>
    %320 = arith.truncf %318 : vector<32x16xf32> to vector<32x16xbf16>
    %cst_89 = arith.constant dense<0.000000e+00> : vector<16x16xf32>
    %321 = tpu.matmul %319, %320, %cst_89 {dimension_numbers = #tpu.dot_dimension_numbers<[1], [0], [0], [1], [0, 0, 1, 1], [], []>} : vector<16x32xbf16>, vector<32x16xbf16>, vector<16x16xf32> -> vector<16x16xf32>
    %322 = vector.extract_strided_slice %295 {offsets = [0, 16], sizes = [16, 16], strides = [1, 1]} : vector<16x64xf32> to vector<16x16xf32>
    %323 = vector.extract_strided_slice %299 {offsets = [0, 16], sizes = [32, 16], strides = [1, 1]} : vector<32x64xf32> to vector<32x16xf32>
    %324 = arith.truncf %322 : vector<16x16xf32> to vector<16x16xbf16>
    %325 = arith.truncf %323 : vector<32x16xf32> to vector<32x16xbf16>
    %cst_90 = arith.constant dense<0.000000e+00> : vector<16x32xf32>
    %326 = tpu.matmul %324, %325, %cst_90 {dimension_numbers = #tpu.dot_dimension_numbers<[1], [1], [0], [0], [0, 0, 1, 0], [], []>} : vector<16x16xbf16>, vector<32x16xbf16>, vector<16x32xf32> -> vector<16x32xf32>
    %327 = arith.addf %326, %6 : vector<16x32xf32>
    %cst_91 = arith.constant dense<0xFF800000> : vector<16xf32>
    %328 = vector.multi_reduction <maximumf>, %327, %cst_91 [1] : vector<16x32xf32> to vector<16xf32>
    %329 = vector.shape_cast %328 : vector<16xf32> to vector<16x1xf32>
    %330 = vector.broadcast %329 : vector<16x1xf32> to vector<16x32xf32>
    %331 = arith.subf %327, %330 : vector<16x32xf32>
    %332 = math.exp %331 : vector<16x32xf32>
    %cst_92 = arith.constant dense<0.000000e+00> : vector<16xf32>
    %333 = vector.multi_reduction <add>, %332, %cst_92 [1] : vector<16x32xf32> to vector<16xf32>
    %334 = vector.shape_cast %333 : vector<16xf32> to vector<16x1xf32>
    %335 = tpu.reciprocal %334 {approx = true} : vector<16x1xf32> -> vector<16x1xf32>
    %336 = vector.broadcast %335 : vector<16x1xf32> to vector<16x32xf32>
    %337 = arith.mulf %332, %336 : vector<16x32xf32>
    %338 = vector.extract_strided_slice %300 {offsets = [0, 16], sizes = [32, 16], strides = [1, 1]} : vector<32x64xf32> to vector<32x16xf32>
    %339 = arith.truncf %337 : vector<16x32xf32> to vector<16x32xbf16>
    %340 = arith.truncf %338 : vector<32x16xf32> to vector<32x16xbf16>
    %cst_93 = arith.constant dense<0.000000e+00> : vector<16x16xf32>
    %341 = tpu.matmul %339, %340, %cst_93 {dimension_numbers = #tpu.dot_dimension_numbers<[1], [0], [0], [1], [0, 0, 1, 1], [], []>} : vector<16x32xbf16>, vector<32x16xbf16>, vector<16x16xf32> -> vector<16x16xf32>
    %342 = vector.extract_strided_slice %295 {offsets = [0, 32], sizes = [16, 16], strides = [1, 1]} : vector<16x64xf32> to vector<16x16xf32>
    %343 = vector.extract_strided_slice %299 {offsets = [0, 32], sizes = [32, 16], strides = [1, 1]} : vector<32x64xf32> to vector<32x16xf32>
    %344 = arith.truncf %342 : vector<16x16xf32> to vector<16x16xbf16>
    %345 = arith.truncf %343 : vector<32x16xf32> to vector<32x16xbf16>
    %cst_94 = arith.constant dense<0.000000e+00> : vector<16x32xf32>
    %346 = tpu.matmul %344, %345, %cst_94 {dimension_numbers = #tpu.dot_dimension_numbers<[1], [1], [0], [0], [0, 0, 1, 0], [], []>} : vector<16x16xbf16>, vector<32x16xbf16>, vector<16x32xf32> -> vector<16x32xf32>
    %347 = arith.addf %346, %6 : vector<16x32xf32>
    %cst_95 = arith.constant dense<0xFF800000> : vector<16xf32>
    %348 = vector.multi_reduction <maximumf>, %347, %cst_95 [1] : vector<16x32xf32> to vector<16xf32>
    %349 = vector.shape_cast %348 : vector<16xf32> to vector<16x1xf32>
    %350 = vector.broadcast %349 : vector<16x1xf32> to vector<16x32xf32>
    %351 = arith.subf %347, %350 : vector<16x32xf32>
    %352 = math.exp %351 : vector<16x32xf32>
    %cst_96 = arith.constant dense<0.000000e+00> : vector<16xf32>
    %353 = vector.multi_reduction <add>, %352, %cst_96 [1] : vector<16x32xf32> to vector<16xf32>
    %354 = vector.shape_cast %353 : vector<16xf32> to vector<16x1xf32>
    %355 = tpu.reciprocal %354 {approx = true} : vector<16x1xf32> -> vector<16x1xf32>
    %356 = vector.broadcast %355 : vector<16x1xf32> to vector<16x32xf32>
    %357 = arith.mulf %352, %356 : vector<16x32xf32>
    %358 = vector.extract_strided_slice %300 {offsets = [0, 32], sizes = [32, 16], strides = [1, 1]} : vector<32x64xf32> to vector<32x16xf32>
    %359 = arith.truncf %357 : vector<16x32xf32> to vector<16x32xbf16>
    %360 = arith.truncf %358 : vector<32x16xf32> to vector<32x16xbf16>
    %cst_97 = arith.constant dense<0.000000e+00> : vector<16x16xf32>
    %361 = tpu.matmul %359, %360, %cst_97 {dimension_numbers = #tpu.dot_dimension_numbers<[1], [0], [0], [1], [0, 0, 1, 1], [], []>} : vector<16x32xbf16>, vector<32x16xbf16>, vector<16x16xf32> -> vector<16x16xf32>
    %362 = vector.extract_strided_slice %295 {offsets = [0, 48], sizes = [16, 16], strides = [1, 1]} : vector<16x64xf32> to vector<16x16xf32>
    %363 = vector.extract_strided_slice %299 {offsets = [0, 48], sizes = [32, 16], strides = [1, 1]} : vector<32x64xf32> to vector<32x16xf32>
    %364 = arith.truncf %362 : vector<16x16xf32> to vector<16x16xbf16>
    %365 = arith.truncf %363 : vector<32x16xf32> to vector<32x16xbf16>
    %cst_98 = arith.constant dense<0.000000e+00> : vector<16x32xf32>
    %366 = tpu.matmul %364, %365, %cst_98 {dimension_numbers = #tpu.dot_dimension_numbers<[1], [1], [0], [0], [0, 0, 1, 0], [], []>} : vector<16x16xbf16>, vector<32x16xbf16>, vector<16x32xf32> -> vector<16x32xf32>
    %367 = arith.addf %366, %6 : vector<16x32xf32>
    %cst_99 = arith.constant dense<0xFF800000> : vector<16xf32>
    %368 = vector.multi_reduction <maximumf>, %367, %cst_99 [1] : vector<16x32xf32> to vector<16xf32>
    %369 = vector.shape_cast %368 : vector<16xf32> to vector<16x1xf32>
    %370 = vector.broadcast %369 : vector<16x1xf32> to vector<16x32xf32>
    %371 = arith.subf %367, %370 : vector<16x32xf32>
    %372 = math.exp %371 : vector<16x32xf32>
    %cst_100 = arith.constant dense<0.000000e+00> : vector<16xf32>
    %373 = vector.multi_reduction <add>, %372, %cst_100 [1] : vector<16x32xf32> to vector<16xf32>
    %374 = vector.shape_cast %373 : vector<16xf32> to vector<16x1xf32>
    %375 = tpu.reciprocal %374 {approx = true} : vector<16x1xf32> -> vector<16x1xf32>
    %376 = vector.broadcast %375 : vector<16x1xf32> to vector<16x32xf32>
    %377 = arith.mulf %372, %376 : vector<16x32xf32>
    %378 = vector.extract_strided_slice %300 {offsets = [0, 48], sizes = [32, 16], strides = [1, 1]} : vector<32x64xf32> to vector<32x16xf32>
    %379 = arith.truncf %377 : vector<16x32xf32> to vector<16x32xbf16>
    %380 = arith.truncf %378 : vector<32x16xf32> to vector<32x16xbf16>
    %cst_101 = arith.constant dense<0.000000e+00> : vector<16x16xf32>
    %381 = tpu.matmul %379, %380, %cst_101 {dimension_numbers = #tpu.dot_dimension_numbers<[1], [0], [0], [1], [0, 0, 1, 1], [], []>} : vector<16x32xbf16>, vector<32x16xbf16>, vector<16x16xf32> -> vector<16x16xf32>
    %382 = tpu.concatenate %321, %341, %361, %381 in 1 : vector<16x16xf32>, vector<16x16xf32>, vector<16x16xf32>, vector<16x16xf32> -> vector<16x64xf32>
    %383 = arith.truncf %382 : vector<16x64xf32> to vector<16x64xbf16>
    %cst_102 = arith.constant dense<0.000000e+00> : vector<16x64xf32>
    %384 = tpu.matmul %383, %301, %cst_102 {dimension_numbers = #tpu.dot_dimension_numbers<[1], [0], [0], [1], [0, 0, 1, 1], [], []>} : vector<16x64xbf16>, vector<64x64xbf16>, vector<16x64xf32> -> vector<16x64xf32>
    %385 = arith.addf %279, %384 : vector<16x64xf32>
    %c5 = arith.constant 5 : index
    %c0_103 = arith.constant 0 : index
    %386 = vector.load %arg3[%c5, %c0_103] : memref<8x64xf32, #tpu.memory_space<vmem>>, vector<1x64xf32>
    %387 = arith.mulf %385, %385 : vector<16x64xf32>
    %cst_104 = arith.constant dense<0.000000e+00> : vector<16xf32>
    %388 = vector.multi_reduction <add>, %387, %cst_104 [1] : vector<16x64xf32> to vector<16xf32>
    %389 = vector.shape_cast %388 : vector<16xf32> to vector<16x1xf32>
    %cst_105 = arith.constant 6.400000e+01 : f32
    %390 = vector.broadcast %cst_105 : f32 to vector<16x1xf32>
    %391 = arith.divf %389, %390 : vector<16x1xf32>
    %cst_106 = arith.constant 9.99999997E-7 : f32
    %392 = vector.broadcast %cst_106 : f32 to vector<16x1xf32>
    %393 = arith.addf %391, %392 : vector<16x1xf32>
    %394 = math.rsqrt %393 : vector<16x1xf32>
    %395 = vector.broadcast %394 : vector<16x1xf32> to vector<16x64xf32>
    %396 = arith.mulf %385, %395 : vector<16x64xf32>
    %397 = vector.broadcast %386 : vector<1x64xf32> to vector<16x64xf32>
    %398 = arith.mulf %396, %397 : vector<16x64xf32>
    %c0_107 = arith.constant 0 : index
    %c896 = arith.constant 896 : index
    %399 = vector.load %arg1[%c0_107, %c896] : memref<64x1024xbf16, #tpu.memory_space<vmem>>, vector<64x128xbf16>
    %400 = arith.truncf %398 : vector<16x64xf32> to vector<16x64xbf16>
    %cst_108 = arith.constant dense<0.000000e+00> : vector<16x128xf32>
    %401 = tpu.matmul %400, %399, %cst_108 {dimension_numbers = #tpu.dot_dimension_numbers<[1], [0], [0], [1], [0, 0, 1, 1], [], []>} : vector<16x64xbf16>, vector<64x128xbf16>, vector<16x128xf32> -> vector<16x128xf32>
    %cst_109 = arith.constant 0.000000e+00 : f32
    %402 = vector.broadcast %cst_109 : f32 to vector<16x128xf32>
    %403 = arith.maximumf %401, %402 : vector<16x128xf32>
    %c0_110 = arith.constant 0 : index
    %c128 = arith.constant 128 : index
    %404 = vector.load %arg2[%c0_110, %c128] : memref<128x192xbf16, #tpu.memory_space<vmem>>, vector<128x64xbf16>
    %405 = arith.truncf %403 : vector<16x128xf32> to vector<16x128xbf16>
    %cst_111 = arith.constant dense<0.000000e+00> : vector<16x64xf32>
    %406 = tpu.matmul %405, %404, %cst_111 {dimension_numbers = #tpu.dot_dimension_numbers<[1], [0], [0], [1], [0, 0, 1, 1], [], []>} : vector<16x128xbf16>, vector<128x64xbf16>, vector<16x64xf32> -> vector<16x64xf32>
    %407 = arith.addf %385, %406 : vector<16x64xf32>
    %c6 = arith.constant 6 : index
    %c0_112 = arith.constant 0 : index
    %408 = vector.load %arg3[%c6, %c0_112] : memref<8x64xf32, #tpu.memory_space<vmem>>, vector<1x64xf32>
    %409 = arith.mulf %407, %407 : vector<16x64xf32>
    %cst_113 = arith.constant dense<0.000000e+00> : vector<16xf32>
    %410 = vector.multi_reduction <add>, %409, %cst_113 [1] : vector<16x64xf32> to vector<16xf32>
    %411 = vector.shape_cast %410 : vector<16xf32> to vector<16x1xf32>
    %cst_114 = arith.constant 6.400000e+01 : f32
    %412 = vector.broadcast %cst_114 : f32 to vector<16x1xf32>
    %413 = arith.divf %411, %412 : vector<16x1xf32>
    %cst_115 = arith.constant 9.99999997E-7 : f32
    %414 = vector.broadcast %cst_115 : f32 to vector<16x1xf32>
    %415 = arith.addf %413, %414 : vector<16x1xf32>
    %416 = math.rsqrt %415 : vector<16x1xf32>
    %417 = vector.broadcast %416 : vector<16x1xf32> to vector<16x64xf32>
    %418 = arith.mulf %407, %417 : vector<16x64xf32>
    %419 = vector.broadcast %408 : vector<1x64xf32> to vector<16x64xf32>
    %420 = arith.mulf %418, %419 : vector<16x64xf32>
    %cst_116 = arith.constant 1.250000e-01 : f32
    %421 = vector.broadcast %cst_116 : f32 to vector<16x64xf32>
    %422 = arith.mulf %420, %421 : vector<16x64xf32>
    %423 = arith.truncf %422 : vector<16x64xf32> to vector<16x64xbf16>
    %cst_117 = arith.constant dense<0.000000e+00> : vector<16x128xf32>
    %424 = tpu.matmul %423, %3, %cst_117 {dimension_numbers = #tpu.dot_dimension_numbers<[1], [1], [0], [0], [0, 0, 1, 0], [], []>} : vector<16x64xbf16>, vector<128x64xbf16>, vector<16x128xf32> -> vector<16x128xf32>
    %cst_118 = arith.constant dense<0xFF800000> : vector<16xf32>
    %425 = vector.multi_reduction <maximumf>, %424, %cst_118 [1] : vector<16x128xf32> to vector<16xf32>
    %426 = vector.shape_cast %425 : vector<16xf32> to vector<16x1xf32>
    %427 = vector.broadcast %426 : vector<16x1xf32> to vector<16x128xf32>
    %428 = arith.subf %424, %427 : vector<16x128xf32>
    %429 = math.exp %428 : vector<16x128xf32>
    %cst_119 = arith.constant dense<0.000000e+00> : vector<16xf32>
    %430 = vector.multi_reduction <add>, %429, %cst_119 [1] : vector<16x128xf32> to vector<16xf32>
    %431 = vector.shape_cast %430 : vector<16xf32> to vector<16x1xf32>
    %432 = math.log %431 : vector<16x1xf32>
    %433 = arith.addf %426, %432 : vector<16x1xf32>
    %434 = tpu.iota {dimensions = array<i32: 1>} : vector<16x128xi32>
    %435 = vector.broadcast %2 : vector<16x1xi32> to vector<16x128xi32>
    %436 = arith.cmpi eq, %434, %435 : vector<16x128xi32>
    %437 = arith.extui %436 : vector<16x128xi1> to vector<16x128xi32>
    %438 = arith.sitofp %437 : vector<16x128xi32> to vector<16x128xf32>
    %439 = arith.mulf %438, %424 : vector<16x128xf32>
    %cst_120 = arith.constant dense<0.000000e+00> : vector<16xf32>
    %440 = vector.multi_reduction <add>, %439, %cst_120 [1] : vector<16x128xf32> to vector<16xf32>
    %441 = vector.shape_cast %440 : vector<16xf32> to vector<16x1xf32>
    %c0_121 = arith.constant 0 : index
    %c0_122 = arith.constant 0 : index
    %442 = vector.load %arg7[%c0_121, %c0_122] : memref<16x128xf32, #tpu.memory_space<vmem>>, vector<16x128xf32>
    tpu.vector_store %arg7[%c0_121, %c0_122], %424 {strides = array<i32>} : memref<16x128xf32, #tpu.memory_space<vmem>>, vector<16x128xf32>,
    %443 = arith.subf %433, %441 : vector<16x1xf32>
    %444 = vector.shape_cast %443 : vector<16x1xf32> to vector<1x16x1xf32>
    %cst_123 = arith.constant dense<0.000000e+00> : vector<1xf32>
    %445 = vector.multi_reduction <add>, %444, %cst_123 [1, 2] : vector<1x16x1xf32> to vector<1xf32>
    %446 = vector.shape_cast %445 : vector<1xf32> to vector<1x1x1xf32>
    %447 = vector.extract %446[0, 0, 0] : f32 from vector<1x1x1xf32>
    %c0_124 = arith.constant 0 : index
    %c0_125 = arith.constant 0 : index
    %448 = memref.load %arg8[%c0_124, %c0_125] : memref<1x1xf32, #tpu.memory_space<smem>>
    memref.store %447, %arg8[%c0_124, %c0_125] : memref<1x1xf32, #tpu.memory_space<smem>>
    return
  }
}

</mosaic_0001>

<llo_original>
// kernel: tile.14
$region0: #{tile.14}
  %s0 = inlined_call_operand.vmem [shape: f32[4,2,16,2,16], index: 0, kind: input, shape index: {}]
  %s1 = inlined_call_operand.vmem [shape: f32[4,32,32], index: 1, kind: output, shape index: {}]
  $region1: #{tile.14} parent=0
    #allocation0 [shape = 'u8[524288]{0}', space=vmem, size = 0x80000, scoped, tag = 'scoped mem for input reshape']
    %s3 = sshll.u32 1, 2
    %s4 = ssub.s32 %s3, 1
    %s5 = smul.addr 2, 127
    %s6 = scalar_lea.vmem %s0, %s5
    %v7 = vld [vmem:[%s6] sm:%s4]
    %s8 = scalar_lea.vmem [#allocation0], 1016
    %9 = vst [vmem:[%s8] sm:%s4] %v7
    %s10 = smul.addr 2, 126
    %s11 = scalar_lea.vmem %s0, %s10
    %v12 = vld [vmem:[%s11] sm:%s4]
    %s13 = scalar_lea.vmem [#allocation0], 1008
    %14 = vst [vmem:[%s13] sm:%s4] %v12
    %s15 = smul.addr 2, 125
    %s16 = scalar_lea.vmem %s0, %s15
    %v17 = vld [vmem:[%s16] sm:%s4]
    %s18 = scalar_lea.vmem [#allocation0], 1000
    %19 = vst [vmem:[%s18] sm:%s4] %v17
    %s20 = smul.addr 2, 124
    %s21 = scalar_lea.vmem %s0, %s20
    %v22 = vld [vmem:[%s21] sm:%s4]
    %s23 = scalar_lea.vmem [#allocation0], 992
    %24 = vst [vmem:[%s23] sm:%s4] %v22
    %s25 = smul.addr 2, 123
    %s26 = scalar_lea.vmem %s0, %s25
    %v27 = vld [vmem:[%s26] sm:%s4]
    %s28 = scalar_lea.vmem [#allocation0], 984
    %29 = vst [vmem:[%s28] sm:%s4] %v27
    %s30 = smul.addr 2, 122
    %s31 = scalar_lea.vmem %s0, %s30
    %v32 = vld [vmem:[%s31] sm:%s4]
    %s33 = scalar_lea.vmem [#allocation0], 976
    %34 = vst [vmem:[%s33] sm:%s4] %v32
    %s35 = smul.addr 2, 121
    %s36 = scalar_lea.vmem %s0, %s35
    %v37 = vld [vmem:[%s36] sm:%s4]
    %s38 = scalar_lea.vmem [#allocation0], 968
    %39 = vst [vmem:[%s38] sm:%s4] %v37
    %s40 = smul.addr 2, 120
    %s41 = scalar_lea.vmem %s0, %s40
    %v42 = vld [vmem:[%s41] sm:%s4]
    %s43 = scalar_lea.vmem [#allocation0], 960
    %44 = vst [vmem:[%s43] sm:%s4] %v42
    %s45 = smul.addr 2, 119
    %s46 = scalar_lea.vmem %s0, %s45
    %v47 = vld [vmem:[%s46] sm:%s4]
    %s48 = scalar_lea.vmem [#allocation0], 952
    %49 = vst [vmem:[%s48] sm:%s4] %v47
    %s50 = smul.addr 2, 118
    %s51 = scalar_lea.vmem %s0, %s50
    %v52 = vld [vmem:[%s51] sm:%s4]
    %s53 = scalar_lea.vmem [#allocation0], 944
    %54 = vst [vmem:[%s53] sm:%s4] %v52
    %s55 = smul.addr 2, 117
    %s56 = scalar_lea.vmem %s0, %s55
    %v57 = vld [vmem:[%s56] sm:%s4]
    %s58 = scalar_lea.vmem [#allocation0], 936
    %59 = vst [vmem:[%s58] sm:%s4] %v57
    %s60 = smul.addr 2, 116
    %s61 = scalar_lea.vmem %s0, %s60
    %v62 = vld [vmem:[%s61] sm:%s4]
    %s63 = scalar_lea.vmem [#allocation0], 928
    %64 = vst [vmem:[%s63] sm:%s4] %v62
    %s65 = smul.addr 2, 115
    %s66 = scalar_lea.vmem %s0, %s65
    %v67 = vld [vmem:[%s66] sm:%s4]
    %s68 = scalar_lea.vmem [#allocation0], 920
    %69 = vst [vmem:[%s68] sm:%s4] %v67
    %s70 = smul.addr 2, 114
    %s71 = scalar_lea.vmem %s0, %s70
    %v72 = vld [vmem:[%s71] sm:%s4]
    %s73 = scalar_lea.vmem [#allocation0], 912
    %74 = vst [vmem:[%s73] sm:%s4] %v72
    %s75 = smul.addr 2, 113
    %s76 = scalar_lea.vmem %s0, %s75
    %v77 = vld [vmem:[%s76] sm:%s4]
    %s78 = scalar_lea.vmem [#allocation0], 904
    %79 = vst [vmem:[%s78] sm:%s4] %v77
    %s80 = smul.addr 2, 112
    %s81 = scalar_lea.vmem %s0, %s80
    %v82 = vld [vmem:[%s81] sm:%s4]
    %s83 = scalar_lea.vmem [#allocation0], 896
    %84 = vst [vmem:[%s83] sm:%s4] %v82
    %s85 = smul.addr 2, 111
    %s86 = scalar_lea.vmem %s0, %s85
    %v87 = vld [vmem:[%s86] sm:%s4]
    %s88 = scalar_lea.vmem [#allocation0], 888
    %89 = vst [vmem:[%s88] sm:%s4] %v87
    %s90 = smul.addr 2, 110
    %s91 = scalar_lea.vmem %s0, %s90
    %v92 = vld [vmem:[%s91] sm:%s4]
    %s93 = scalar_lea.vmem [#allocation0], 880
    %94 = vst [vmem:[%s93] sm:%s4] %v92
    %s95 = smul.addr 2, 109
    %s96 = scalar_lea.vmem %s0, %s95
    %v97 = vld [vmem:[%s96] sm:%s4]
    %s98 = scalar_lea.vmem [#allocation0], 872
    %99 = vst [vmem:[%s98] sm:%s4] %v97
    %s100 = smul.addr 2, 108
    %s101 = scalar_lea.vmem %s0, %s100
    %v102 = vld [vmem:[%s101] sm:%s4]
    %s103 = scalar_lea.vmem [#allocation0], 864
    %104 = vst [vmem:[%s103] sm:%s4] %v102
    %s105 = smul.addr 2, 107
    %s106 = scalar_lea.vmem %s0, %s105
    %v107 = vld [vmem:[%s106] sm:%s4]
    %s108 = scalar_lea.vmem [#allocation0], 856
    %109 = vst [vmem:[%s108] sm:%s4] %v107
    %s110 = smul.addr 2, 106
    %s111 = scalar_lea.vmem %s0, %s110
    %v112 = vld [vmem:[%s111] sm:%s4]
    %s113 = scalar_lea.vmem [#allocation0], 848
    %114 = vst [vmem:[%s113] sm:%s4] %v112
    %s115 = smul.addr 2, 105
    %s116 = scalar_lea.vmem %s0, %s115
    %v117 = vld [vmem:[%s116] sm:%s4]
    %s118 = scalar_lea.vmem [#allocation0], 840
    %119 = vst [vmem:[%s118] sm:%s4] %v117
    %s120 = smul.addr 2, 104
    %s121 = scalar_lea.vmem %s0, %s120
    %v122 = vld [vmem:[%s121] sm:%s4]
    %s123 = scalar_lea.vmem [#allocation0], 832
    %124 = vst [vmem:[%s123] sm:%s4] %v122
    %s125 = smul.addr 2, 103
    %s126 = scalar_lea.vmem %s0, %s125
    %v127 = vld [vmem:[%s126] sm:%s4]
    %s128 = scalar_lea.vmem [#allocation0], 824
    %129 = vst [vmem:[%s128] sm:%s4] %v127
    %s130 = smul.addr 2, 102
    %s131 = scalar_lea.vmem %s0, %s130
    %v132 = vld [vmem:[%s131] sm:%s4]
    %s133 = scalar_lea.vmem [#allocation0], 816
    %134 = vst [vmem:[%s133] sm:%s4] %v132
    %s135 = smul.addr 2, 101
    %s136 = scalar_lea.vmem %s0, %s135
    %v137 = vld [vmem:[%s136] sm:%s4]
    %s138 = scalar_lea.vmem [#allocation0], 808
    %139 = vst [vmem:[%s138] sm:%s4] %v137
    %s140 = smul.addr 2, 100
    %s141 = scalar_lea.vmem %s0, %s140
    %v142 = vld [vmem:[%s141] sm:%s4]
    %s143 = scalar_lea.vmem [#allocation0], 800
    %144 = vst [vmem:[%s143] sm:%s4] %v142
    %s145 = smul.addr 2, 99
    %s146 = scalar_lea.vmem %s0, %s145
    %v147 = vld [vmem:[%s146] sm:%s4]
    %s148 = scalar_lea.vmem [#allocation0], 792
    %149 = vst [vmem:[%s148] sm:%s4] %v147
    %s150 = smul.addr 2, 98
    %s151 = scalar_lea.vmem %s0, %s150
    %v152 = vld [vmem:[%s151] sm:%s4]
    %s153 = scalar_lea.vmem [#allocation0], 784
    %154 = vst [vmem:[%s153] sm:%s4] %v152
    %s155 = smul.addr 2, 97
    %s156 = scalar_lea.vmem %s0, %s155
    %v157 = vld [vmem:[%s156] sm:%s4]
    %s158 = scalar_lea.vmem [#allocation0], 776
    %159 = vst [vmem:[%s158] sm:%s4] %v157
    %s160 = smul.addr 2, 96
    %s161 = scalar_lea.vmem %s0, %s160
    %v162 = vld [vmem:[%s161] sm:%s4]
    %s163 = scalar_lea.vmem [#allocation0], 768
    %164 = vst [vmem:[%s163] sm:%s4] %v162
    %s165 = smul.addr 2, 95
    %s166 = scalar_lea.vmem %s0, %s165
    %v167 = vld [vmem:[%s166] sm:%s4]
    %s168 = scalar_lea.vmem [#allocation0], 760
    %169 = vst [vmem:[%s168] sm:%s4] %v167
    %s170 = smul.addr 2, 94
    %s171 = scalar_lea.vmem %s0, %s170
    %v172 = vld [vmem:[%s171] sm:%s4]
    %s173 = scalar_lea.vmem [#allocation0], 752
    %174 = vst [vmem:[%s173] sm:%s4] %v172
    %s175 = smul.addr 2, 93
    %s176 = scalar_lea.vmem %s0, %s175
    %v177 = vld [vmem:[%s176] sm:%s4]
    %s178 = scalar_lea.vmem [#allocation0], 744
    %179 = vst [vmem:[%s178] sm:%s4] %v177
    %s180 = smul.addr 2, 92
    %s181 = scalar_lea.vmem %s0, %s180
    %v182 = vld [vmem:[%s181] sm:%s4]
    %s183 = scalar_lea.vmem [#allocation0], 736
    %184 = vst [vmem:[%s183] sm:%s4] %v182
    %s185 = smul.addr 2, 91
    %s186 = scalar_lea.vmem %s0, %s185
    %v187 = vld [vmem:[%s186] sm:%s4]
    %s188 = scalar_lea.vmem [#allocation0], 728
    %189 = vst [vmem:[%s188] sm:%s4] %v187
    %s190 = smul.addr 2, 90
    %s191 = scalar_lea.vmem %s0, %s190
    %v192 = vld [vmem:[%s191] sm:%s4]
    %s193 = scalar_lea.vmem [#allocation0], 720
    %194 = vst [vmem:[%s193] sm:%s4] %v192
    %s195 = smul.addr 2, 89
    %s196 = scalar_lea.vmem %s0, %s195
    %v197 = vld [vmem:[%s196] sm:%s4]
    %s198 = scalar_lea.vmem [#allocation0], 712
    %199 = vst [vmem:[%s198] sm:%s4] %v197
    %s200 = smul.addr 2, 88
    %s201 = scalar_lea.vmem %s0, %s200
    %v202 = vld [vmem:[%s201] sm:%s4]
    %s203 = scalar_lea.vmem [#allocation0], 704
    %204 = vst [vmem:[%s203] sm:%s4] %v202
    %s205 = smul.addr 2, 87
    %s206 = scalar_lea.vmem %s0, %s205
    %v207 = vld [vmem:[%s206] sm:%s4]
    %s208 = scalar_lea.vmem [#allocation0], 696
    %209 = vst [vmem:[%s208] sm:%s4] %v207
    %s210 = smul.addr 2, 86
    %s211 = scalar_lea.vmem %s0, %s210
    %v212 = vld [vmem:[%s211] sm:%s4]
    %s213 = scalar_lea.vmem [#allocation0], 688
    %214 = vst [vmem:[%s213] sm:%s4] %v212
    %s215 = smul.addr 2, 85
    %s216 = scalar_lea.vmem %s0, %s215
    %v217 = vld [vmem:[%s216] sm:%s4]
    %s218 = scalar_lea.vmem [#allocation0], 680
    %219 = vst [vmem:[%s218] sm:%s4] %v217
    %s220 = smul.addr 2, 84
    %s221 = scalar_lea.vmem %s0, %s220
    %v222 = vld [vmem:[%s221] sm:%s4]
    %s223 = scalar_lea.vmem [#allocation0], 672
    %224 = vst [vmem:[%s223] sm:%s4] %v222
    %s225 = smul.addr 2, 83
    %s226 = scalar_lea.vmem %s0, %s225
    %v227 = vld [vmem:[%s226] sm:%s4]
    %s228 = scalar_lea.vmem [#allocation0], 664
    %229 = vst [vmem:[%s228] sm:%s4] %v227
    %s230 = smul.addr 2, 82
    %s231 = scalar_lea.vmem %s0, %s230
    %v232 = vld [vmem:[%s231] sm:%s4]
    %s233 = scalar_lea.vmem [#allocation0], 656
    %234 = vst [vmem:[%s233] sm:%s4] %v232
    %s235 = smul.addr 2, 81
    %s236 = scalar_lea.vmem %s0, %s235
    %v237 = vld [vmem:[%s236] sm:%s4]
    %s238 = scalar_lea.vmem [#allocation0], 648
    %239 = vst [vmem:[%s238] sm:%s4] %v237
    %s240 = smul.addr 2, 80
    %s241 = scalar_lea.vmem %s0, %s240
    %v242 = vld [vmem:[%s241] sm:%s4]
    %s243 = scalar_lea.vmem [#allocation0], 640
    %244 = vst [vmem:[%s243] sm:%s4] %v242
    %s245 = smul.addr 2, 79
    %s246 = scalar_lea.vmem %s0, %s245
    %v247 = vld [vmem:[%s246] sm:%s4]
    %s248 = scalar_lea.vmem [#allocation0], 632
    %249 = vst [vmem:[%s248] sm:%s4] %v247
    %s250 = smul.addr 2, 78
    %s251 = scalar_lea.vmem %s0, %s250
    %v252 = vld [vmem:[%s251] sm:%s4]
    %s253 = scalar_lea.vmem [#allocation0], 624
    %254 = vst [vmem:[%s253] sm:%s4] %v252
    %s255 = smul.addr 2, 77
    %s256 = scalar_lea.vmem %s0, %s255
    %v257 = vld [vmem:[%s256] sm:%s4]
    %s258 = scalar_lea.vmem [#allocation0], 616
    %259 = vst [vmem:[%s258] sm:%s4] %v257
    %s260 = smul.addr 2, 76
    %s261 = scalar_lea.vmem %s0, %s260
    %v262 = vld [vmem:[%s261] sm:%s4]
    %s263 = scalar_lea.vmem [#allocation0], 608
    %264 = vst [vmem:[%s263] sm:%s4] %v262
    %s265 = smul.addr 2, 75
    %s266 = scalar_lea.vmem %s0, %s265
    %v267 = vld [vmem:[%s266] sm:%s4]
    %s268 = scalar_lea.vmem [#allocation0], 600
    %269 = vst [vmem:[%s268] sm:%s4] %v267
    %s270 = smul.addr 2, 74
    %s271 = scalar_lea.vmem %s0, %s270
    %v272 = vld [vmem:[%s271] sm:%s4]
    %s273 = scalar_lea.vmem [#allocation0], 592
    %274 = vst [vmem:[%s273] sm:%s4] %v272
    %s275 = smul.addr 2, 73
    %s276 = scalar_lea.vmem %s0, %s275
    %v277 = vld [vmem:[%s276] sm:%s4]
    %s278 = scalar_lea.vmem [#allocation0], 584
    %279 = vst [vmem:[%s278] sm:%s4] %v277
    %s280 = smul.addr 2, 72
    %s281 = scalar_lea.vmem %s0, %s280
    %v282 = vld [vmem:[%s281] sm:%s4]
    %s283 = scalar_lea.vmem [#allocation0], 576
    %284 = vst [vmem:[%s283] sm:%s4] %v282
    %s285 = smul.addr 2, 71
    %s286 = scalar_lea.vmem %s0, %s285
    %v287 = vld [vmem:[%s286] sm:%s4]
    %s288 = scalar_lea.vmem [#allocation0], 568
    %289 = vst [vmem:[%s288] sm:%s4] %v287
    %s290 = smul.addr 2, 70
    %s291 = scalar_lea.vmem %s0, %s290
    %v292 = vld [vmem:[%s291] sm:%s4]
    %s293 = scalar_lea.vmem [#allocation0], 560
    %294 = vst [vmem:[%s293] sm:%s4] %v292
    %s295 = smul.addr 2, 69
    %s296 = scalar_lea.vmem %s0, %s295
    %v297 = vld [vmem:[%s296] sm:%s4]
    %s298 = scalar_lea.vmem [#allocation0], 552
    %299 = vst [vmem:[%s298] sm:%s4] %v297
    %s300 = smul.addr 2, 68
    %s301 = scalar_lea.vmem %s0, %s300
    %v302 = vld [vmem:[%s301] sm:%s4]
    %s303 = scalar_lea.vmem [#allocation0], 544
    %304 = vst [vmem:[%s303] sm:%s4] %v302
    %s305 = smul.addr 2, 67
    %s306 = scalar_lea.vmem %s0, %s305
    %v307 = vld [vmem:[%s306] sm:%s4]
    %s308 = scalar_lea.vmem [#allocation0], 536
    %309 = vst [vmem:[%s308] sm:%s4] %v307
    %s310 = smul.addr 2, 66
    %s311 = scalar_lea.vmem %s0, %s310
    %v312 = vld [vmem:[%s311] sm:%s4]
    %s313 = scalar_lea.vmem [#allocation0], 528
    %314 = vst [vmem:[%s313] sm:%s4] %v312
    %s315 = smul.addr 2, 65
    %s316 = scalar_lea.vmem %s0, %s315
    %v317 = vld [vmem:[%s316] sm:%s4]
    %s318 = scalar_lea.vmem [#allocation0], 520
    %319 = vst [vmem:[%s318] sm:%s4] %v317
    %s320 = smul.addr 2, 64
    %s321 = scalar_lea.vmem %s0, %s320
    %v322 = vld [vmem:[%s321] sm:%s4]
    %s323 = scalar_lea.vmem [#allocation0], 512
    %324 = vst [vmem:[%s323] sm:%s4] %v322
    %s325 = smul.addr 2, 63
    %s326 = scalar_lea.vmem %s0, %s325
    %v327 = vld [vmem:[%s326] sm:%s4]
    %s328 = scalar_lea.vmem [#allocation0], 504
    %329 = vst [vmem:[%s328] sm:%s4] %v327
    %s330 = smul.addr 2, 62
    %s331 = scalar_lea.vmem %s0, %s330
    %v332 = vld [vmem:[%s331] sm:%s4]
    %s333 = scalar_lea.vmem [#allocation0], 496
    %334 = vst [vmem:[%s333] sm:%s4] %v332
    %s335 = smul.addr 2, 61
    %s336 = scalar_lea.vmem %s0, %s335
    %v337 = vld [vmem:[%s336] sm:%s4]
    %s338 = scalar_lea.vmem [#allocation0], 488
    %339 = vst [vmem:[%s338] sm:%s4] %v337
    %s340 = smul.addr 2, 60
    %s341 = scalar_lea.vmem %s0, %s340
    %v342 = vld [vmem:[%s341] sm:%s4]
    %s343 = scalar_lea.vmem [#allocation0], 480
    %344 = vst [vmem:[%s343] sm:%s4] %v342
    %s345 = smul.addr 2, 59
    %s346 = scalar_lea.vmem %s0, %s345
    %v347 = vld [vmem:[%s346] sm:%s4]
    %s348 = scalar_lea.vmem [#allocation0], 472
    %349 = vst [vmem:[%s348] sm:%s4] %v347
    %s350 = smul.addr 2, 58
    %s351 = scalar_lea.vmem %s0, %s350
    %v352 = vld [vmem:[%s351] sm:%s4]
    %s353 = scalar_lea.vmem [#allocation0], 464
    %354 = vst [vmem:[%s353] sm:%s4] %v352
    %s355 = smul.addr 2, 57
    %s356 = scalar_lea.vmem %s0, %s355
    %v357 = vld [vmem:[%s356] sm:%s4]
    %s358 = scalar_lea.vmem [#allocation0], 456
    %359 = vst [vmem:[%s358] sm:%s4] %v357
    %s360 = smul.addr 2, 56
    %s361 = scalar_lea.vmem %s0, %s360
    %v362 = vld [vmem:[%s361] sm:%s4]
    %s363 = scalar_lea.vmem [#allocation0], 448
    %364 = vst [vmem:[%s363] sm:%s4] %v362
    %s365 = smul.addr 2, 55
    %s366 = scalar_lea.vmem %s0, %s365
    %v367 = vld [vmem:[%s366] sm:%s4]
    %s368 = scalar_lea.vmem [#allocation0], 440
    %369 = vst [vmem:[%s368] sm:%s4] %v367
    %s370 = smul.addr 2, 54
    %s371 = scalar_lea.vmem %s0, %s370
    %v372 = vld [vmem:[%s371] sm:%s4]
    %s373 = scalar_lea.vmem [#allocation0], 432
    %374 = vst [vmem:[%s373] sm:%s4] %v372
    %s375 = smul.addr 2, 53
    %s376 = scalar_lea.vmem %s0, %s375
    %v377 = vld [vmem:[%s376] sm:%s4]
    %s378 = scalar_lea.vmem [#allocation0], 424
    %379 = vst [vmem:[%s378] sm:%s4] %v377
    %s380 = smul.addr 2, 52
    %s381 = scalar_lea.vmem %s0, %s380
    %v382 = vld [vmem:[%s381] sm:%s4]
    %s383 = scalar_lea.vmem [#allocation0], 416
    %384 = vst [vmem:[%s383] sm:%s4] %v382
    %s385 = smul.addr 2, 51
    %s386 = scalar_lea.vmem %s0, %s385
    %v387 = vld [vmem:[%s386] sm:%s4]
    %s388 = scalar_lea.vmem [#allocation0], 408
    %389 = vst [vmem:[%s388] sm:%s4] %v387
    %s390 = smul.addr 2, 50
    %s391 = scalar_lea.vmem %s0, %s390
    %v392 = vld [vmem:[%s391] sm:%s4]
    %s393 = scalar_lea.vmem [#allocation0], 400
    %394 = vst [vmem:[%s393] sm:%s4] %v392
    %s395 = smul.addr 2, 49
    %s396 = scalar_lea.vmem %s0, %s395
    %v397 = vld [vmem:[%s396] sm:%s4]
    %s398 = scalar_lea.vmem [#allocation0], 392
    %399 = vst [vmem:[%s398] sm:%s4] %v397
    %s400 = smul.addr 2, 48
    %s401 = scalar_lea.vmem %s0, %s400
    %v402 = vld [vmem:[%s401] sm:%s4]
    %s403 = scalar_lea.vmem [#allocation0], 384
    %404 = vst [vmem:[%s403] sm:%s4] %v402
    %s405 = smul.addr 2, 47
    %s406 = scalar_lea.vmem %s0, %s405
    %v407 = vld [vmem:[%s406] sm:%s4]
    %s408 = scalar_lea.vmem [#allocation0], 376
    %409 = vst [vmem:[%s408] sm:%s4] %v407
    %s410 = smul.addr 2, 46
    %s411 = scalar_lea.vmem %s0, %s410
    %v412 = vld [vmem:[%s411] sm:%s4]
    %s413 = scalar_lea.vmem [#allocation0], 368
    %414 = vst [vmem:[%s413] sm:%s4] %v412
    %s415 = smul.addr 2, 45
    %s416 = scalar_lea.vmem %s0, %s415
    %v417 = vld [vmem:[%s416] sm:%s4]
    %s418 = scalar_lea.vmem [#allocation0], 360
    %419 = vst [vmem:[%s418] sm:%s4] %v417
    %s420 = smul.addr 2, 44
    %s421 = scalar_lea.vmem %s0, %s420
    %v422 = vld [vmem:[%s421] sm:%s4]
    %s423 = scalar_lea.vmem [#allocation0], 352
    %424 = vst [vmem:[%s423] sm:%s4] %v422
    %s425 = smul.addr 2, 43
    %s426 = scalar_lea.vmem %s0, %s425
    %v427 = vld [vmem:[%s426] sm:%s4]
    %s428 = scalar_lea.vmem [#allocation0], 344
    %429 = vst [vmem:[%s428] sm:%s4] %v427
    %s430 = smul.addr 2, 42
    %s431 = scalar_lea.vmem %s0, %s430
    %v432 = vld [vmem:[%s431] sm:%s4]
    %s433 = scalar_lea.vmem [#allocation0], 336
    %434 = vst [vmem:[%s433] sm:%s4] %v432
    %s435 = smul.addr 2, 41
    %s436 = scalar_lea.vmem %s0, %s435
    %v437 = vld [vmem:[%s436] sm:%s4]
    %s438 = scalar_lea.vmem [#allocation0], 328
    %439 = vst [vmem:[%s438] sm:%s4] %v437
    %s440 = smul.addr 2, 40
    %s441 = scalar_lea.vmem %s0, %s440
    %v442 = vld [vmem:[%s441] sm:%s4]
    %s443 = scalar_lea.vmem [#allocation0], 320
    %444 = vst [vmem:[%s443] sm:%s4] %v442
    %s445 = smul.addr 2, 39
    %s446 = scalar_lea.vmem %s0, %s445
    %v447 = vld [vmem:[%s446] sm:%s4]
    %s448 = scalar_lea.vmem [#allocation0], 312
    %449 = vst [vmem:[%s448] sm:%s4] %v447
    %s450 = smul.addr 2, 38
    %s451 = scalar_lea.vmem %s0, %s450
    %v452 = vld [vmem:[%s451] sm:%s4]
    %s453 = scalar_lea.vmem [#allocation0], 304
    %454 = vst [vmem:[%s453] sm:%s4] %v452
    %s455 = smul.addr 2, 37
    %s456 = scalar_lea.vmem %s0, %s455
    %v457 = vld [vmem:[%s456] sm:%s4]
    %s458 = scalar_lea.vmem [#allocation0], 296
    %459 = vst [vmem:[%s458] sm:%s4] %v457
    %s460 = smul.addr 2, 36
    %s461 = scalar_lea.vmem %s0, %s460
    %v462 = vld [vmem:[%s461] sm:%s4]
    %s463 = scalar_lea.vmem [#allocation0], 288
    %464 = vst [vmem:[%s463] sm:%s4] %v462
    %s465 = smul.addr 2, 35
    %s466 = scalar_lea.vmem %s0, %s465
    %v467 = vld [vmem:[%s466] sm:%s4]
    %s468 = scalar_lea.vmem [#allocation0], 280
    %469 = vst [vmem:[%s468] sm:%s4] %v467
    %s470 = smul.addr 2, 34
    %s471 = scalar_lea.vmem %s0, %s470
    %v472 = vld [vmem:[%s471] sm:%s4]
    %s473 = scalar_lea.vmem [#allocation0], 272
    %474 = vst [vmem:[%s473] sm:%s4] %v472
    %s475 = smul.addr 2, 33
    %s476 = scalar_lea.vmem %s0, %s475
    %v477 = vld [vmem:[%s476] sm:%s4]
    %s478 = scalar_lea.vmem [#allocation0], 264
    %479 = vst [vmem:[%s478] sm:%s4] %v477
    %s480 = smul.addr 2, 32
    %s481 = scalar_lea.vmem %s0, %s480
    %v482 = vld [vmem:[%s481] sm:%s4]
    %s483 = scalar_lea.vmem [#allocation0], 256
    %484 = vst [vmem:[%s483] sm:%s4] %v482
    %s485 = smul.addr 2, 31
    %s486 = scalar_lea.vmem %s0, %s485
    %v487 = vld [vmem:[%s486] sm:%s4]
    %s488 = scalar_lea.vmem [#allocation0], 248
    %489 = vst [vmem:[%s488] sm:%s4] %v487
    %s490 = smul.addr 2, 30
    %s491 = scalar_lea.vmem %s0, %s490
    %v492 = vld [vmem:[%s491] sm:%s4]
    %s493 = scalar_lea.vmem [#allocation0], 240
    %494 = vst [vmem:[%s493] sm:%s4] %v492
    %s495 = smul.addr 2, 29
    %s496 = scalar_lea.vmem %s0, %s495
    %v497 = vld [vmem:[%s496] sm:%s4]
    %s498 = scalar_lea.vmem [#allocation0], 232
    %499 = vst [vmem:[%s498] sm:%s4] %v497
    %s500 = smul.addr 2, 28
    %s501 = scalar_lea.vmem %s0, %s500
    %v502 = vld [vmem:[%s501] sm:%s4]
    %s503 = scalar_lea.vmem [#allocation0], 224
    %504 = vst [vmem:[%s503] sm:%s4] %v502
    %s505 = smul.addr 2, 27
    %s506 = scalar_lea.vmem %s0, %s505
    %v507 = vld [vmem:[%s506] sm:%s4]
    %s508 = scalar_lea.vmem [#allocation0], 216
    %509 = vst [vmem:[%s508] sm:%s4] %v507
    %s510 = smul.addr 2, 26
    %s511 = scalar_lea.vmem %s0, %s510
    %v512 = vld [vmem:[%s511] sm:%s4]
    %s513 = scalar_lea.vmem [#allocation0], 208
    %514 = vst [vmem:[%s513] sm:%s4] %v512
    %s515 = smul.addr 2, 25
    %s516 = scalar_lea.vmem %s0, %s515
    %v517 = vld [vmem:[%s516] sm:%s4]
    %s518 = scalar_lea.vmem [#allocation0], 200
    %519 = vst [vmem:[%s518] sm:%s4] %v517
    %s520 = smul.addr 2, 24
    %s521 = scalar_lea.vmem %s0, %s520
    %v522 = vld [vmem:[%s521] sm:%s4]
    %s523 = scalar_lea.vmem [#allocation0], 192
    %524 = vst [vmem:[%s523] sm:%s4] %v522
    %s525 = smul.addr 2, 23
    %s526 = scalar_lea.vmem %s0, %s525
    %v527 = vld [vmem:[%s526] sm:%s4]
    %s528 = scalar_lea.vmem [#allocation0], 184
    %529 = vst [vmem:[%s528] sm:%s4] %v527
    %s530 = smul.addr 2, 22
    %s531 = scalar_lea.vmem %s0, %s530
    %v532 = vld [vmem:[%s531] sm:%s4]
    %s533 = scalar_lea.vmem [#allocation0], 176
    %534 = vst [vmem:[%s533] sm:%s4] %v532
    %s535 = smul.addr 2, 21
    %s536 = scalar_lea.vmem %s0, %s535
    %v537 = vld [vmem:[%s536] sm:%s4]
    %s538 = scalar_lea.vmem [#allocation0], 168
    %539 = vst [vmem:[%s538] sm:%s4] %v537
    %s540 = smul.addr 2, 20
    %s541 = scalar_lea.vmem %s0, %s540
    %v542 = vld [vmem:[%s541] sm:%s4]
    %s543 = scalar_lea.vmem [#allocation0], 160
    %544 = vst [vmem:[%s543] sm:%s4] %v542
    %s545 = smul.addr 2, 19
    %s546 = scalar_lea.vmem %s0, %s545
    %v547 = vld [vmem:[%s546] sm:%s4]
    %s548 = scalar_lea.vmem [#allocation0], 152
    %549 = vst [vmem:[%s548] sm:%s4] %v547
    %s550 = smul.addr 2, 18
    %s551 = scalar_lea.vmem %s0, %s550
    %v552 = vld [vmem:[%s551] sm:%s4]
    %s553 = scalar_lea.vmem [#allocation0], 144
    %554 = vst [vmem:[%s553] sm:%s4] %v552
    %s555 = smul.addr 2, 17
    %s556 = scalar_lea.vmem %s0, %s555
    %v557 = vld [vmem:[%s556] sm:%s4]
    %s558 = scalar_lea.vmem [#allocation0], 136
    %559 = vst [vmem:[%s558] sm:%s4] %v557
    %s560 = smul.addr 2, 16
    %s561 = scalar_lea.vmem %s0, %s560
    %v562 = vld [vmem:[%s561] sm:%s4]
    %s563 = scalar_lea.vmem [#allocation0], 128
    %564 = vst [vmem:[%s563] sm:%s4] %v562
    %s565 = smul.addr 2, 15
    %s566 = scalar_lea.vmem %s0, %s565
    %v567 = vld [vmem:[%s566] sm:%s4]
    %s568 = scalar_lea.vmem [#allocation0], 120
    %569 = vst [vmem:[%s568] sm:%s4] %v567
    %s570 = smul.addr 2, 14
    %s571 = scalar_lea.vmem %s0, %s570
    %v572 = vld [vmem:[%s571] sm:%s4]
    %s573 = scalar_lea.vmem [#allocation0], 112
    %574 = vst [vmem:[%s573] sm:%s4] %v572
    %s575 = smul.addr 2, 13
    %s576 = scalar_lea.vmem %s0, %s575
    %v577 = vld [vmem:[%s576] sm:%s4]
    %s578 = scalar_lea.vmem [#allocation0], 104
    %579 = vst [vmem:[%s578] sm:%s4] %v577
    %s580 = smul.addr 2, 12
    %s581 = scalar_lea.vmem %s0, %s580
    %v582 = vld [vmem:[%s581] sm:%s4]
    %s583 = scalar_lea.vmem [#allocation0], 96
    %584 = vst [vmem:[%s583] sm:%s4] %v582
    %s585 = smul.addr 2, 11
    %s586 = scalar_lea.vmem %s0, %s585
    %v587 = vld [vmem:[%s586] sm:%s4]
    %s588 = scalar_lea.vmem [#allocation0], 88
    %589 = vst [vmem:[%s588] sm:%s4] %v587
    %s590 = smul.addr 2, 10
    %s591 = scalar_lea.vmem %s0, %s590
    %v592 = vld [vmem:[%s591] sm:%s4]
    %s593 = scalar_lea.vmem [#allocation0], 80
    %594 = vst [vmem:[%s593] sm:%s4] %v592
    %s595 = smul.addr 2, 9
    %s596 = scalar_lea.vmem %s0, %s595
    %v597 = vld [vmem:[%s596] sm:%s4]
    %s598 = scalar_lea.vmem [#allocation0], 72
    %599 = vst [vmem:[%s598] sm:%s4] %v597
    %s600 = smul.addr 2, 8
    %s601 = scalar_lea.vmem %s0, %s600
    %v602 = vld [vmem:[%s601] sm:%s4]
    %s603 = scalar_lea.vmem [#allocation0], 64
    %604 = vst [vmem:[%s603] sm:%s4] %v602
    %s605 = smul.addr 2, 7
    %s606 = scalar_lea.vmem %s0, %s605
    %v607 = vld [vmem:[%s606] sm:%s4]
    %s608 = scalar_lea.vmem [#allocation0], 56
    %609 = vst [vmem:[%s608] sm:%s4] %v607
    %s610 = smul.addr 2, 6
    %s611 = scalar_lea.vmem %s0, %s610
    %v612 = vld [vmem:[%s611] sm:%s4]
    %s613 = scalar_lea.vmem [#allocation0], 48
    %614 = vst [vmem:[%s613] sm:%s4] %v612
    %s615 = smul.addr 2, 5
    %s616 = scalar_lea.vmem %s0, %s615
    %v617 = vld [vmem:[%s616] sm:%s4]
    %s618 = scalar_lea.vmem [#allocation0], 40
    %619 = vst [vmem:[%s618] sm:%s4] %v617
    %s620 = smul.addr 2, 4
    %s621 = scalar_lea.vmem %s0, %s620
    %v622 = vld [vmem:[%s621] sm:%s4]
    %s623 = scalar_lea.vmem [#allocation0], 32
    %624 = vst [vmem:[%s623] sm:%s4] %v622
    %s625 = smul.addr 2, 3
    %s626 = scalar_lea.vmem %s0, %s625
    %v627 = vld [vmem:[%s626] sm:%s4]
    %s628 = scalar_lea.vmem [#allocation0], 24
    %629 = vst [vmem:[%s628] sm:%s4] %v627
    %s630 = smul.addr 2, 2
    %s631 = scalar_lea.vmem %s0, %s630
    %v632 = vld [vmem:[%s631] sm:%s4]
    %s633 = scalar_lea.vmem [#allocation0], 16
    %634 = vst [vmem:[%s633] sm:%s4] %v632
    %s635 = scalar_lea.vmem %s0, 2
    %v636 = vld [vmem:[%s635] sm:%s4]
    %s637 = scalar_lea.vmem [#allocation0], 8
    %638 = vst [vmem:[%s637] sm:%s4] %v636
    %v639 = vld [vmem:[%s0] sm:%s4]
    %640 = vst [vmem:[#allocation0] sm:%s4] %v639
    %v641 = vld [vmem:[#allocation0] ss:$8 sm:$0xf]
    %v642 = vld [vmem:[#allocation0] ss:$8 sm:$0xf0]
    %vm643 = vcmask 1047556
    %v644 = vsel %vm643, %v642, %v641
    %vm645 = vcmask 130048
    %646 = vst.msk [vmem:[%s1] sm:$0xff] %vm645, %v644
    %s647 = scalar_lea.vmem [#allocation0], 64
    %v648 = vld [vmem:[%s647] ss:$8 sm:$0xf]
    %s649 = scalar_lea.vmem [#allocation0], 64
    %v650 = vld [vmem:[%s649] ss:$8 sm:$0xf0]
    %vm651 = vcmask 1047556
    %v652 = vsel %vm651, %v650, %v648
    %vm653 = vcmask 130048
    %s654 = scalar_lea.vmem %s1, 8
    %655 = vst.msk [vmem:[%s654] sm:$0xff] %vm653, %v652
    %s656 = scalar_lea.vmem [#allocation0], 128
    %v657 = vld [vmem:[%s656] ss:$8 sm:$0xf]
    %s658 = scalar_lea.vmem [#allocation0], 128
    %v659 = vld [vmem:[%s658] ss:$8 sm:$0xf0]
    %vm660 = vcmask 1047556
    %v661 = vsel %vm660, %v659, %v657
    %vm662 = vcmask 130048
    %s663 = scalar_lea.vmem %s1, 16
    %664 = vst.msk [vmem:[%s663] sm:$0xff] %vm662, %v661
    %s665 = scalar_lea.vmem [#allocation0], 192
    %v666 = vld [vmem:[%s665] ss:$8 sm:$0xf]
    %s667 = scalar_lea.vmem [#allocation0], 192
    %v668 = vld [vmem:[%s667] ss:$8 sm:$0xf0]
    %vm669 = vcmask 1047556
    %v670 = vsel %vm669, %v668, %v666
    %vm671 = vcmask 130048
    %s672 = scalar_lea.vmem %s1, 24
    %673 = vst.msk [vmem:[%s672] sm:$0xff] %vm671, %v670
    %s674 = scalar_lea.vmem [#allocation0], 256
    %v675 = vld [vmem:[%s674] ss:$8 sm:$0xf]
    %s676 = scalar_lea.vmem [#allocation0], 256
    %v677 = vld [vmem:[%s676] ss:$8 sm:$0xf0]
    %vm678 = vcmask 1047556
    %v679 = vsel %vm678, %v677, %v675
    %vm680 = vcmask 130048
    %s681 = scalar_lea.vmem %s1, 32
    %682 = vst.msk [vmem:[%s681] sm:$0xff] %vm680, %v679
    %s683 = scalar_lea.vmem [#allocation0], 320
    %v684 = vld [vmem:[%s683] ss:$8 sm:$0xf]
    %s685 = scalar_lea.vmem [#allocation0], 320
    %v686 = vld [vmem:[%s685] ss:$8 sm:$0xf0]
    %vm687 = vcmask 1047556
    %v688 = vsel %vm687, %v686, %v684
    %vm689 = vcmask 130048
    %s690 = scalar_lea.vmem %s1, 40
    %691 = vst.msk [vmem:[%s690] sm:$0xff] %vm689, %v688
    %s692 = scalar_lea.vmem [#allocation0], 384
    %v693 = vld [vmem:[%s692] ss:$8 sm:$0xf]
    %s694 = scalar_lea.vmem [#allocation0], 384
    %v695 = vld [vmem:[%s694] ss:$8 sm:$0xf0]
    %vm696 = vcmask 1047556
    %v697 = vsel %vm696, %v695, %v693
    %vm698 = vcmask 130048
    %s699 = scalar_lea.vmem %s1, 48
    %700 = vst.msk [vmem:[%s699] sm:$0xff] %vm698, %v697
    %s701 = scalar_lea.vmem [#allocation0], 448
    %v702 = vld [vmem:[%s701] ss:$8 sm:$0xf]
    %s703 = scalar_lea.vmem [#allocation0], 448
    %v704 = vld [vmem:[%s703] ss:$8 sm:$0xf0]
    %vm705 = vcmask 1047556
    %v706 = vsel %vm705, %v704, %v702
    %vm707 = vcmask 130048
    %s708 = scalar_lea.vmem %s1, 56
    %709 = vst.msk [vmem:[%s708] sm:$0xff] %vm707, %v706
    %s710 = scalar_lea.vmem [#allocation0], 512
    %v711 = vld [vmem:[%s710] ss:$8 sm:$0xf]
    %s712 = scalar_lea.vmem [#allocation0], 512
    %v713 = vld [vmem:[%s712] ss:$8 sm:$0xf0]
    %vm714 = vcmask 1047556
    %v715 = vsel %vm714, %v713, %v711
    %vm716 = vcmask 130048
    %s717 = scalar_lea.vmem %s1, 64
    %718 = vst.msk [vmem:[%s717] sm:$0xff] %vm716, %v715
    %s719 = scalar_lea.vmem [#allocation0], 576
    %v720 = vld [vmem:[%s719] ss:$8 sm:$0xf]
    %s721 = scalar_lea.vmem [#allocation0], 576
    %v722 = vld [vmem:[%s721] ss:$8 sm:$0xf0]
    %vm723 = vcmask 1047556
    %v724 = vsel %vm723, %v722, %v720
    %vm725 = vcmask 130048
    %s726 = scalar_lea.vmem %s1, 72
    %727 = vst.msk [vmem:[%s726] sm:$0xff] %vm725, %v724
    %s728 = scalar_lea.vmem [#allocation0], 640
    %v729 = vld [vmem:[%s728] ss:$8 sm:$0xf]
    %s730 = scalar_lea.vmem [#allocation0], 640
    %v731 = vld [vmem:[%s730] ss:$8 sm:$0xf0]
    %vm732 = vcmask 1047556
    %v733 = vsel %vm732, %v731, %v729
    %vm734 = vcmask 130048
    %s735 = scalar_lea.vmem %s1, 80
    %736 = vst.msk [vmem:[%s735] sm:$0xff] %vm734, %v733
    %s737 = scalar_lea.vmem [#allocation0], 704
    %v738 = vld [vmem:[%s737] ss:$8 sm:$0xf]
    %s739 = scalar_lea.vmem [#allocation0], 704
    %v740 = vld [vmem:[%s739] ss:$8 sm:$0xf0]
    %vm741 = vcmask 1047556
    %v742 = vsel %vm741, %v740, %v738
    %vm743 = vcmask 130048
    %s744 = scalar_lea.vmem %s1, 88
    %745 = vst.msk [vmem:[%s744] sm:$0xff] %vm743, %v742
    %s746 = scalar_lea.vmem [#allocation0], 768
    %v747 = vld [vmem:[%s746] ss:$8 sm:$0xf]
    %s748 = scalar_lea.vmem [#allocation0], 768
    %v749 = vld [vmem:[%s748] ss:$8 sm:$0xf0]
    %vm750 = vcmask 1047556
    %v751 = vsel %vm750, %v749, %v747
    %vm752 = vcmask 130048
    %s753 = scalar_lea.vmem %s1, 96
    %754 = vst.msk [vmem:[%s753] sm:$0xff] %vm752, %v751
    %s755 = scalar_lea.vmem [#allocation0], 832
    %v756 = vld [vmem:[%s755] ss:$8 sm:$0xf]
    %s757 = scalar_lea.vmem [#allocation0], 832
    %v758 = vld [vmem:[%s757] ss:$8 sm:$0xf0]
    %vm759 = vcmask 1047556
    %v760 = vsel %vm759, %v758, %v756
    %vm761 = vcmask 130048
    %s762 = scalar_lea.vmem %s1, 104
    %763 = vst.msk [vmem:[%s762] sm:$0xff] %vm761, %v760
    %s764 = scalar_lea.vmem [#allocation0], 896
    %v765 = vld [vmem:[%s764] ss:$8 sm:$0xf]
    %s766 = scalar_lea.vmem [#allocation0], 896
    %v767 = vld [vmem:[%s766] ss:$8 sm:$0xf0]
    %vm768 = vcmask 1047556
    %v769 = vsel %vm768, %v767, %v765
    %vm770 = vcmask 130048
    %s771 = scalar_lea.vmem %s1, 112
    %772 = vst.msk [vmem:[%s771] sm:$0xff] %vm770, %v769
    %s773 = scalar_lea.vmem [#allocation0], 960
    %v774 = vld [vmem:[%s773] ss:$8 sm:$0xf]
    %s775 = scalar_lea.vmem [#allocation0], 960
    %v776 = vld [vmem:[%s775] ss:$8 sm:$0xf0]
    %vm777 = vcmask 1047556
    %v778 = vsel %vm777, %v776, %v774
    %vm779 = vcmask 130048
    %s780 = scalar_lea.vmem %s1, 120
    %781 = vst.msk [vmem:[%s780] sm:$0xff] %vm779, %v778
    %s782 = scalar_lea.vmem [#allocation0], 1
    %v783 = vld [vmem:[%s782] ss:$8 sm:$0xf]
    %s784 = scalar_lea.vmem [#allocation0], 1
    %v785 = vld [vmem:[%s784] ss:$8 sm:$0xf0]
    %vm786 = vcmask 1047556
    %v787 = vsel %vm786, %v785, %v783
    %788 = vrot.lane.b32.xlu0 %v787, 16
    %v789 = vpop.permute.xlu0 %788
    %vm790 = vcmask 261248
    %791 = vst.msk [vmem:[%s1] sm:$0xff] %vm790, %v789
    %s792 = scalar_lea.vmem [#allocation0], 257
    %v793 = vld [vmem:[%s792] ss:$8 sm:$0xf]
    %s794 = scalar_lea.vmem [#allocation0], 257
    %v795 = vld [vmem:[%s794] ss:$8 sm:$0xf0]
    %vm796 = vcmask 1047556
    %v797 = vsel %vm796, %v795, %v793
    %798 = vrot.lane.b32.xlu0 %v797, 16
    %v799 = vpop.permute.xlu0 %798
    %vm800 = vcmask 261248
    %s801 = scalar_lea.vmem %s1, 32
    %802 = vst.msk [vmem:[%s801] sm:$0xff] %vm800, %v799
    %s803 = scalar_lea.vmem [#allocation0], 513
    %v804 = vld [vmem:[%s803] ss:$8 sm:$0xf]
    %s805 = scalar_lea.vmem [#allocation0], 513
    %v806 = vld [vmem:[%s805] ss:$8 sm:$0xf0]
    %vm807 = vcmask 1047556
    %v808 = vsel %vm807, %v806, %v804
    %809 = vrot.lane.b32.xlu0 %v808, 16
    %v810 = vpop.permute.xlu0 %809
    %vm811 = vcmask 261248
    %s812 = scalar_lea.vmem %s1, 64
    %813 = vst.msk [vmem:[%s812] sm:$0xff] %vm811, %v810
    %s814 = scalar_lea.vmem [#allocation0], 769
    %v815 = vld [vmem:[%s814] ss:$8 sm:$0xf]
    %s816 = scalar_lea.vmem [#allocation0], 769
    %v817 = vld [vmem:[%s816] ss:$8 sm:$0xf0]
    %vm818 = vcmask 1047556
    %v819 = vsel %vm818, %v817, %v815
    %820 = vrot.lane.b32.xlu0 %v819, 16
    %v821 = vpop.permute.xlu0 %820
    %vm822 = vcmask 261248
    %s823 = scalar_lea.vmem %s1, 96
    %824 = vst.msk [vmem:[%s823] sm:$0xff] %vm822, %v821
    %s825 = scalar_lea.vmem [#allocation0], 65
    %v826 = vld [vmem:[%s825] ss:$8 sm:$0xf]
    %s827 = scalar_lea.vmem [#allocation0], 65
    %v828 = vld [vmem:[%s827] ss:$8 sm:$0xf0]
    %vm829 = vcmask 1047556
    %v830 = vsel %vm829, %v828, %v826
    %831 = vrot.lane.b32.xlu0 %v830, 16
    %v832 = vpop.permute.xlu0 %831
    %vm833 = vcmask 261248
    %s834 = scalar_lea.vmem %s1, 8
    %835 = vst.msk [vmem:[%s834] sm:$0xff] %vm833, %v832
    %s836 = scalar_lea.vmem [#allocation0], 321
    %v837 = vld [vmem:[%s836] ss:$8 sm:$0xf]
    %s838 = scalar_lea.vmem [#allocation0], 321
    %v839 = vld [vmem:[%s838] ss:$8 sm:$0xf0]
    %vm840 = vcmask 1047556
    %v841 = vsel %vm840, %v839, %v837
    %842 = vrot.lane.b32.xlu0 %v841, 16
    %v843 = vpop.permute.xlu0 %842
    %vm844 = vcmask 261248
    %s845 = scalar_lea.vmem %s1, 40
    %846 = vst.msk [vmem:[%s845] sm:$0xff] %vm844, %v843
    %s847 = scalar_lea.vmem [#allocation0], 577
    %v848 = vld [vmem:[%s847] ss:$8 sm:$0xf]
    %s849 = scalar_lea.vmem [#allocation0], 577
    %v850 = vld [vmem:[%s849] ss:$8 sm:$0xf0]
    %vm851 = vcmask 1047556
    %v852 = vsel %vm851, %v850, %v848
    %853 = vrot.lane.b32.xlu0 %v852, 16
    %v854 = vpop.permute.xlu0 %853
    %vm855 = vcmask 261248
    %s856 = scalar_lea.vmem %s1, 72
    %857 = vst.msk [vmem:[%s856] sm:$0xff] %vm855, %v854
    %s858 = scalar_lea.vmem [#allocation0], 833
    %v859 = vld [vmem:[%s858] ss:$8 sm:$0xf]
    %s860 = scalar_lea.vmem [#allocation0], 833
    %v861 = vld [vmem:[%s860] ss:$8 sm:$0xf0]
    %vm862 = vcmask 1047556
    %v863 = vsel %vm862, %v861, %v859
    %864 = vrot.lane.b32.xlu0 %v863, 16
    %v865 = vpop.permute.xlu0 %864
    %vm866 = vcmask 261248
    %s867 = scalar_lea.vmem %s1, 104
    %868 = vst.msk [vmem:[%s867] sm:$0xff] %vm866, %v865
    %s869 = scalar_lea.vmem [#allocation0], 129
    %v870 = vld [vmem:[%s869] ss:$8 sm:$0xf]
    %s871 = scalar_lea.vmem [#allocation0], 129
    %v872 = vld [vmem:[%s871] ss:$8 sm:$0xf0]
    %vm873 = vcmask 1047556
    %v874 = vsel %vm873, %v872, %v870
    %875 = vrot.lane.b32.xlu0 %v874, 16
    %v876 = vpop.permute.xlu0 %875
    %vm877 = vcmask 261248
    %s878 = scalar_lea.vmem %s1, 16
    %879 = vst.msk [vmem:[%s878] sm:$0xff] %vm877, %v876
    %s880 = scalar_lea.vmem [#allocation0], 385
    %v881 = vld [vmem:[%s880] ss:$8 sm:$0xf]
    %s882 = scalar_lea.vmem [#allocation0], 385
    %v883 = vld [vmem:[%s882] ss:$8 sm:$0xf0]
    %vm884 = vcmask 1047556
    %v885 = vsel %vm884, %v883, %v881
    %886 = vrot.lane.b32.xlu0 %v885, 16
    %v887 = vpop.permute.xlu0 %886
    %vm888 = vcmask 261248
    %s889 = scalar_lea.vmem %s1, 48
    %890 = vst.msk [vmem:[%s889] sm:$0xff] %vm888, %v887
    %s891 = scalar_lea.vmem [#allocation0], 641
    %v892 = vld [vmem:[%s891] ss:$8 sm:$0xf]
    %s893 = scalar_lea.vmem [#allocation0], 641
    %v894 = vld [vmem:[%s893] ss:$8 sm:$0xf0]
    %vm895 = vcmask 1047556
    %v896 = vsel %vm895, %v894, %v892
    %897 = vrot.lane.b32.xlu0 %v896, 16
    %v898 = vpop.permute.xlu0 %897
    %vm899 = vcmask 261248
    %s900 = scalar_lea.vmem %s1, 80
    %901 = vst.msk [vmem:[%s900] sm:$0xff] %vm899, %v898
    %s902 = scalar_lea.vmem [#allocation0], 897
    %v903 = vld [vmem:[%s902] ss:$8 sm:$0xf]
    %s904 = scalar_lea.vmem [#allocation0], 897
    %v905 = vld [vmem:[%s904] ss:$8 sm:$0xf0]
    %vm906 = vcmask 1047556
    %v907 = vsel %vm906, %v905, %v903
    %908 = vrot.lane.b32.xlu0 %v907, 16
    %v909 = vpop.permute.xlu0 %908
    %vm910 = vcmask 261248
    %s911 = scalar_lea.vmem %s1, 112
    %912 = vst.msk [vmem:[%s911] sm:$0xff] %vm910, %v909
    %s913 = scalar_lea.vmem [#allocation0], 193
    %v914 = vld [vmem:[%s913] ss:$8 sm:$0xf]
    %s915 = scalar_lea.vmem [#allocation0], 193
    %v916 = vld [vmem:[%s915] ss:$8 sm:$0xf0]
    %vm917 = vcmask 1047556
    %v918 = vsel %vm917, %v916, %v914
    %919 = vrot.lane.b32.xlu0 %v918, 16
    %v920 = vpop.permute.xlu0 %919
    %vm921 = vcmask 261248
    %s922 = scalar_lea.vmem %s1, 24
    %923 = vst.msk [vmem:[%s922] sm:$0xff] %vm921, %v920
    %s924 = scalar_lea.vmem [#allocation0], 449
    %v925 = vld [vmem:[%s924] ss:$8 sm:$0xf]
    %s926 = scalar_lea.vmem [#allocation0], 449
    %v927 = vld [vmem:[%s926] ss:$8 sm:$0xf0]
    %vm928 = vcmask 1047556
    %v929 = vsel %vm928, %v927, %v925
    %930 = vrot.lane.b32.xlu0 %v929, 16
    %v931 = vpop.permute.xlu0 %930
    %vm932 = vcmask 261248
    %s933 = scalar_lea.vmem %s1, 56
    %934 = vst.msk [vmem:[%s933] sm:$0xff] %vm932, %v931
    %s935 = scalar_lea.vmem [#allocation0], 705
    %v936 = vld [vmem:[%s935] ss:$8 sm:$0xf]
    %s937 = scalar_lea.vmem [#allocation0], 705
    %v938 = vld [vmem:[%s937] ss:$8 sm:$0xf0]
    %vm939 = vcmask 1047556
    %v940 = vsel %vm939, %v938, %v936
    %941 = vrot.lane.b32.xlu0 %v940, 16
    %v942 = vpop.permute.xlu0 %941
    %vm943 = vcmask 261248
    %s944 = scalar_lea.vmem %s1, 88
    %945 = vst.msk [vmem:[%s944] sm:$0xff] %vm943, %v942
    %s946 = scalar_lea.vmem [#allocation0], 961
    %v947 = vld [vmem:[%s946] ss:$8 sm:$0xf]
    %s948 = scalar_lea.vmem [#allocation0], 961
    %v949 = vld [vmem:[%s948] ss:$8 sm:$0xf0]
    %vm950 = vcmask 1047556
    %v951 = vsel %vm950, %v949, %v947
    %952 = vrot.lane.b32.xlu0 %v951, 16
    %v953 = vpop.permute.xlu0 %952
    %vm954 = vcmask 261248
    %s955 = scalar_lea.vmem %s1, 120
    %956 = vst.msk [vmem:[%s955] sm:$0xff] %vm954, %v953

// kernel: tile.19
$region0: #{tile.19}
  %s0 = inlined_call_operand.vmem [shape: f32[4,2,8,2,8], index: 0, kind: input, shape index: {}]
  %s1 = inlined_call_operand.vmem [shape: f32[4,16,16], index: 1, kind: output, shape index: {}]
  $region1: #{tile.19} parent=0
    #allocation0 [shape = 'u8[262144]{0}', space=vmem, size = 0x40000, scoped, tag = 'scoped mem for input reshape']
    %s3 = sshll.u32 1, 2
    %s4 = ssub.s32 %s3, 1
    %s5 = smul.addr 2, 63
    %s6 = scalar_lea.vmem %s0, %s5
    %v7 = vld [vmem:[%s6] sm:%s4]
    %s8 = scalar_lea.vmem [#allocation0], 504
    %9 = vst [vmem:[%s8] sm:%s4] %v7
    %s10 = smul.addr 2, 62
    %s11 = scalar_lea.vmem %s0, %s10
    %v12 = vld [vmem:[%s11] sm:%s4]
    %s13 = scalar_lea.vmem [#allocation0], 496
    %14 = vst [vmem:[%s13] sm:%s4] %v12
    %s15 = smul.addr 2, 61
    %s16 = scalar_lea.vmem %s0, %s15
    %v17 = vld [vmem:[%s16] sm:%s4]
    %s18 = scalar_lea.vmem [#allocation0], 488
    %19 = vst [vmem:[%s18] sm:%s4] %v17
    %s20 = smul.addr 2, 60
    %s21 = scalar_lea.vmem %s0, %s20
    %v22 = vld [vmem:[%s21] sm:%s4]
    %s23 = scalar_lea.vmem [#allocation0], 480
    %24 = vst [vmem:[%s23] sm:%s4] %v22
    %s25 = smul.addr 2, 59
    %s26 = scalar_lea.vmem %s0, %s25
    %v27 = vld [vmem:[%s26] sm:%s4]
    %s28 = scalar_lea.vmem [#allocation0], 472
    %29 = vst [vmem:[%s28] sm:%s4] %v27
    %s30 = smul.addr 2, 58
    %s31 = scalar_lea.vmem %s0, %s30
    %v32 = vld [vmem:[%s31] sm:%s4]
    %s33 = scalar_lea.vmem [#allocation0], 464
    %34 = vst [vmem:[%s33] sm:%s4] %v32
    %s35 = smul.addr 2, 57
    %s36 = scalar_lea.vmem %s0, %s35
    %v37 = vld [vmem:[%s36] sm:%s4]
    %s38 = scalar_lea.vmem [#allocation0], 456
    %39 = vst [vmem:[%s38] sm:%s4] %v37
    %s40 = smul.addr 2, 56
    %s41 = scalar_lea.vmem %s0, %s40
    %v42 = vld [vmem:[%s41] sm:%s4]
    %s43 = scalar_lea.vmem [#allocation0], 448
    %44 = vst [vmem:[%s43] sm:%s4] %v42
    %s45 = smul.addr 2, 55
    %s46 = scalar_lea.vmem %s0, %s45
    %v47 = vld [vmem:[%s46] sm:%s4]
    %s48 = scalar_lea.vmem [#allocation0], 440
    %49 = vst [vmem:[%s48] sm:%s4] %v47
    %s50 = smul.addr 2, 54
    %s51 = scalar_lea.vmem %s0, %s50
    %v52 = vld [vmem:[%s51] sm:%s4]
    %s53 = scalar_lea.vmem [#allocation0], 432
    %54 = vst [vmem:[%s53] sm:%s4] %v52
    %s55 = smul.addr 2, 53
    %s56 = scalar_lea.vmem %s0, %s55
    %v57 = vld [vmem:[%s56] sm:%s4]
    %s58 = scalar_lea.vmem [#allocation0], 424
    %59 = vst [vmem:[%s58] sm:%s4] %v57
    %s60 = smul.addr 2, 52
    %s61 = scalar_lea.vmem %s0, %s60
    %v62 = vld [vmem:[%s61] sm:%s4]
    %s63 = scalar_lea.vmem [#allocation0], 416
    %64 = vst [vmem:[%s63] sm:%s4] %v62
    %s65 = smul.addr 2, 51
    %s66 = scalar_lea.vmem %s0, %s65
    %v67 = vld [vmem:[%s66] sm:%s4]
    %s68 = scalar_lea.vmem [#allocation0], 408
    %69 = vst [vmem:[%s68] sm:%s4] %v67
    %s70 = smul.addr 2, 50
    %s71 = scalar_lea.vmem %s0, %s70
    %v72 = vld [vmem:[%s71] sm:%s4]
    %s73 = scalar_lea.vmem [#allocation0], 400
    %74 = vst [vmem:[%s73] sm:%s4] %v72
    %s75 = smul.addr 2, 49
    %s76 = scalar_lea.vmem %s0, %s75
    %v77 = vld [vmem:[%s76] sm:%s4]
    %s78 = scalar_lea.vmem [#allocation0], 392
    %79 = vst [vmem:[%s78] sm:%s4] %v77
    %s80 = smul.addr 2, 48
    %s81 = scalar_lea.vmem %s0, %s80
    %v82 = vld [vmem:[%s81] sm:%s4]
    %s83 = scalar_lea.vmem [#allocation0], 384
    %84 = vst [vmem:[%s83] sm:%s4] %v82
    %s85 = smul.addr 2, 47
    %s86 = scalar_lea.vmem %s0, %s85
    %v87 = vld [vmem:[%s86] sm:%s4]
    %s88 = scalar_lea.vmem [#allocation0], 376
    %89 = vst [vmem:[%s88] sm:%s4] %v87
    %s90 = smul.addr 2, 46
    %s91 = scalar_lea.vmem %s0, %s90
    %v92 = vld [vmem:[%s91] sm:%s4]
    %s93 = scalar_lea.vmem [#allocation0], 368
    %94 = vst [vmem:[%s93] sm:%s4] %v92
    %s95 = smul.addr 2, 45
    %s96 = scalar_lea.vmem %s0, %s95
    %v97 = vld [vmem:[%s96] sm:%s4]
    %s98 = scalar_lea.vmem [#allocation0], 360
    %99 = vst [vmem:[%s98] sm:%s4] %v97
    %s100 = smul.addr 2, 44
    %s101 = scalar_lea.vmem %s0, %s100
    %v102 = vld [vmem:[%s101] sm:%s4]
    %s103 = scalar_lea.vmem [#allocation0], 352
    %104 = vst [vmem:[%s103] sm:%s4] %v102
    %s105 = smul.addr 2, 43
    %s106 = scalar_lea.vmem %s0, %s105
    %v107 = vld [vmem:[%s106] sm:%s4]
    %s108 = scalar_lea.vmem [#allocation0], 344
    %109 = vst [vmem:[%s108] sm:%s4] %v107
    %s110 = smul.addr 2, 42
    %s111 = scalar_lea.vmem %s0, %s110
    %v112 = vld [vmem:[%s111] sm:%s4]
    %s113 = scalar_lea.vmem [#allocation0], 336
    %114 = vst [vmem:[%s113] sm:%s4] %v112
    %s115 = smul.addr 2, 41
    %s116 = scalar_lea.vmem %s0, %s115
    %v117 = vld [vmem:[%s116] sm:%s4]
    %s118 = scalar_lea.vmem [#allocation0], 328
    %119 = vst [vmem:[%s118] sm:%s4] %v117
    %s120 = smul.addr 2, 40
    %s121 = scalar_lea.vmem %s0, %s120
    %v122 = vld [vmem:[%s121] sm:%s4]
    %s123 = scalar_lea.vmem [#allocation0], 320
    %124 = vst [vmem:[%s123] sm:%s4] %v122
    %s125 = smul.addr 2, 39
    %s126 = scalar_lea.vmem %s0, %s125
    %v127 = vld [vmem:[%s126] sm:%s4]
    %s128 = scalar_lea.vmem [#allocation0], 312
    %129 = vst [vmem:[%s128] sm:%s4] %v127
    %s130 = smul.addr 2, 38
    %s131 = scalar_lea.vmem %s0, %s130
    %v132 = vld [vmem:[%s131] sm:%s4]
    %s133 = scalar_lea.vmem [#allocation0], 304
    %134 = vst [vmem:[%s133] sm:%s4] %v132
    %s135 = smul.addr 2, 37
    %s136 = scalar_lea.vmem %s0, %s135
    %v137 = vld [vmem:[%s136] sm:%s4]
    %s138 = scalar_lea.vmem [#allocation0], 296
    %139 = vst [vmem:[%s138] sm:%s4] %v137
    %s140 = smul.addr 2, 36
    %s141 = scalar_lea.vmem %s0, %s140
    %v142 = vld [vmem:[%s141] sm:%s4]
    %s143 = scalar_lea.vmem [#allocation0], 288
    %144 = vst [vmem:[%s143] sm:%s4] %v142
    %s145 = smul.addr 2, 35
    %s146 = scalar_lea.vmem %s0, %s145
    %v147 = vld [vmem:[%s146] sm:%s4]
    %s148 = scalar_lea.vmem [#allocation0], 280
    %149 = vst [vmem:[%s148] sm:%s4] %v147
    %s150 = smul.addr 2, 34
    %s151 = scalar_lea.vmem %s0, %s150
    %v152 = vld [vmem:[%s151] sm:%s4]
    %s153 = scalar_lea.vmem [#allocation0], 272
    %154 = vst [vmem:[%s153] sm:%s4] %v152
    %s155 = smul.addr 2, 33
    %s156 = scalar_lea.vmem %s0, %s155
    %v157 = vld [vmem:[%s156] sm:%s4]
    %s158 = scalar_lea.vmem [#allocation0], 264
    %159 = vst [vmem:[%s158] sm:%s4] %v157
    %s160 = smul.addr 2, 32
    %s161 = scalar_lea.vmem %s0, %s160
    %v162 = vld [vmem:[%s161] sm:%s4]
    %s163 = scalar_lea.vmem [#allocation0], 256
    %164 = vst [vmem:[%s163] sm:%s4] %v162
    %s165 = smul.addr 2, 31
    %s166 = scalar_lea.vmem %s0, %s165
    %v167 = vld [vmem:[%s166] sm:%s4]
    %s168 = scalar_lea.vmem [#allocation0], 248
    %169 = vst [vmem:[%s168] sm:%s4] %v167
    %s170 = smul.addr 2, 30
    %s171 = scalar_lea.vmem %s0, %s170
    %v172 = vld [vmem:[%s171] sm:%s4]
    %s173 = scalar_lea.vmem [#allocation0], 240
    %174 = vst [vmem:[%s173] sm:%s4] %v172
    %s175 = smul.addr 2, 29
    %s176 = scalar_lea.vmem %s0, %s175
    %v177 = vld [vmem:[%s176] sm:%s4]
    %s178 = scalar_lea.vmem [#allocation0], 232
    %179 = vst [vmem:[%s178] sm:%s4] %v177
    %s180 = smul.addr 2, 28
    %s181 = scalar_lea.vmem %s0, %s180
    %v182 = vld [vmem:[%s181] sm:%s4]
    %s183 = scalar_lea.vmem [#allocation0], 224
    %184 = vst [vmem:[%s183] sm:%s4] %v182
    %s185 = smul.addr 2, 27
    %s186 = scalar_lea.vmem %s0, %s185
    %v187 = vld [vmem:[%s186] sm:%s4]
    %s188 = scalar_lea.vmem [#allocation0], 216
    %189 = vst [vmem:[%s188] sm:%s4] %v187
    %s190 = smul.addr 2, 26
    %s191 = scalar_lea.vmem %s0, %s190
    %v192 = vld [vmem:[%s191] sm:%s4]
    %s193 = scalar_lea.vmem [#allocation0], 208
    %194 = vst [vmem:[%s193] sm:%s4] %v192
    %s195 = smul.addr 2, 25
    %s196 = scalar_lea.vmem %s0, %s195
    %v197 = vld [vmem:[%s196] sm:%s4]
    %s198 = scalar_lea.vmem [#allocation0], 200
    %199 = vst [vmem:[%s198] sm:%s4] %v197
    %s200 = smul.addr 2, 24
    %s201 = scalar_lea.vmem %s0, %s200
    %v202 = vld [vmem:[%s201] sm:%s4]
    %s203 = scalar_lea.vmem [#allocation0], 192
    %204 = vst [vmem:[%s203] sm:%s4] %v202
    %s205 = smul.addr 2, 23
    %s206 = scalar_lea.vmem %s0, %s205
    %v207 = vld [vmem:[%s206] sm:%s4]
    %s208 = scalar_lea.vmem [#allocation0], 184
    %209 = vst [vmem:[%s208] sm:%s4] %v207
    %s210 = smul.addr 2, 22
    %s211 = scalar_lea.vmem %s0, %s210
    %v212 = vld [vmem:[%s211] sm:%s4]
    %s213 = scalar_lea.vmem [#allocation0], 176
    %214 = vst [vmem:[%s213] sm:%s4] %v212
    %s215 = smul.addr 2, 21
    %s216 = scalar_lea.vmem %s0, %s215
    %v217 = vld [vmem:[%s216] sm:%s4]
    %s218 = scalar_lea.vmem [#allocation0], 168
    %219 = vst [vmem:[%s218] sm:%s4] %v217
    %s220 = smul.addr 2, 20
    %s221 = scalar_lea.vmem %s0, %s220
    %v222 = vld [vmem:[%s221] sm:%s4]
    %s223 = scalar_lea.vmem [#allocation0], 160
    %224 = vst [vmem:[%s223] sm:%s4] %v222
    %s225 = smul.addr 2, 19
    %s226 = scalar_lea.vmem %s0, %s225
    %v227 = vld [vmem:[%s226] sm:%s4]
    %s228 = scalar_lea.vmem [#allocation0], 152
    %229 = vst [vmem:[%s228] sm:%s4] %v227
    %s230 = smul.addr 2, 18
    %s231 = scalar_lea.vmem %s0, %s230
    %v232 = vld [vmem:[%s231] sm:%s4]
    %s233 = scalar_lea.vmem [#allocation0], 144
    %234 = vst [vmem:[%s233] sm:%s4] %v232
    %s235 = smul.addr 2, 17
    %s236 = scalar_lea.vmem %s0, %s235
    %v237 = vld [vmem:[%s236] sm:%s4]
    %s238 = scalar_lea.vmem [#allocation0], 136
    %239 = vst [vmem:[%s238] sm:%s4] %v237
    %s240 = smul.addr 2, 16
    %s241 = scalar_lea.vmem %s0, %s240
    %v242 = vld [vmem:[%s241] sm:%s4]
    %s243 = scalar_lea.vmem [#allocation0], 128
    %244 = vst [vmem:[%s243] sm:%s4] %v242
    %s245 = smul.addr 2, 15
    %s246 = scalar_lea.vmem %s0, %s245
    %v247 = vld [vmem:[%s246] sm:%s4]
    %s248 = scalar_lea.vmem [#allocation0], 120
    %249 = vst [vmem:[%s248] sm:%s4] %v247
    %s250 = smul.addr 2, 14
    %s251 = scalar_lea.vmem %s0, %s250
    %v252 = vld [vmem:[%s251] sm:%s4]
    %s253 = scalar_lea.vmem [#allocation0], 112
    %254 = vst [vmem:[%s253] sm:%s4] %v252
    %s255 = smul.addr 2, 13
    %s256 = scalar_lea.vmem %s0, %s255
    %v257 = vld [vmem:[%s256] sm:%s4]
    %s258 = scalar_lea.vmem [#allocation0], 104
    %259 = vst [vmem:[%s258] sm:%s4] %v257
    %s260 = smul.addr 2, 12
    %s261 = scalar_lea.vmem %s0, %s260
    %v262 = vld [vmem:[%s261] sm:%s4]
    %s263 = scalar_lea.vmem [#allocation0], 96
    %264 = vst [vmem:[%s263] sm:%s4] %v262
    %s265 = smul.addr 2, 11
    %s266 = scalar_lea.vmem %s0, %s265
    %v267 = vld [vmem:[%s266] sm:%s4]
    %s268 = scalar_lea.vmem [#allocation0], 88
    %269 = vst [vmem:[%s268] sm:%s4] %v267
    %s270 = smul.addr 2, 10
    %s271 = scalar_lea.vmem %s0, %s270
    %v272 = vld [vmem:[%s271] sm:%s4]
    %s273 = scalar_lea.vmem [#allocation0], 80
    %274 = vst [vmem:[%s273] sm:%s4] %v272
    %s275 = smul.addr 2, 9
    %s276 = scalar_lea.vmem %s0, %s275
    %v277 = vld [vmem:[%s276] sm:%s4]
    %s278 = scalar_lea.vmem [#allocation0], 72
    %279 = vst [vmem:[%s278] sm:%s4] %v277
    %s280 = smul.addr 2, 8
    %s281 = scalar_lea.vmem %s0, %s280
    %v282 = vld [vmem:[%s281] sm:%s4]
    %s283 = scalar_lea.vmem [#allocation0], 64
    %284 = vst [vmem:[%s283] sm:%s4] %v282
    %s285 = smul.addr 2, 7
    %s286 = scalar_lea.vmem %s0, %s285
    %v287 = vld [vmem:[%s286] sm:%s4]
    %s288 = scalar_lea.vmem [#allocation0], 56
    %289 = vst [vmem:[%s288] sm:%s4] %v287
    %s290 = smul.addr 2, 6
    %s291 = scalar_lea.vmem %s0, %s290
    %v292 = vld [vmem:[%s291] sm:%s4]
    %s293 = scalar_lea.vmem [#allocation0], 48
    %294 = vst [vmem:[%s293] sm:%s4] %v292
    %s295 = smul.addr 2, 5
    %s296 = scalar_lea.vmem %s0, %s295
    %v297 = vld [vmem:[%s296] sm:%s4]
    %s298 = scalar_lea.vmem [#allocation0], 40
    %299 = vst [vmem:[%s298] sm:%s4] %v297
    %s300 = smul.addr 2, 4
    %s301 = scalar_lea.vmem %s0, %s300
    %v302 = vld [vmem:[%s301] sm:%s4]
    %s303 = scalar_lea.vmem [#allocation0], 32
    %304 = vst [vmem:[%s303] sm:%s4] %v302
    %s305 = smul.addr 2, 3
    %s306 = scalar_lea.vmem %s0, %s305
    %v307 = vld [vmem:[%s306] sm:%s4]
    %s308 = scalar_lea.vmem [#allocation0], 24
    %309 = vst [vmem:[%s308] sm:%s4] %v307
    %s310 = smul.addr 2, 2
    %s311 = scalar_lea.vmem %s0, %s310
    %v312 = vld [vmem:[%s311] sm:%s4]
    %s313 = scalar_lea.vmem [#allocation0], 16
    %314 = vst [vmem:[%s313] sm:%s4] %v312
    %s315 = scalar_lea.vmem %s0, 2
    %v316 = vld [vmem:[%s315] sm:%s4]
    %s317 = scalar_lea.vmem [#allocation0], 8
    %318 = vst [vmem:[%s317] sm:%s4] %v316
    %v319 = vld [vmem:[%s0] sm:%s4]
    %320 = vst [vmem:[#allocation0] sm:%s4] %v319
    %v321 = vld [vmem:[#allocation0] ss:$8 sm:$0xf]
    %v322 = vld [vmem:[#allocation0] ss:$8 sm:$0xf0]
    %vm323 = vcmask 1047556
    %v324 = vsel %vm323, %v322, %v321
    %vm325 = vcmask 64512
    %326 = vst.msk [vmem:[%s1] sm:$0xff] %vm325, %v324
    %s327 = scalar_lea.vmem [#allocation0], 64
    %v328 = vld [vmem:[%s327] ss:$8 sm:$0xf]
    %s329 = scalar_lea.vmem [#allocation0], 64
    %v330 = vld [vmem:[%s329] ss:$8 sm:$0xf0]
    %vm331 = vcmask 1047556
    %v332 = vsel %vm331, %v330, %v328
    %vm333 = vcmask 64512
    %s334 = scalar_lea.vmem %s1, 8
    %335 = vst.msk [vmem:[%s334] sm:$0xff] %vm333, %v332
    %s336 = scalar_lea.vmem [#allocation0], 128
    %v337 = vld [vmem:[%s336] ss:$8 sm:$0xf]
    %s338 = scalar_lea.vmem [#allocation0], 128
    %v339 = vld [vmem:[%s338] ss:$8 sm:$0xf0]
    %vm340 = vcmask 1047556
    %v341 = vsel %vm340, %v339, %v337
    %vm342 = vcmask 64512
    %s343 = scalar_lea.vmem %s1, 16
    %344 = vst.msk [vmem:[%s343] sm:$0xff] %vm342, %v341
    %s345 = scalar_lea.vmem [#allocation0], 192
    %v346 = vld [vmem:[%s345] ss:$8 sm:$0xf]
    %s347 = scalar_lea.vmem [#allocation0], 192
    %v348 = vld [vmem:[%s347] ss:$8 sm:$0xf0]
    %vm349 = vcmask 1047556
    %v350 = vsel %vm349, %v348, %v346
    %vm351 = vcmask 64512
    %s352 = scalar_lea.vmem %s1, 24
    %353 = vst.msk [vmem:[%s352] sm:$0xff] %vm351, %v350
    %s354 = scalar_lea.vmem [#allocation0], 256
    %v355 = vld [vmem:[%s354] ss:$8 sm:$0xf]
    %s356 = scalar_lea.vmem [#allocation0], 256
    %v357 = vld [vmem:[%s356] ss:$8 sm:$0xf0]
    %vm358 = vcmask 1047556
    %v359 = vsel %vm358, %v357, %v355
    %vm360 = vcmask 64512
    %s361 = scalar_lea.vmem %s1, 32
    %362 = vst.msk [vmem:[%s361] sm:$0xff] %vm360, %v359
    %s363 = scalar_lea.vmem [#allocation0], 320
    %v364 = vld [vmem:[%s363] ss:$8 sm:$0xf]
    %s365 = scalar_lea.vmem [#allocation0], 320
    %v366 = vld [vmem:[%s365] ss:$8 sm:$0xf0]
    %vm367 = vcmask 1047556
    %v368 = vsel %vm367, %v366, %v364
    %vm369 = vcmask 64512
    %s370 = scalar_lea.vmem %s1, 40
    %371 = vst.msk [vmem:[%s370] sm:$0xff] %vm369, %v368
    %s372 = scalar_lea.vmem [#allocation0], 384
    %v373 = vld [vmem:[%s372] ss:$8 sm:$0xf]
    %s374 = scalar_lea.vmem [#allocation0], 384
    %v375 = vld [vmem:[%s374] ss:$8 sm:$0xf0]
    %vm376 = vcmask 1047556
    %v377 = vsel %vm376, %v375, %v373
    %vm378 = vcmask 64512
    %s379 = scalar_lea.vmem %s1, 48
    %380 = vst.msk [vmem:[%s379] sm:$0xff] %vm378, %v377
    %s381 = scalar_lea.vmem [#allocation0], 448
    %v382 = vld [vmem:[%s381] ss:$8 sm:$0xf]
    %s383 = scalar_lea.vmem [#allocation0], 448
    %v384 = vld [vmem:[%s383] ss:$8 sm:$0xf0]
    %vm385 = vcmask 1047556
    %v386 = vsel %vm385, %v384, %v382
    %vm387 = vcmask 64512
    %s388 = scalar_lea.vmem %s1, 56
    %389 = vst.msk [vmem:[%s388] sm:$0xff] %vm387, %v386
    %s390 = scalar_lea.vmem [#allocation0], 1
    %v391 = vld [vmem:[%s390] ss:$8 sm:$0xf]
    %s392 = scalar_lea.vmem [#allocation0], 1
    %v393 = vld [vmem:[%s392] ss:$8 sm:$0xf0]
    %vm394 = vcmask 1047556
    %v395 = vsel %vm394, %v393, %v391
    %396 = vrot.lane.b32.xlu0 %v395, 8
    %v397 = vpop.permute.xlu0 %396
    %vm398 = vcmask 130112
    %399 = vst.msk [vmem:[%s1] sm:$0xff] %vm398, %v397
    %s400 = scalar_lea.vmem [#allocation0], 257
    %v401 = vld [vmem:[%s400] ss:$8 sm:$0xf]
    %s402 = scalar_lea.vmem [#allocation0], 257
    %v403 = vld [vmem:[%s402] ss:$8 sm:$0xf0]
    %vm404 = vcmask 1047556
    %v405 = vsel %vm404, %v403, %v401
    %406 = vrot.lane.b32.xlu0 %v405, 8
    %v407 = vpop.permute.xlu0 %406
    %vm408 = vcmask 130112
    %s409 = scalar_lea.vmem %s1, 32
    %410 = vst.msk [vmem:[%s409] sm:$0xff] %vm408, %v407
    %s411 = scalar_lea.vmem [#allocation0], 65
    %v412 = vld [vmem:[%s411] ss:$8 sm:$0xf]
    %s413 = scalar_lea.vmem [#allocation0], 65
    %v414 = vld [vmem:[%s413] ss:$8 sm:$0xf0]
    %vm415 = vcmask 1047556
    %v416 = vsel %vm415, %v414, %v412
    %417 = vrot.lane.b32.xlu0 %v416, 8
    %v418 = vpop.permute.xlu0 %417
    %vm419 = vcmask 130112
    %s420 = scalar_lea.vmem %s1, 8
    %421 = vst.msk [vmem:[%s420] sm:$0xff] %vm419, %v418
    %s422 = scalar_lea.vmem [#allocation0], 321
    %v423 = vld [vmem:[%s422] ss:$8 sm:$0xf]
    %s424 = scalar_lea.vmem [#allocation0], 321
    %v425 = vld [vmem:[%s424] ss:$8 sm:$0xf0]
    %vm426 = vcmask 1047556
    %v427 = vsel %vm426, %v425, %v423
    %428 = vrot.lane.b32.xlu0 %v427, 8
    %v429 = vpop.permute.xlu0 %428
    %vm430 = vcmask 130112
    %s431 = scalar_lea.vmem %s1, 40
    %432 = vst.msk [vmem:[%s431] sm:$0xff] %vm430, %v429
    %s433 = scalar_lea.vmem [#allocation0], 129
    %v434 = vld [vmem:[%s433] ss:$8 sm:$0xf]
    %s435 = scalar_lea.vmem [#allocation0], 129
    %v436 = vld [vmem:[%s435] ss:$8 sm:$0xf0]
    %vm437 = vcmask 1047556
    %v438 = vsel %vm437, %v436, %v434
    %439 = vrot.lane.b32.xlu0 %v438, 8
    %v440 = vpop.permute.xlu0 %439
    %vm441 = vcmask 130112
    %s442 = scalar_lea.vmem %s1, 16
    %443 = vst.msk [vmem:[%s442] sm:$0xff] %vm441, %v440
    %s444 = scalar_lea.vmem [#allocation0], 385
    %v445 = vld [vmem:[%s444] ss:$8 sm:$0xf]
    %s446 = scalar_lea.vmem [#allocation0], 385
    %v447 = vld [vmem:[%s446] ss:$8 sm:$0xf0]
    %vm448 = vcmask 1047556
    %v449 = vsel %vm448, %v447, %v445
    %450 = vrot.lane.b32.xlu0 %v449, 8
    %v451 = vpop.permute.xlu0 %450
    %vm452 = vcmask 130112
    %s453 = scalar_lea.vmem %s1, 48
    %454 = vst.msk [vmem:[%s453] sm:$0xff] %vm452, %v451
    %s455 = scalar_lea.vmem [#allocation0], 193
    %v456 = vld [vmem:[%s455] ss:$8 sm:$0xf]
    %s457 = scalar_lea.vmem [#allocation0], 193
    %v458 = vld [vmem:[%s457] ss:$8 sm:$0xf0]
    %vm459 = vcmask 1047556
    %v460 = vsel %vm459, %v458, %v456
    %461 = vrot.lane.b32.xlu0 %v460, 8
    %v462 = vpop.permute.xlu0 %461
    %vm463 = vcmask 130112
    %s464 = scalar_lea.vmem %s1, 24
    %465 = vst.msk [vmem:[%s464] sm:$0xff] %vm463, %v462
    %s466 = scalar_lea.vmem [#allocation0], 449
    %v467 = vld [vmem:[%s466] ss:$8 sm:$0xf]
    %s468 = scalar_lea.vmem [#allocation0], 449
    %v469 = vld [vmem:[%s468] ss:$8 sm:$0xf0]
    %vm470 = vcmask 1047556
    %v471 = vsel %vm470, %v469, %v467
    %472 = vrot.lane.b32.xlu0 %v471, 8
    %v473 = vpop.permute.xlu0 %472
    %vm474 = vcmask 130112
    %s475 = scalar_lea.vmem %s1, 56
    %476 = vst.msk [vmem:[%s475] sm:$0xff] %vm474, %v473

// kernel: code_summary_forward.1
$region0: #{code_summary_forward.1}
  #allocation0 [shape = 'u32[]', space=smem, size = 0x4, offset = 0x4, fixed_abs, tag = 'smem constant byte address 0x4 - core index']
  #allocation1 [shape = 'u32[144,128]{1,0:T(1,128)}', space=vmem, size = 0x12000, scoped, tag = 'internal scratch']
  %s0 = inlined_call_operand.vmem [shape: s32[64,1], index: 0, kind: input, shape index: {}]
  %s1 = inlined_call_operand.vmem [shape: bf16[64,1024], index: 1, kind: input, shape index: {}]
  %s2 = inlined_call_operand.vmem [shape: bf16[128,192], index: 2, kind: input, shape index: {}]
  %s3 = inlined_call_operand.vmem [shape: f32[8,64], index: 3, kind: input, shape index: {}]
  %s4 = inlined_call_operand.vmem [shape: f32[4,32,32], index: 4, kind: input, shape index: {}]
  %s5 = inlined_call_operand.vmem [shape: f32[4,16,16], index: 5, kind: input, shape index: {}]
  %s6 = inlined_call_operand.vmem [shape: f32[16,32], index: 6, kind: input, shape index: {}]
  %s7 = inlined_call_operand.hbm [shape: f32[16,128], index: 7, kind: output, shape index: {0}]
  %s8 = inlined_call_operand.hbm [shape: f32[1,1], index: 8, kind: output, shape index: {1}]
  %9 = xla_tuple %s7, %s8
  %s10 = sld [smem:[#allocation0]]
  $region46: #{code_summary_forward.1} parent=0
    _
  %s12 = ssub.s32 1, %s10
  %s13 = scalar_select 0, %s12, %s10
  $region1: #{code_summary_forward.1} parent=0
    #allocation2 [shape = 'u8[8192]{0}', space=vmem, size = 0x2000, scoped, tag = 'output window, operand 0, single buffered']
    #allocation3 [shape = 's32[1]{0}', space=sflag, size = 0x4, scoped, tag = 'scoped memory for code_summary_forward.1']
    #allocation4 [shape = 's32[1]{0}', space=sflag, size = 0x4, scoped, tag = 'scoped memory for code_summary_forward.1']
    #allocation5 [shape = 'u8[512]{0}', space=smem, size = 0x200, scoped, tag = 'output window, operand 1, single buffered']
    %14 = vsyncpa [#allocation3], 0
    %15 = vsyncpa [#allocation4], 0
    // Predicated region
    $region2: #{code_summary_forward.1} parent=1 // pred_check
      _
    $region3: #{code_summary_forward.1} parent=1 // pred_check_branch
      %17 = sbr.rel (0) target = $region5
    $region4: #{code_summary_forward.1} parent=1 // pred_region
      _
    $region5: #{code_summary_forward.1} parent=1 // pred_fallthru
      _
    // Predicated region
    $region6: #{code_summary_forward.1} parent=1 // pred_check
      _
    $region7: #{code_summary_forward.1} parent=1 // pred_check_branch
      %19 = sbr.rel (0) target = $region9
    $region8: #{code_summary_forward.1} parent=1 // pred_region
      _
    $region9: #{code_summary_forward.1} parent=1 // pred_fallthru
      _
    // Predicated region
    $region10: #{code_summary_forward.1} parent=1 // pred_check
      _
    $region11: #{code_summary_forward.1} parent=1 // pred_check_branch
      %21 = sbr.rel (0) target = $region13
    $region12: #{code_summary_forward.1} parent=1 // pred_region
      _
    $region13: #{code_summary_forward.1} parent=1 // pred_fallthru
      _
    // Predicated region
    $region14: #{code_summary_forward.1} parent=1 // pred_check
      _
    $region15: #{code_summary_forward.1} parent=1 // pred_check_branch
      %23 = sbr.rel (0) target = $region17
    $region16: #{code_summary_forward.1} parent=1 // pred_region
      _
    $region17: #{code_summary_forward.1} parent=1 // pred_fallthru
      _
    // Predicated region
    $region18: #{code_summary_forward.1} parent=1 // pred_check
      _
    $region19: #{code_summary_forward.1} parent=1 // pred_check_branch
      %25 = sbr.rel (0) target = $region21
    $region20: #{code_summary_forward.1} parent=1 // pred_region
      _
    $region21: #{code_summary_forward.1} parent=1 // pred_fallthru
      _
    // Predicated region
    $region22: #{code_summary_forward.1} parent=1 // pred_check
      _
    $region23: #{code_summary_forward.1} parent=1 // pred_check_branch
      %27 = sbr.rel (0) target = $region25
    $region24: #{code_summary_forward.1} parent=1 // pred_region
      _
    $region25: #{code_summary_forward.1} parent=1 // pred_fallthru
      _
    // Predicated region
    $region26: #{code_summary_forward.1} parent=1 // pred_check
      _
    $region27: #{code_summary_forward.1} parent=1 // pred_check_branch
      %29 = sbr.rel (0) target = $region29
    $region28: #{code_summary_forward.1} parent=1 // pred_region
      _
    $region29: #{code_summary_forward.1} parent=1 // pred_fallthru
      _
    %v31 = vld [vmem:[%s0] sm:$0xff]
    %v32 = vld [vmem:[%s0 + $0x8] sm:$0xff]
    %v33 = vld [vmem:[%s0 + $0x10] sm:$0xff]
    %v34 = vld [vmem:[%s0 + $0x18] sm:$0xff]
    %v35 = vld [vmem:[%s0 + $0x20] sm:$0xff]
    %v36 = vld [vmem:[%s0 + $0x28] sm:$0xff]
    %v37 = vld [vmem:[%s0 + $0x30] sm:$0xff]
    %v38 = vld [vmem:[%s0 + $0x38] sm:$0xff]
    %v39 = vld [vmem:[%s2] sm:$0xf]
    %v40 = vld [vmem:[%s2 + $0x8] sm:$0xf]
    %v41 = vld [vmem:[%s2 + $0x10] sm:$0xf]
    %v42 = vld [vmem:[%s2 + $0x18] sm:$0xf]
    %v43 = vld [vmem:[%s2 + $0x20] sm:$0xf]
    %v44 = vld [vmem:[%s2 + $0x28] sm:$0xf]
    %v45 = vld [vmem:[%s2 + $0x30] sm:$0xf]
    %v46 = vld [vmem:[%s2 + $0x38] sm:$0xf]
    %v47 = vld [vmem:[%s2 + $0x40] sm:$0xf]
    %v48 = vld [vmem:[%s2 + $0x48] sm:$0xf]
    %v49 = vld [vmem:[%s2 + $0x50] sm:$0xf]
    %v50 = vld [vmem:[%s2 + $0x58] sm:$0xf]
    %v51 = vld [vmem:[%s2 + $0x60] sm:$0xf]
    %v52 = vld [vmem:[%s2 + $0x68] sm:$0xf]
    %v53 = vld [vmem:[%s2 + $0x70] sm:$0xf]
    %v54 = vld [vmem:[%s2 + $0x78] sm:$0xf]
    %v55 = vld [vmem:[%s4] sm:$0xff]
    %v56 = vld [vmem:[%s4 + $0x8] sm:$0xff]
    %v57 = vld [vmem:[%s4 + $0x10] sm:$0xff]
    %v58 = vld [vmem:[%s4 + $0x18] sm:$0xff]
    %v59 = vld [vmem:[%s4 + $0x20] sm:$0xff]
    %v60 = vld [vmem:[%s4 + $0x28] sm:$0xff]
    %v61 = vld [vmem:[%s4 + $0x30] sm:$0xff]
    %v62 = vld [vmem:[%s4 + $0x38] sm:$0xff]
    %v63 = vld [vmem:[%s4 + $0x40] sm:$0xff]
    %v64 = vld [vmem:[%s4 + $0x48] sm:$0xff]
    %v65 = vld [vmem:[%s4 + $0x50] sm:$0xff]
    %v66 = vld [vmem:[%s4 + $0x58] sm:$0xff]
    %v67 = vld [vmem:[%s4 + $0x60] sm:$0xff]
    %v68 = vld [vmem:[%s4 + $0x68] sm:$0xff]
    %v69 = vld [vmem:[%s4 + $0x70] sm:$0xff]
    %v70 = vld [vmem:[%s4 + $0x78] sm:$0xff]
    %v71 = vld [vmem:[%s5] sm:$0xff]
    %v72 = vld [vmem:[%s5 + $0x8] sm:$0xff]
    %v73 = vld [vmem:[%s5 + $0x10] sm:$0xff]
    %v74 = vld [vmem:[%s5 + $0x18] sm:$0xff]
    %v75 = vld [vmem:[%s5 + $0x20] sm:$0xff]
    %v76 = vld [vmem:[%s5 + $0x28] sm:$0xff]
    %v77 = vld [vmem:[%s5 + $0x30] sm:$0xff]
    %v78 = vld [vmem:[%s5 + $0x38] sm:$0xff]
    %v79 = vld [vmem:[%s6] sm:$0xff]
    %v80 = vld [vmem:[%s6 + $0x8] sm:$0xff]
    %v81 = vlaneseq
    %v82 = vand.u32 %v81, 127
    %83 = vset.pattern.permute.xlu0 0
    %84 = vperm.xlu0 %83, %v31
    %v85 = vpop.permute.xlu0 %84
    %86 = vset.pattern.permute.xlu0 0
    %87 = vperm.xlu0 %86, %v32
    %v88 = vpop.permute.xlu0 %87
    %89 = vset.pattern.permute.xlu0 0
    %90 = vperm.xlu0 %89, %v33
    %v91 = vpop.permute.xlu0 %90
    %92 = vset.pattern.permute.xlu0 0
    %93 = vperm.xlu0 %92, %v34
    %v94 = vpop.permute.xlu0 %93
    %vm95 = vcmp.eq.s32.totalorder %v82, %v85
    %vm96 = vcmp.eq.s32.totalorder %v82, %v88
    %vm97 = vcmp.eq.s32.totalorder %v82, %v91
    %vm98 = vcmp.eq.s32.totalorder %v82, %v94
    %v99 = vsel %vm95, 1, 0
    %v100 = vsel %vm96, 1, 0
    %v101 = vsel %vm97, 1, 0
    %v102 = vsel %vm98, 1, 0
    %v103 = vcvt.s32.f32 %v99
    %v104 = vcvt.s32.f32 %v100
    %v105 = vcvt.s32.f32 %v101
    %v106 = vcvt.s32.f32 %v102
    %v107 = vpack.c.bf16 %v104, %v103
    %v108 = vpack.c.bf16 %v106, %v105
    %v125 = vunpack.c.l.b16 %v39
    %v126 = vunpack.c.l.b16 %v40
    %v127 = vunpack.c.l.b16 %v41
    %v128 = vunpack.c.l.b16 %v42
    %v129 = vunpack.c.l.b16 %v43
    %v130 = vunpack.c.l.b16 %v44
    %v131 = vunpack.c.l.b16 %v45
    %v132 = vunpack.c.l.b16 %v46
    %v133 = vunpack.c.l.b16 %v47
    %v134 = vunpack.c.l.b16 %v48
    %v135 = vunpack.c.l.b16 %v49
    %v136 = vunpack.c.l.b16 %v50
    %v137 = vunpack.c.l.b16 %v51
    %v138 = vunpack.c.l.b16 %v52
    %v139 = vunpack.c.l.b16 %v53
    %v140 = vunpack.c.l.b16 %v54
    %v141 = vpack.c.b16 %v126, %v125
    %v142 = vpack.c.b16 %v128, %v127
    %v143 = vpack.c.b16 %v130, %v129
    %v144 = vpack.c.b16 %v132, %v131
    %v145 = vpack.c.b16 %v134, %v133
    %v146 = vpack.c.b16 %v136, %v135
    %v147 = vpack.c.b16 %v138, %v137
    %v148 = vpack.c.b16 %v140, %v139
    %157 = vmatprep.subr.bf16.mxu0 0
    %158 = vmatpush1.bf16.msra.mxu0 %v148
    %159 = vmatprep.subr.bf16.mxu0 0
    %160 = vmatpush1.bf16.msra.mxu0 %v147
    %161 = vmatprep.subr.bf16.mxu0 0
    %162 = vmatpush1.bf16.msra.mxu0 %v146
    %163 = vmatprep.subr.bf16.mxu0 0
    %164 = vmatpush1.bf16.msra.mxu0 %v145
    %165 = vmatprep.subr.bf16.mxu0 0
    %166 = vmatpush1.bf16.msra.mxu0 %v144
    %167 = vmatprep.subr.bf16.mxu0 0
    %168 = vmatpush1.bf16.msra.mxu0 %v143
    %169 = vmatprep.subr.bf16.mxu0 0
    %170 = vmatpush1.bf16.msra.mxu0 %v142
    %171 = vmatprep.subr.bf16.mxu0 0
    %172 = vmatpush1.bf16.msra.mxu0 %v141
    %173 = vmatprep.subr.bf16.mxu0 0
    %174 = vmatpush2.bf16.msra.mxu0 0
    %175 = vmatprep.subr.bf16.mxu0 0
    %176 = vmatpush2.bf16.msra.mxu0 0
    %177 = vmatprep.subr.bf16.mxu0 0
    %178 = vmatpush2.bf16.msra.mxu0 0
    %179 = vmatprep.subr.bf16.mxu0 0
    %180 = vmatpush2.bf16.msra.mxu0 0
    %181 = vmatprep.subr.bf16.mxu0 0
    %182 = vmatpush2.bf16.msra.mxu0 0
    %183 = vmatprep.subr.bf16.mxu0 0
    %184 = vmatpush2.bf16.msra.mxu0 0
    %185 = vmatprep.subr.bf16.mxu0 0
    %186 = vmatpush2.bf16.msra.mxu0 0
    %187 = vmatprep.subr.bf16.mxu0 0
    %188 = vmatpush2.bf16.msra.mxu0 0
    %189 = vmatprep.mubr.bf16.mxu0 0
    %190 = vmatmul.mubr.bf16.gmra.mxu0 %v107
    %v191 = vpop.f32.mrf.mxu0
    %v192 = vadd.f32 0.0, %v191
    %v193 = vpop.f32.mrf.mxu0
    %v194 = vpop.f32.mrf.mxu0
    %v195 = vadd.f32 0.0, %v194
    %v196 = vpop.f32.mrf.mxu0
    %197 = vmatprep.mubr.bf16.mxu0 0
    %198 = vmatmul.mubr.bf16.gmra.mxu0 %v108
    %v199 = vpop.f32.mrf.mxu0
    %v200 = vadd.f32 0.0, %v199
    %v201 = vpop.f32.mrf.mxu0
    %v202 = vpop.f32.mrf.mxu0
    %v203 = vadd.f32 0.0, %v202
    %v204 = vpop.f32.mrf.mxu0
    %205 = vdwg.mxu0
    %v206 = vld [vmem:[%s3] sm:$0x1]
    %v207 = vmul.f32 %v192, %v192
    %v208 = vmul.f32 %v195, %v195
    %v209 = vmul.f32 %v200, %v200
    %v210 = vmul.f32 %v203, %v203
    %vm211 = vcmask 523264
    %v212 = vsel %vm211, %v207, 0.0
    %213 = vadd.xlane.f32.xlu0 %v212
    %v214 = vpop.xlane.xlu0 %213
    %v215 = vsel %vm211, %v208, 0.0
    %216 = vadd.xlane.f32.xlu0 %v215
    %v217 = vpop.xlane.xlu0 %216
    %v218 = vsel %vm211, %v209, 0.0
    %219 = vadd.xlane.f32.xlu0 %v218
    %v220 = vpop.xlane.xlu0 %219
    %v221 = vsel %vm211, %v210, 0.0
    %222 = vadd.xlane.f32.xlu0 %v221
    %v223 = vpop.xlane.xlu0 %222
    %v224 = vrcp.pop 64.0
    %v225 = vmul.f32 %v214, %v224
    %v226 = vmul.f32 %v217, %v224
    %v227 = vmul.f32 %v220, %v224
    %v228 = vmul.f32 %v223, %v224
    %v229 = vadd.f32 %v225, 1e-06
    %v230 = vadd.f32 %v226, 1e-06
    %v231 = vadd.f32 %v227, 1e-06
    %v232 = vadd.f32 %v228, 1e-06
    %v233 = vrsqrt.pop %v229
    %v234 = vrsqrt.pop %v230
    %v235 = vrsqrt.pop %v231
    %v236 = vrsqrt.pop %v232
    %v237 = vmul.f32 %v192, %v233
    %v238 = vmul.f32 %v195, %v234
    %v239 = vmul.f32 %v200, %v235
    %v240 = vmul.f32 %v203, %v236
    %v241 = vlaneseq
    %v242 = vshrl.u32 %v241, 7
    %v243 = vsub.s32 0, %v242
    %v244 = vrot.slane %v206, %v243
    %v245 = vmul.f32 %v237, %v244
    %v246 = vmul.f32 %v238, %v244
    %v247 = vmul.f32 %v239, %v244
    %v248 = vmul.f32 %v240, %v244
    %v249 = vld [vmem:[%s1] sm:$0xff]
    %v250 = vld [vmem:[%s1 + $0x20] sm:$0xff]
    %v251 = vld [vmem:[%s1 + $0x40] sm:$0xff]
    %v252 = vld [vmem:[%s1 + $0x60] sm:$0xff]
    %v253 = vld [vmem:[%s1 + $0x80] sm:$0xff]
    %v254 = vld [vmem:[%s1 + $0xa0] sm:$0xff]
    %v255 = vld [vmem:[%s1 + $0xc0] sm:$0xff]
    %v256 = vld [vmem:[%s1 + $0xe0] sm:$0xff]
    %v257 = vpack.c.bf16 %v246, %v245
    %v258 = vpack.c.bf16 %v248, %v247
    %v267 = vunpack.c.l.b16 %v249
    %v268 = vunpack.c.h.b16 %v249
    %v269 = vunpack.c.l.b16 %v250
    %v270 = vunpack.c.h.b16 %v250
    %v271 = vunpack.c.l.b16 %v251
    %v272 = vunpack.c.h.b16 %v251
    %v273 = vunpack.c.l.b16 %v252
    %v274 = vunpack.c.h.b16 %v252
    %v275 = vunpack.c.l.b16 %v253
    %v276 = vunpack.c.h.b16 %v253
    %v277 = vunpack.c.l.b16 %v254
    %v278 = vunpack.c.h.b16 %v254
    %v279 = vunpack.c.l.b16 %v255
    %v280 = vunpack.c.h.b16 %v255
    %v281 = vunpack.c.l.b16 %v256
    %v282 = vunpack.c.h.b16 %v256
    %v283 = vpack.c.b16 %v269, %v267
    %v284 = vpack.c.b16 %v270, %v268
    %v285 = vpack.c.b16 %v273, %v271
    %v286 = vpack.c.b16 %v274, %v272
    %v287 = vpack.c.b16 %v277, %v275
    %v288 = vpack.c.b16 %v278, %v276
    %v289 = vpack.c.b16 %v281, %v279
    %v290 = vpack.c.b16 %v282, %v280
    %v300 = vsel %vm211, %v257, 0
    %v303 = vsel %vm211, %v258, 0
    %305 = vmatprep.subr.bf16.mxu0 0
    %306 = vmatpush1.bf16.msra.mxu0 0
    %307 = vmatprep.subr.bf16.mxu0 0
    %308 = vmatpush1.bf16.msra.mxu0 0
    %309 = vmatprep.subr.bf16.mxu0 0
    %310 = vmatpush1.bf16.msra.mxu0 0
    %311 = vmatprep.subr.bf16.mxu0 0
    %312 = vmatpush1.bf16.msra.mxu0 0
    %313 = vmatprep.subr.bf16.mxu0 %v290
    %314 = vmatpush1.bf16.msra.mxu0 %v289
    %315 = vmatprep.subr.bf16.mxu0 %v288
    %316 = vmatpush1.bf16.msra.mxu0 %v287
    %317 = vmatprep.subr.bf16.mxu0 %v286
    %318 = vmatpush1.bf16.msra.mxu0 %v285
    %319 = vmatprep.subr.bf16.mxu0 %v284
    %320 = vmatpush1.bf16.msra.mxu0 %v283
    %321 = vmatprep.subr.bf16.mxu0 0
    %322 = vmatpush2.bf16.msra.mxu0 0
    %323 = vmatprep.subr.bf16.mxu0 0
    %324 = vmatpush2.bf16.msra.mxu0 0
    %325 = vmatprep.subr.bf16.mxu0 0
    %326 = vmatpush2.bf16.msra.mxu0 0
    %327 = vmatprep.subr.bf16.mxu0 0
    %328 = vmatpush2.bf16.msra.mxu0 0
    %329 = vmatprep.subr.bf16.mxu0 0
    %330 = vmatpush2.bf16.msra.mxu0 0
    %331 = vmatprep.subr.bf16.mxu0 0
    %332 = vmatpush2.bf16.msra.mxu0 0
    %333 = vmatprep.subr.bf16.mxu0 0
    %334 = vmatpush2.bf16.msra.mxu0 0
    %335 = vmatprep.subr.bf16.mxu0 0
    %336 = vmatpush2.bf16.msra.mxu0 0
    %337 = vmatprep.mubr.bf16.mxu0 0
    %338 = vmatmul.mubr.bf16.gmra.mxu0 %v300
    %v339 = vpop.f32.mrf.mxu0
    %v340 = vadd.f32 0.0, %v339
    %v341 = vpop.f32.mrf.mxu0
    %v342 = vadd.f32 0.0, %v341
    %v343 = vpop.f32.mrf.mxu0
    %v344 = vadd.f32 0.0, %v343
    %v345 = vpop.f32.mrf.mxu0
    %v346 = vadd.f32 0.0, %v345
    %347 = vmatprep.mubr.bf16.mxu0 0
    %348 = vmatmul.mubr.bf16.gmra.mxu0 %v303
    %v349 = vpop.f32.mrf.mxu0
    %v350 = vadd.f32 0.0, %v349
    %v351 = vpop.f32.mrf.mxu0
    %v352 = vadd.f32 0.0, %v351
    %v353 = vpop.f32.mrf.mxu0
    %v354 = vadd.f32 0.0, %v353
    %v355 = vpop.f32.mrf.mxu0
    %v356 = vadd.f32 0.0, %v355
    %357 = vdwg.mxu0
    %v358 = vld [vmem:[%s1 + $0x4] sm:$0xf]
    %v359 = vld [vmem:[%s1 + $0x24] sm:$0xf]
    %v360 = vld [vmem:[%s1 + $0x44] sm:$0xf]
    %v361 = vld [vmem:[%s1 + $0x64] sm:$0xf]
    %v362 = vld [vmem:[%s1 + $0x84] sm:$0xf]
    %v363 = vld [vmem:[%s1 + $0xa4] sm:$0xf]
    %v364 = vld [vmem:[%s1 + $0xc4] sm:$0xf]
    %v365 = vld [vmem:[%s1 + $0xe4] sm:$0xf]
    %v366 = vpack.c.bf16 %v344, %v340
    %v367 = vpack.c.bf16 %v354, %v350
    %370 = vrot.lane.b32.xlu0 %v366, 64
    %v371 = vpop.permute.xlu0 %370
    %372 = vrot.lane.b32.xlu0 %v367, 64
    %v373 = vpop.permute.xlu0 %372
    %vm374 = vcmask 130048
    %v376 = vsel %vm374, %v366, 0
    %v379 = vsel %vm374, %v367, 0
    %v382 = vsel %vm374, %v371, 0
    %v385 = vsel %vm374, %v373, 0
    %387 = vmatprep.subr.bf16.mxu0 0
    %388 = vmatpush1.bf16.xpose.msra.mxu0 0
    %389 = vmatprep.subr.bf16.mxu0 0
    %390 = vmatpush1.bf16.xpose.msra.mxu0 0
    %391 = vmatprep.subr.bf16.mxu0 0
    %392 = vmatpush1.bf16.xpose.msra.mxu0 0
    %393 = vmatprep.subr.bf16.mxu0 0
    %394 = vmatpush1.bf16.xpose.msra.mxu0 0
    %395 = vmatprep.subr.bf16.mxu0 0
    %396 = vmatpush1.bf16.xpose.msra.mxu0 0
    %397 = vmatprep.subr.bf16.mxu0 0
    %398 = vmatpush1.bf16.xpose.msra.mxu0 0
    %399 = vmatprep.subr.bf16.mxu0 0
    %400 = vmatpush1.bf16.xpose.msra.mxu0 %v385
    %401 = vmatprep.subr.bf16.mxu0 0
    %402 = vmatpush1.bf16.xpose.msra.mxu0 %v382
    %403 = vmatprep.subr.bf16.mxu0 0
    %404 = vmatpush2.bf16.xpose.msra.mxu0 0
    %405 = vmatprep.subr.bf16.mxu0 0
    %406 = vmatpush2.bf16.xpose.msra.mxu0 0
    %407 = vmatprep.subr.bf16.mxu0 0
    %408 = vmatpush2.bf16.xpose.msra.mxu0 0
    %409 = vmatprep.subr.bf16.mxu0 0
    %410 = vmatpush2.bf16.xpose.msra.mxu0 0
    %411 = vmatprep.subr.bf16.mxu0 0
    %412 = vmatpush2.bf16.xpose.msra.mxu0 0
    %413 = vmatprep.subr.bf16.mxu0 0
    %414 = vmatpush2.bf16.xpose.msra.mxu0 0
    %415 = vmatprep.subr.bf16.mxu0 0
    %416 = vmatpush2.bf16.xpose.msra.mxu0 0
    %417 = vmatprep.subr.bf16.mxu0 0
    %418 = vmatpush2.bf16.xpose.msra.mxu0 0
    %419 = vmatprep.mubr.bf16.mxu0 0
    %420 = vmatmul.mubr.bf16.gmra.mxu0 %v376
    %v421 = vpop.f32.mrf.mxu0
    %v422 = vadd.f32 %v55, %v421
    %v423 = vpop.f32.mrf.mxu0
    %v424 = vpop.f32.mrf.mxu0
    %v425 = vadd.f32 %v56, %v424
    %v426 = vpop.f32.mrf.mxu0
    %427 = vmatprep.mubr.bf16.mxu0 0
    %428 = vmatmul.mubr.bf16.gmra.mxu0 %v379
    %v429 = vpop.f32.mrf.mxu0
    %v430 = vadd.f32 %v57, %v429
    %v431 = vpop.f32.mrf.mxu0
    %v432 = vpop.f32.mrf.mxu0
    %v433 = vadd.f32 %v58, %v432
    %v434 = vpop.f32.mrf.mxu0
    %435 = vdwg.mxu0
    %vm436 = vcmask 261120
    %v437 = vsel %vm436, %v422, -inf
    %438 = vmax.xlane.f32.xlu0 %v437
    %v439 = vpop.xlane.xlu0 %438
    %v440 = vsel %vm436, %v425, -inf
    %441 = vmax.xlane.f32.xlu0 %v440
    %v442 = vpop.xlane.xlu0 %441
    %v443 = vsel %vm436, %v430, -inf
    %444 = vmax.xlane.f32.xlu0 %v443
    %v445 = vpop.xlane.xlu0 %444
    %v446 = vsel %vm436, %v433, -inf
    %447 = vmax.xlane.f32.xlu0 %v446
    %v448 = vpop.xlane.xlu0 %447
    %v449 = vsub.f32 %v422, %v439
    %v450 = vsub.f32 %v425, %v442
    %v451 = vsub.f32 %v430, %v445
    %v452 = vsub.f32 %v433, %v448
    %v453 = vmul.f32 %v449, 1.442695
    %v454 = vpow.pop %v453
    %v455 = vmul.f32 %v450, 1.442695
    %v456 = vpow.pop %v455
    %v457 = vmul.f32 %v451, 1.442695
    %v458 = vpow.pop %v457
    %v459 = vmul.f32 %v452, 1.442695
    %v460 = vpow.pop %v459
    %v461 = vsel %vm436, %v454, 0.0
    %462 = vadd.xlane.f32.xlu0 %v461
    %v463 = vpop.xlane.xlu0 %462
    %v464 = vsel %vm436, %v456, 0.0
    %465 = vadd.xlane.f32.xlu0 %v464
    %v466 = vpop.xlane.xlu0 %465
    %v467 = vsel %vm436, %v458, 0.0
    %468 = vadd.xlane.f32.xlu0 %v467
    %v469 = vpop.xlane.xlu0 %468
    %v470 = vsel %vm436, %v460, 0.0
    %471 = vadd.xlane.f32.xlu0 %v470
    %v472 = vpop.xlane.xlu0 %471
    %v473 = vrcp.pop %v463
    %v474 = vrcp.pop %v466
    %v475 = vrcp.pop %v469
    %v476 = vrcp.pop %v472
    %v477 = vmul.f32 %v454, %v473
    %v478 = vmul.f32 %v456, %v474
    %v479 = vmul.f32 %v458, %v475
    %v480 = vmul.f32 %v460, %v476
    %v481 = vpack.c.bf16 %v478, %v477
    %v482 = vpack.c.bf16 %v480, %v479
    %v483 = vpack.c.bf16 %v346, %v342
    %v484 = vpack.c.bf16 %v356, %v352
    %v486 = vsel %vm436, %v481, 0
    %v489 = vsel %vm436, %v482, 0
    %491 = vmatprep.subr.bf16.mxu0 0
    %492 = vmatpush1.bf16.msra.mxu0 0
    %493 = vmatprep.subr.bf16.mxu0 0
    %494 = vmatpush1.bf16.msra.mxu0 0
    %495 = vmatprep.subr.bf16.mxu0 0
    %496 = vmatpush1.bf16.msra.mxu0 0
    %497 = vmatprep.subr.bf16.mxu0 0
    %498 = vmatpush1.bf16.msra.mxu0 0
    %499 = vmatprep.subr.bf16.mxu0 0
    %500 = vmatpush1.bf16.msra.mxu0 0
    %501 = vmatprep.subr.bf16.mxu0 0
    %502 = vmatpush1.bf16.msra.mxu0 0
    %503 = vmatprep.subr.bf16.mxu0 0
    %504 = vmatpush1.bf16.msra.mxu0 %v484
    %505 = vmatprep.subr.bf16.mxu0 0
    %506 = vmatpush1.bf16.msra.mxu0 %v483
    %507 = vmatprep.subr.bf16.mxu0 0
    %508 = vmatpush2.bf16.msra.mxu0 0
    %509 = vmatprep.subr.bf16.mxu0 0
    %510 = vmatpush2.bf16.msra.mxu0 0
    %511 = vmatprep.subr.bf16.mxu0 0
    %512 = vmatpush2.bf16.msra.mxu0 0
    %513 = vmatprep.subr.bf16.mxu0 0
    %514 = vmatpush2.bf16.msra.mxu0 0
    %515 = vmatprep.subr.bf16.mxu0 0
    %516 = vmatpush2.bf16.msra.mxu0 0
    %517 = vmatprep.subr.bf16.mxu0 0
    %518 = vmatpush2.bf16.msra.mxu0 0
    %519 = vmatprep.subr.bf16.mxu0 0
    %520 = vmatpush2.bf16.msra.mxu0 0
    %521 = vmatprep.subr.bf16.mxu0 0
    %522 = vmatpush2.bf16.msra.mxu0 0
    %523 = vmatprep.mubr.bf16.mxu0 0
    %524 = vmatmul.mubr.bf16.gmra.mxu0 %v486
    %v525 = vpop.f32.mrf.mxu0
    %v526 = vadd.f32 0.0, %v525
    %v527 = vpop.f32.mrf.mxu0
    %v528 = vpop.f32.mrf.mxu0
    %v529 = vadd.f32 0.0, %v528
    %v530 = vpop.f32.mrf.mxu0
    %531 = vmatprep.mubr.bf16.mxu0 0
    %532 = vmatmul.mubr.bf16.gmra.mxu0 %v489
    %v533 = vpop.f32.mrf.mxu0
    %v534 = vadd.f32 0.0, %v533
    %v535 = vpop.f32.mrf.mxu0
    %v536 = vpop.f32.mrf.mxu0
    %v537 = vadd.f32 0.0, %v536
    %v538 = vpop.f32.mrf.mxu0
    %539 = vdwg.mxu0
    %540 = vrot.lane.b32.xlu0 %v366, 112
    %v541 = vpop.permute.xlu0 %540
    %542 = vrot.lane.b32.xlu0 %v367, 112
    %v543 = vpop.permute.xlu0 %542
    %544 = vrot.lane.b32.xlu0 %v366, 48
    %v545 = vpop.permute.xlu0 %544
    %546 = vrot.lane.b32.xlu0 %v367, 48
    %v547 = vpop.permute.xlu0 %546
    %v549 = vsel %vm374, %v541, 0
    %v552 = vsel %vm374, %v543, 0
    %v555 = vsel %vm374, %v545, 0
    %v558 = vsel %vm374, %v547, 0
    %560 = vmatprep.subr.bf16.mxu0 0
    %561 = vmatpush1.bf16.xpose.msra.mxu0 0
    %562 = vmatprep.subr.bf16.mxu0 0
    %563 = vmatpush1.bf16.xpose.msra.mxu0 0
    %564 = vmatprep.subr.bf16.mxu0 0
    %565 = vmatpush1.bf16.xpose.msra.mxu0 0
    %566 = vmatprep.subr.bf16.mxu0 0
    %567 = vmatpush1.bf16.xpose.msra.mxu0 0
    %568 = vmatprep.subr.bf16.mxu0 0
    %569 = vmatpush1.bf16.xpose.msra.mxu0 0
    %570 = vmatprep.subr.bf16.mxu0 0
    %571 = vmatpush1.bf16.xpose.msra.mxu0 0
    %572 = vmatprep.subr.bf16.mxu0 0
    %573 = vmatpush1.bf16.xpose.msra.mxu0 %v558
    %574 = vmatprep.subr.bf16.mxu0 0
    %575 = vmatpush1.bf16.xpose.msra.mxu0 %v555
    %576 = vmatprep.subr.bf16.mxu0 0
    %577 = vmatpush2.bf16.xpose.msra.mxu0 0
    %578 = vmatprep.subr.bf16.mxu0 0
    %579 = vmatpush2.bf16.xpose.msra.mxu0 0
    %580 = vmatprep.subr.bf16.mxu0 0
    %581 = vmatpush2.bf16.xpose.msra.mxu0 0
    %582 = vmatprep.subr.bf16.mxu0 0
    %583 = vmatpush2.bf16.xpose.msra.mxu0 0
    %584 = vmatprep.subr.bf16.mxu0 0
    %585 = vmatpush2.bf16.xpose.msra.mxu0 0
    %586 = vmatprep.subr.bf16.mxu0 0
    %587 = vmatpush2.bf16.xpose.msra.mxu0 0
    %588 = vmatprep.subr.bf16.mxu0 0
    %589 = vmatpush2.bf16.xpose.msra.mxu0 0
    %590 = vmatprep.subr.bf16.mxu0 0
    %591 = vmatpush2.bf16.xpose.msra.mxu0 0
    %592 = vmatprep.mubr.bf16.mxu0 0
    %593 = vmatmul.mubr.bf16.gmra.mxu0 %v549
    %v594 = vpop.f32.mrf.mxu0
    %v595 = vadd.f32 %v59, %v594
    %v596 = vpop.f32.mrf.mxu0
    %v597 = vpop.f32.mrf.mxu0
    %v598 = vadd.f32 %v60, %v597
    %v599 = vpop.f32.mrf.mxu0
    %600 = vmatprep.mubr.bf16.mxu0 0
    %601 = vmatmul.mubr.bf16.gmra.mxu0 %v552
    %v602 = vpop.f32.mrf.mxu0
    %v603 = vadd.f32 %v61, %v602
    %v604 = vpop.f32.mrf.mxu0
    %v605 = vpop.f32.mrf.mxu0
    %v606 = vadd.f32 %v62, %v605
    %v607 = vpop.f32.mrf.mxu0
    %608 = vdwg.mxu0
    %v609 = vsel %vm436, %v595, -inf
    %610 = vmax.xlane.f32.xlu0 %v609
    %v611 = vpop.xlane.xlu0 %610
    %v612 = vsel %vm436, %v598, -inf
    %613 = vmax.xlane.f32.xlu0 %v612
    %v614 = vpop.xlane.xlu0 %613
    %v615 = vsel %vm436, %v603, -inf
    %616 = vmax.xlane.f32.xlu0 %v615
    %v617 = vpop.xlane.xlu0 %616
    %v618 = vsel %vm436, %v606, -inf
    %619 = vmax.xlane.f32.xlu0 %v618
    %v620 = vpop.xlane.xlu0 %619
    %v621 = vsub.f32 %v595, %v611
    %v622 = vsub.f32 %v598, %v614
    %v623 = vsub.f32 %v603, %v617
    %v624 = vsub.f32 %v606, %v620
    %v625 = vmul.f32 %v621, 1.442695
    %v626 = vpow.pop %v625
    %v627 = vmul.f32 %v622, 1.442695
    %v628 = vpow.pop %v627
    %v629 = vmul.f32 %v623, 1.442695
    %v630 = vpow.pop %v629
    %v631 = vmul.f32 %v624, 1.442695
    %v632 = vpow.pop %v631
    %v633 = vsel %vm436, %v626, 0.0
    %634 = vadd.xlane.f32.xlu0 %v633
    %v635 = vpop.xlane.xlu0 %634
    %v636 = vsel %vm436, %v628, 0.0
    %637 = vadd.xlane.f32.xlu0 %v636
    %v638 = vpop.xlane.xlu0 %637
    %v639 = vsel %vm436, %v630, 0.0
    %640 = vadd.xlane.f32.xlu0 %v639
    %v641 = vpop.xlane.xlu0 %640
    %v642 = vsel %vm436, %v632, 0.0
    %643 = vadd.xlane.f32.xlu0 %v642
    %v644 = vpop.xlane.xlu0 %643
    %v645 = vrcp.pop %v635
    %v646 = vrcp.pop %v638
    %v647 = vrcp.pop %v641
    %v648 = vrcp.pop %v644
    %v649 = vmul.f32 %v626, %v645
    %v650 = vmul.f32 %v628, %v646
    %v651 = vmul.f32 %v630, %v647
    %v652 = vmul.f32 %v632, %v648
    %v653 = vpack.c.bf16 %v650, %v649
    %v654 = vpack.c.bf16 %v652, %v651
    %657 = vrot.lane.b32.xlu0 %v483, 112
    %v658 = vpop.permute.xlu0 %657
    %659 = vrot.lane.b32.xlu0 %v484, 112
    %v660 = vpop.permute.xlu0 %659
    %v664 = vsel %vm436, %v653, 0
    %v667 = vsel %vm436, %v654, 0
    %669 = vmatprep.subr.bf16.mxu0 0
    %670 = vmatpush1.bf16.msra.mxu0 0
    %671 = vmatprep.subr.bf16.mxu0 0
    %672 = vmatpush1.bf16.msra.mxu0 0
    %673 = vmatprep.subr.bf16.mxu0 0
    %674 = vmatpush1.bf16.msra.mxu0 0
    %675 = vmatprep.subr.bf16.mxu0 0
    %676 = vmatpush1.bf16.msra.mxu0 0
    %677 = vmatprep.subr.bf16.mxu0 0
    %678 = vmatpush1.bf16.msra.mxu0 0
    %679 = vmatprep.subr.bf16.mxu0 0
    %680 = vmatpush1.bf16.msra.mxu0 0
    %681 = vmatprep.subr.bf16.mxu0 0
    %682 = vmatpush1.bf16.msra.mxu0 %v660
    %683 = vmatprep.subr.bf16.mxu0 0
    %684 = vmatpush1.bf16.msra.mxu0 %v658
    %685 = vmatprep.subr.bf16.mxu0 0
    %686 = vmatpush2.bf16.msra.mxu0 0
    %687 = vmatprep.subr.bf16.mxu0 0
    %688 = vmatpush2.bf16.msra.mxu0 0
    %689 = vmatprep.subr.bf16.mxu0 0
    %690 = vmatpush2.bf16.msra.mxu0 0
    %691 = vmatprep.subr.bf16.mxu0 0
    %692 = vmatpush2.bf16.msra.mxu0 0
    %693 = vmatprep.subr.bf16.mxu0 0
    %694 = vmatpush2.bf16.msra.mxu0 0
    %695 = vmatprep.subr.bf16.mxu0 0
    %696 = vmatpush2.bf16.msra.mxu0 0
    %697 = vmatprep.subr.bf16.mxu0 0
    %698 = vmatpush2.bf16.msra.mxu0 0
    %699 = vmatprep.subr.bf16.mxu0 0
    %700 = vmatpush2.bf16.msra.mxu0 0
    %701 = vmatprep.mubr.bf16.mxu0 0
    %702 = vmatmul.mubr.bf16.gmra.mxu0 %v664
    %v703 = vpop.f32.mrf.mxu0
    %v704 = vadd.f32 0.0, %v703
    %v705 = vpop.f32.mrf.mxu0
    %v706 = vpop.f32.mrf.mxu0
    %v707 = vadd.f32 0.0, %v706
    %v708 = vpop.f32.mrf.mxu0
    %709 = vmatprep.mubr.bf16.mxu0 0
    %710 = vmatmul.mubr.bf16.gmra.mxu0 %v667
    %v711 = vpop.f32.mrf.mxu0
    %v712 = vadd.f32 0.0, %v711
    %v713 = vpop.f32.mrf.mxu0
    %v714 = vpop.f32.mrf.mxu0
    %v715 = vadd.f32 0.0, %v714
    %v716 = vpop.f32.mrf.mxu0
    %717 = vdwg.mxu0
    %718 = vrot.lane.b32.xlu0 %v366, 96
    %v719 = vpop.permute.xlu0 %718
    %720 = vrot.lane.b32.xlu0 %v367, 96
    %v721 = vpop.permute.xlu0 %720
    %722 = vrot.lane.b32.xlu0 %v366, 32
    %v723 = vpop.permute.xlu0 %722
    %724 = vrot.lane.b32.xlu0 %v367, 32
    %v725 = vpop.permute.xlu0 %724
    %v727 = vsel %vm374, %v719, 0
    %v730 = vsel %vm374, %v721, 0
    %v733 = vsel %vm374, %v723, 0
    %v736 = vsel %vm374, %v725, 0
    %738 = vmatprep.subr.bf16.mxu0 0
    %739 = vmatpush1.bf16.xpose.msra.mxu0 0
    %740 = vmatprep.subr.bf16.mxu0 0
    %741 = vmatpush1.bf16.xpose.msra.mxu0 0
    %742 = vmatprep.subr.bf16.mxu0 0
    %743 = vmatpush1.bf16.xpose.msra.mxu0 0
    %744 = vmatprep.subr.bf16.mxu0 0
    %745 = vmatpush1.bf16.xpose.msra.mxu0 0
    %746 = vmatprep.subr.bf16.mxu0 0
    %747 = vmatpush1.bf16.xpose.msra.mxu0 0
    %748 = vmatprep.subr.bf16.mxu0 0
    %749 = vmatpush1.bf16.xpose.msra.mxu0 0
    %750 = vmatprep.subr.bf16.mxu0 0
    %751 = vmatpush1.bf16.xpose.msra.mxu0 %v736
    %752 = vmatprep.subr.bf16.mxu0 0
    %753 = vmatpush1.bf16.xpose.msra.mxu0 %v733
    %754 = vmatprep.subr.bf16.mxu0 0
    %755 = vmatpush2.bf16.xpose.msra.mxu0 0
    %756 = vmatprep.subr.bf16.mxu0 0
    %757 = vmatpush2.bf16.xpose.msra.mxu0 0
    %758 = vmatprep.subr.bf16.mxu0 0
    %759 = vmatpush2.bf16.xpose.msra.mxu0 0
    %760 = vmatprep.subr.bf16.mxu0 0
    %761 = vmatpush2.bf16.xpose.msra.mxu0 0
    %762 = vmatprep.subr.bf16.mxu0 0
    %763 = vmatpush2.bf16.xpose.msra.mxu0 0
    %764 = vmatprep.subr.bf16.mxu0 0
    %765 = vmatpush2.bf16.xpose.msra.mxu0 0
    %766 = vmatprep.subr.bf16.mxu0 0
    %767 = vmatpush2.bf16.xpose.msra.mxu0 0
    %768 = vmatprep.subr.bf16.mxu0 0
    %769 = vmatpush2.bf16.xpose.msra.mxu0 0
    %770 = vmatprep.mubr.bf16.mxu0 0
    %771 = vmatmul.mubr.bf16.gmra.mxu0 %v727
    %v772 = vpop.f32.mrf.mxu0
    %v773 = vadd.f32 %v63, %v772
    %v774 = vpop.f32.mrf.mxu0
    %v775 = vpop.f32.mrf.mxu0
    %v776 = vadd.f32 %v64, %v775
    %v777 = vpop.f32.mrf.mxu0
    %778 = vmatprep.mubr.bf16.mxu0 0
    %779 = vmatmul.mubr.bf16.gmra.mxu0 %v730
    %v780 = vpop.f32.mrf.mxu0
    %v781 = vadd.f32 %v65, %v780
    %v782 = vpop.f32.mrf.mxu0
    %v783 = vpop.f32.mrf.mxu0
    %v784 = vadd.f32 %v66, %v783
    %v785 = vpop.f32.mrf.mxu0
    %786 = vdwg.mxu0
    %v787 = vsel %vm436, %v773, -inf
    %788 = vmax.xlane.f32.xlu0 %v787
    %v789 = vpop.xlane.xlu0 %788
    %v790 = vsel %vm436, %v776, -inf
    %791 = vmax.xlane.f32.xlu0 %v790
    %v792 = vpop.xlane.xlu0 %791
    %v793 = vsel %vm436, %v781, -inf
    %794 = vmax.xlane.f32.xlu0 %v793
    %v795 = vpop.xlane.xlu0 %794
    %v796 = vsel %vm436, %v784, -inf
    %797 = vmax.xlane.f32.xlu0 %v796
    %v798 = vpop.xlane.xlu0 %797
    %v799 = vsub.f32 %v773, %v789
    %v800 = vsub.f32 %v776, %v792
    %v801 = vsub.f32 %v781, %v795
    %v802 = vsub.f32 %v784, %v798
    %v803 = vmul.f32 %v799, 1.442695
    %v804 = vpow.pop %v803
    %v805 = vmul.f32 %v800, 1.442695
    %v806 = vpow.pop %v805
    %v807 = vmul.f32 %v801, 1.442695
    %v808 = vpow.pop %v807
    %v809 = vmul.f32 %v802, 1.442695
    %v810 = vpow.pop %v809
    %v811 = vsel %vm436, %v804, 0.0
    %812 = vadd.xlane.f32.xlu0 %v811
    %v813 = vpop.xlane.xlu0 %812
    %v814 = vsel %vm436, %v806, 0.0
    %815 = vadd.xlane.f32.xlu0 %v814
    %v816 = vpop.xlane.xlu0 %815
    %v817 = vsel %vm436, %v808, 0.0
    %818 = vadd.xlane.f32.xlu0 %v817
    %v819 = vpop.xlane.xlu0 %818
    %v820 = vsel %vm436, %v810, 0.0
    %821 = vadd.xlane.f32.xlu0 %v820
    %v822 = vpop.xlane.xlu0 %821
    %v823 = vrcp.pop %v813
    %v824 = vrcp.pop %v816
    %v825 = vrcp.pop %v819
    %v826 = vrcp.pop %v822
    %v827 = vmul.f32 %v804, %v823
    %v828 = vmul.f32 %v806, %v824
    %v829 = vmul.f32 %v808, %v825
    %v830 = vmul.f32 %v810, %v826
    %v831 = vpack.c.bf16 %v828, %v827
    %v832 = vpack.c.bf16 %v830, %v829
    %833 = vrot.lane.b32.xlu0 %v483, 96
    %v834 = vpop.permute.xlu0 %833
    %835 = vrot.lane.b32.xlu0 %v484, 96
    %v836 = vpop.permute.xlu0 %835
    %v840 = vsel %vm436, %v831, 0
    %v843 = vsel %vm436, %v832, 0
    %845 = vmatprep.subr.bf16.mxu0 0
    %846 = vmatpush1.bf16.msra.mxu0 0
    %847 = vmatprep.subr.bf16.mxu0 0
    %848 = vmatpush1.bf16.msra.mxu0 0
    %849 = vmatprep.subr.bf16.mxu0 0
    %850 = vmatpush1.bf16.msra.mxu0 0
    %851 = vmatprep.subr.bf16.mxu0 0
    %852 = vmatpush1.bf16.msra.mxu0 0
    %853 = vmatprep.subr.bf16.mxu0 0
    %854 = vmatpush1.bf16.msra.mxu0 0
    %855 = vmatprep.subr.bf16.mxu0 0
    %856 = vmatpush1.bf16.msra.mxu0 0
    %857 = vmatprep.subr.bf16.mxu0 0
    %858 = vmatpush1.bf16.msra.mxu0 %v836
    %859 = vmatprep.subr.bf16.mxu0 0
    %860 = vmatpush1.bf16.msra.mxu0 %v834
    %861 = vmatprep.subr.bf16.mxu0 0
    %862 = vmatpush2.bf16.msra.mxu0 0
    %863 = vmatprep.subr.bf16.mxu0 0
    %864 = vmatpush2.bf16.msra.mxu0 0
    %865 = vmatprep.subr.bf16.mxu0 0
    %866 = vmatpush2.bf16.msra.mxu0 0
    %867 = vmatprep.subr.bf16.mxu0 0
    %868 = vmatpush2.bf16.msra.mxu0 0
    %869 = vmatprep.subr.bf16.mxu0 0
    %870 = vmatpush2.bf16.msra.mxu0 0
    %871 = vmatprep.subr.bf16.mxu0 0
    %872 = vmatpush2.bf16.msra.mxu0 0
    %873 = vmatprep.subr.bf16.mxu0 0
    %874 = vmatpush2.bf16.msra.mxu0 0
    %875 = vmatprep.subr.bf16.mxu0 0
    %876 = vmatpush2.bf16.msra.mxu0 0
    %877 = vmatprep.mubr.bf16.mxu0 0
    %878 = vmatmul.mubr.bf16.gmra.mxu0 %v840
    %v879 = vpop.f32.mrf.mxu0
    %v880 = vadd.f32 0.0, %v879
    %v881 = vpop.f32.mrf.mxu0
    %v882 = vpop.f32.mrf.mxu0
    %v883 = vadd.f32 0.0, %v882
    %v884 = vpop.f32.mrf.mxu0
    %885 = vmatprep.mubr.bf16.mxu0 0
    %886 = vmatmul.mubr.bf16.gmra.mxu0 %v843
    %v887 = vpop.f32.mrf.mxu0
    %v888 = vadd.f32 0.0, %v887
    %v889 = vpop.f32.mrf.mxu0
    %v890 = vpop.f32.mrf.mxu0
    %v891 = vadd.f32 0.0, %v890
    %v892 = vpop.f32.mrf.mxu0
    %893 = vdwg.mxu0
    %894 = vrot.lane.b32.xlu0 %v366, 80
    %v895 = vpop.permute.xlu0 %894
    %896 = vrot.lane.b32.xlu0 %v367, 80
    %v897 = vpop.permute.xlu0 %896
    %898 = vrot.lane.b32.xlu0 %v366, 16
    %v899 = vpop.permute.xlu0 %898
    %900 = vrot.lane.b32.xlu0 %v367, 16
    %v901 = vpop.permute.xlu0 %900
    %v903 = vsel %vm374, %v895, 0
    %v906 = vsel %vm374, %v897, 0
    %v909 = vsel %vm374, %v899, 0
    %v912 = vsel %vm374, %v901, 0
    %914 = vmatprep.subr.bf16.mxu0 0
    %915 = vmatpush1.bf16.xpose.msra.mxu0 0
    %916 = vmatprep.subr.bf16.mxu0 0
    %917 = vmatpush1.bf16.xpose.msra.mxu0 0
    %918 = vmatprep.subr.bf16.mxu0 0
    %919 = vmatpush1.bf16.xpose.msra.mxu0 0
    %920 = vmatprep.subr.bf16.mxu0 0
    %921 = vmatpush1.bf16.xpose.msra.mxu0 0
    %922 = vmatprep.subr.bf16.mxu0 0
    %923 = vmatpush1.bf16.xpose.msra.mxu0 0
    %924 = vmatprep.subr.bf16.mxu0 0
    %925 = vmatpush1.bf16.xpose.msra.mxu0 0
    %926 = vmatprep.subr.bf16.mxu0 0
    %927 = vmatpush1.bf16.xpose.msra.mxu0 %v912
    %928 = vmatprep.subr.bf16.mxu0 0
    %929 = vmatpush1.bf16.xpose.msra.mxu0 %v909
    %930 = vmatprep.subr.bf16.mxu0 0
    %931 = vmatpush2.bf16.xpose.msra.mxu0 0
    %932 = vmatprep.subr.bf16.mxu0 0
    %933 = vmatpush2.bf16.xpose.msra.mxu0 0
    %934 = vmatprep.subr.bf16.mxu0 0
    %935 = vmatpush2.bf16.xpose.msra.mxu0 0
    %936 = vmatprep.subr.bf16.mxu0 0
    %937 = vmatpush2.bf16.xpose.msra.mxu0 0
    %938 = vmatprep.subr.bf16.mxu0 0
    %939 = vmatpush2.bf16.xpose.msra.mxu0 0
    %940 = vmatprep.subr.bf16.mxu0 0
    %941 = vmatpush2.bf16.xpose.msra.mxu0 0
    %942 = vmatprep.subr.bf16.mxu0 0
    %943 = vmatpush2.bf16.xpose.msra.mxu0 0
    %944 = vmatprep.subr.bf16.mxu0 0
    %945 = vmatpush2.bf16.xpose.msra.mxu0 0
    %946 = vmatprep.mubr.bf16.mxu0 0
    %947 = vmatmul.mubr.bf16.gmra.mxu0 %v903
    %v948 = vpop.f32.mrf.mxu0
    %v949 = vadd.f32 %v67, %v948
    %v950 = vpop.f32.mrf.mxu0
    %v951 = vpop.f32.mrf.mxu0
    %v952 = vadd.f32 %v68, %v951
    %v953 = vpop.f32.mrf.mxu0
    %954 = vmatprep.mubr.bf16.mxu0 0
    %955 = vmatmul.mubr.bf16.gmra.mxu0 %v906
    %v956 = vpop.f32.mrf.mxu0
    %v957 = vadd.f32 %v69, %v956
    %v958 = vpop.f32.mrf.mxu0
    %v959 = vpop.f32.mrf.mxu0
    %v960 = vadd.f32 %v70, %v959
    %v961 = vpop.f32.mrf.mxu0
    %962 = vdwg.mxu0
    %v963 = vsel %vm436, %v949, -inf
    %964 = vmax.xlane.f32.xlu0 %v963
    %v965 = vpop.xlane.xlu0 %964
    %v966 = vsel %vm436, %v952, -inf
    %967 = vmax.xlane.f32.xlu0 %v966
    %v968 = vpop.xlane.xlu0 %967
    %v969 = vsel %vm436, %v957, -inf
    %970 = vmax.xlane.f32.xlu0 %v969
    %v971 = vpop.xlane.xlu0 %970
    %v972 = vsel %vm436, %v960, -inf
    %973 = vmax.xlane.f32.xlu0 %v972
    %v974 = vpop.xlane.xlu0 %973
    %v975 = vsub.f32 %v949, %v965
    %v976 = vsub.f32 %v952, %v968
    %v977 = vsub.f32 %v957, %v971
    %v978 = vsub.f32 %v960, %v974
    %v979 = vmul.f32 %v975, 1.442695
    %v980 = vpow.pop %v979
    %v981 = vmul.f32 %v976, 1.442695
    %v982 = vpow.pop %v981
    %v983 = vmul.f32 %v977, 1.442695
    %v984 = vpow.pop %v983
    %v985 = vmul.f32 %v978, 1.442695
    %v986 = vpow.pop %v985
    %v987 = vsel %vm436, %v980, 0.0
    %988 = vadd.xlane.f32.xlu0 %v987
    %v989 = vpop.xlane.xlu0 %988
    %v990 = vsel %vm436, %v982, 0.0
    %991 = vadd.xlane.f32.xlu0 %v990
    %v992 = vpop.xlane.xlu0 %991
    %v993 = vsel %vm436, %v984, 0.0
    %994 = vadd.xlane.f32.xlu0 %v993
    %v995 = vpop.xlane.xlu0 %994
    %v996 = vsel %vm436, %v986, 0.0
    %997 = vadd.xlane.f32.xlu0 %v996
    %v998 = vpop.xlane.xlu0 %997
    %v999 = vrcp.pop %v989
    %v1000 = vrcp.pop %v992
    %v1001 = vrcp.pop %v995
    %v1002 = vrcp.pop %v998
    %v1003 = vmul.f32 %v980, %v999
    %v1004 = vmul.f32 %v982, %v1000
    %v1005 = vmul.f32 %v984, %v1001
    %v1006 = vmul.f32 %v986, %v1002
    %v1007 = vpack.c.bf16 %v1004, %v1003
    %v1008 = vpack.c.bf16 %v1006, %v1005
    %1009 = vrot.lane.b32.xlu0 %v483, 80
    %v1010 = vpop.permute.xlu0 %1009
    %1011 = vrot.lane.b32.xlu0 %v484, 80
    %v1012 = vpop.permute.xlu0 %1011
    %v1016 = vsel %vm436, %v1007, 0
    %v1019 = vsel %vm436, %v1008, 0
    %1021 = vmatprep.subr.bf16.mxu0 0
    %1022 = vmatpush1.bf16.msra.mxu0 0
    %1023 = vmatprep.subr.bf16.mxu0 0
    %1024 = vmatpush1.bf16.msra.mxu0 0
    %1025 = vmatprep.subr.bf16.mxu0 0
    %1026 = vmatpush1.bf16.msra.mxu0 0
    %1027 = vmatprep.subr.bf16.mxu0 0
    %1028 = vmatpush1.bf16.msra.mxu0 0
    %1029 = vmatprep.subr.bf16.mxu0 0
    %1030 = vmatpush1.bf16.msra.mxu0 0
    %1031 = vmatprep.subr.bf16.mxu0 0
    %1032 = vmatpush1.bf16.msra.mxu0 0
    %1033 = vmatprep.subr.bf16.mxu0 0
    %1034 = vmatpush1.bf16.msra.mxu0 %v1012
    %1035 = vmatprep.subr.bf16.mxu0 0
    %1036 = vmatpush1.bf16.msra.mxu0 %v1010
    %1037 = vmatprep.subr.bf16.mxu0 0
    %1038 = vmatpush2.bf16.msra.mxu0 0
    %1039 = vmatprep.subr.bf16.mxu0 0
    %1040 = vmatpush2.bf16.msra.mxu0 0
    %1041 = vmatprep.subr.bf16.mxu0 0
    %1042 = vmatpush2.bf16.msra.mxu0 0
    %1043 = vmatprep.subr.bf16.mxu0 0
    %1044 = vmatpush2.bf16.msra.mxu0 0
    %1045 = vmatprep.subr.bf16.mxu0 0
    %1046 = vmatpush2.bf16.msra.mxu0 0
    %1047 = vmatprep.subr.bf16.mxu0 0
    %1048 = vmatpush2.bf16.msra.mxu0 0
    %1049 = vmatprep.subr.bf16.mxu0 0
    %1050 = vmatpush2.bf16.msra.mxu0 0
    %1051 = vmatprep.subr.bf16.mxu0 0
    %1052 = vmatpush2.bf16.msra.mxu0 0
    %1053 = vmatprep.mubr.bf16.mxu0 0
    %1054 = vmatmul.mubr.bf16.gmra.mxu0 %v1016
    %v1055 = vpop.f32.mrf.mxu0
    %v1056 = vadd.f32 0.0, %v1055
    %v1057 = vpop.f32.mrf.mxu0
    %v1058 = vpop.f32.mrf.mxu0
    %v1059 = vadd.f32 0.0, %v1058
    %v1060 = vpop.f32.mrf.mxu0
    %1061 = vmatprep.mubr.bf16.mxu0 0
    %1062 = vmatmul.mubr.bf16.gmra.mxu0 %v1019
    %v1063 = vpop.f32.mrf.mxu0
    %v1064 = vadd.f32 0.0, %v1063
    %v1065 = vpop.f32.mrf.mxu0
    %v1066 = vpop.f32.mrf.mxu0
    %v1067 = vadd.f32 0.0, %v1066
    %v1068 = vpop.f32.mrf.mxu0
    %1069 = vdwg.mxu0
    %1074 = vrot.lane.b32.xlu0 %v704, 16
    %v1075 = vpop.permute.xlu0 %1074
    %1076 = vrot.lane.b32.xlu0 %v707, 16
    %v1077 = vpop.permute.xlu0 %1076
    %1078 = vrot.lane.b32.xlu0 %v712, 16
    %v1079 = vpop.permute.xlu0 %1078
    %1080 = vrot.lane.b32.xlu0 %v715, 16
    %v1081 = vpop.permute.xlu0 %1080
    %1090 = vrot.lane.b32.xlu0 %v880, 32
    %v1091 = vpop.permute.xlu0 %1090
    %1092 = vrot.lane.b32.xlu0 %v883, 32
    %v1093 = vpop.permute.xlu0 %1092
    %1094 = vrot.lane.b32.xlu0 %v888, 32
    %v1095 = vpop.permute.xlu0 %1094
    %1096 = vrot.lane.b32.xlu0 %v891, 32
    %v1097 = vpop.permute.xlu0 %1096
    %1106 = vrot.lane.b32.xlu0 %v1056, 48
    %v1107 = vpop.permute.xlu0 %1106
    %1108 = vrot.lane.b32.xlu0 %v1059, 48
    %v1109 = vpop.permute.xlu0 %1108
    %1110 = vrot.lane.b32.xlu0 %v1064, 48
    %v1111 = vpop.permute.xlu0 %1110
    %1112 = vrot.lane.b32.xlu0 %v1067, 48
    %v1113 = vpop.permute.xlu0 %1112
    %v1118 = vsel %vm374, %v526, %v1075
    %v1119 = vsel %vm374, %v529, %v1077
    %v1120 = vsel %vm374, %v534, %v1079
    %v1121 = vsel %vm374, %v537, %v1081
    %v1122 = vsel %vm436, %v1118, %v1091
    %v1123 = vsel %vm436, %v1119, %v1093
    %v1124 = vsel %vm436, %v1120, %v1095
    %v1125 = vsel %vm436, %v1121, %v1097
    %vm1126 = vcmask 392192
    %v1127 = vsel %vm1126, %v1122, %v1107
    %v1128 = vsel %vm1126, %v1123, %v1109
    %v1129 = vsel %vm1126, %v1124, %v1111
    %v1130 = vsel %vm1126, %v1125, %v1113
    %v1131 = vpack.c.bf16 %v1128, %v1127
    %v1132 = vpack.c.bf16 %v1130, %v1129
    %v1141 = vunpack.c.l.b16 %v358
    %v1142 = vunpack.c.l.b16 %v359
    %v1143 = vunpack.c.l.b16 %v360
    %v1144 = vunpack.c.l.b16 %v361
    %v1145 = vunpack.c.l.b16 %v362
    %v1146 = vunpack.c.l.b16 %v363
    %v1147 = vunpack.c.l.b16 %v364
    %v1148 = vunpack.c.l.b16 %v365
    %v1149 = vpack.c.b16 %v1142, %v1141
    %v1150 = vpack.c.b16 %v1144, %v1143
    %v1151 = vpack.c.b16 %v1146, %v1145
    %v1152 = vpack.c.b16 %v1148, %v1147
    %1153 = vrot.lane.b32.xlu0 %v1149, 64
    %v1154 = vpop.permute.xlu0 %1153
    %1155 = vrot.lane.b32.xlu0 %v1150, 64
    %v1156 = vpop.permute.xlu0 %1155
    %1157 = vrot.lane.b32.xlu0 %v1151, 64
    %v1158 = vpop.permute.xlu0 %1157
    %1159 = vrot.lane.b32.xlu0 %v1152, 64
    %v1160 = vpop.permute.xlu0 %1159
    %v1166 = vsel %vm211, %v1131, 0
    %v1169 = vsel %vm211, %v1132, 0
    %1171 = vmatprep.subr.bf16.mxu0 0
    %1172 = vmatpush1.bf16.msra.mxu0 0
    %1173 = vmatprep.subr.bf16.mxu0 0
    %1174 = vmatpush1.bf16.msra.mxu0 0
    %1175 = vmatprep.subr.bf16.mxu0 0
    %1176 = vmatpush1.bf16.msra.mxu0 0
    %1177 = vmatprep.subr.bf16.mxu0 0
    %1178 = vmatpush1.bf16.msra.mxu0 0
    %1179 = vmatprep.subr.bf16.mxu0 0
    %1180 = vmatpush1.bf16.msra.mxu0 %v1160
    %1181 = vmatprep.subr.bf16.mxu0 0
    %1182 = vmatpush1.bf16.msra.mxu0 %v1158
    %1183 = vmatprep.subr.bf16.mxu0 0
    %1184 = vmatpush1.bf16.msra.mxu0 %v1156
    %1185 = vmatprep.subr.bf16.mxu0 0
    %1186 = vmatpush1.bf16.msra.mxu0 %v1154
    %1187 = vmatprep.subr.bf16.mxu0 0
    %1188 = vmatpush2.bf16.msra.mxu0 0
    %1189 = vmatprep.subr.bf16.mxu0 0
    %1190 = vmatpush2.bf16.msra.mxu0 0
    %1191 = vmatprep.subr.bf16.mxu0 0
    %1192 = vmatpush2.bf16.msra.mxu0 0
    %1193 = vmatprep.subr.bf16.mxu0 0
    %1194 = vmatpush2.bf16.msra.mxu0 0
    %1195 = vmatprep.subr.bf16.mxu0 0
    %1196 = vmatpush2.bf16.msra.mxu0 0
    %1197 = vmatprep.subr.bf16.mxu0 0
    %1198 = vmatpush2.bf16.msra.mxu0 0
    %1199 = vmatprep.subr.bf16.mxu0 0
    %1200 = vmatpush2.bf16.msra.mxu0 0
    %1201 = vmatprep.subr.bf16.mxu0 0
    %1202 = vmatpush2.bf16.msra.mxu0 0
    %1203 = vmatprep.mubr.bf16.mxu0 0
    %1204 = vmatmul.mubr.bf16.gmra.mxu0 %v1166
    %v1205 = vpop.f32.mrf.mxu0
    %v1206 = vadd.f32 0.0, %v1205
    %v1207 = vpop.f32.mrf.mxu0
    %v1208 = vpop.f32.mrf.mxu0
    %v1209 = vadd.f32 0.0, %v1208
    %v1210 = vpop.f32.mrf.mxu0
    %1211 = vmatprep.mubr.bf16.mxu0 0
    %1212 = vmatmul.mubr.bf16.gmra.mxu0 %v1169
    %v1213 = vpop.f32.mrf.mxu0
    %v1214 = vadd.f32 0.0, %v1213
    %v1215 = vpop.f32.mrf.mxu0
    %v1216 = vpop.f32.mrf.mxu0
    %v1217 = vadd.f32 0.0, %v1216
    %v1218 = vpop.f32.mrf.mxu0
    %1219 = vdwg.mxu0
    %v1220 = vadd.f32 %v192, %v1206
    %v1221 = vadd.f32 %v195, %v1209
    %v1222 = vadd.f32 %v200, %v1214
    %v1223 = vadd.f32 %v203, %v1217
    %v1224 = vld [vmem:[%s3 + $0x1] sm:$0x1]
    %v1225 = vmul.f32 %v1220, %v1220
    %v1226 = vmul.f32 %v1221, %v1221
    %v1227 = vmul.f32 %v1222, %v1222
    %v1228 = vmul.f32 %v1223, %v1223
    %v1229 = vsel %vm211, %v1225, 0.0
    %1230 = vadd.xlane.f32.xlu0 %v1229
    %v1231 = vpop.xlane.xlu0 %1230
    %v1232 = vsel %vm211, %v1226, 0.0
    %1233 = vadd.xlane.f32.xlu0 %v1232
    %v1234 = vpop.xlane.xlu0 %1233
    %v1235 = vsel %vm211, %v1227, 0.0
    %1236 = vadd.xlane.f32.xlu0 %v1235
    %v1237 = vpop.xlane.xlu0 %1236
    %v1238 = vsel %vm211, %v1228, 0.0
    %1239 = vadd.xlane.f32.xlu0 %v1238
    %v1240 = vpop.xlane.xlu0 %1239
    %v1241 = vmul.f32 %v1231, %v224
    %v1242 = vmul.f32 %v1234, %v224
    %v1243 = vmul.f32 %v1237, %v224
    %v1244 = vmul.f32 %v1240, %v224
    %v1245 = vadd.f32 %v1241, 1e-06
    %v1246 = vadd.f32 %v1242, 1e-06
    %v1247 = vadd.f32 %v1243, 1e-06
    %v1248 = vadd.f32 %v1244, 1e-06
    %v1249 = vrsqrt.pop %v1245
    %v1250 = vrsqrt.pop %v1246
    %v1251 = vrsqrt.pop %v1247
    %v1252 = vrsqrt.pop %v1248
    %v1253 = vmul.f32 %v1220, %v1249
    %v1254 = vmul.f32 %v1221, %v1250
    %v1255 = vmul.f32 %v1222, %v1251
    %v1256 = vmul.f32 %v1223, %v1252
    %v1257 = vlaneseq
    %v1258 = vshrl.u32 %v1257, 7
    %v1259 = vsub.s32 0, %v1258
    %v1260 = vrot.slane %v1224, %v1259
    %v1261 = vmul.f32 %v1253, %v1260
    %v1262 = vmul.f32 %v1254, %v1260
    %v1263 = vmul.f32 %v1255, %v1260
    %v1264 = vmul.f32 %v1256, %v1260
    %v1265 = vld [vmem:[%s1 + $0x8] sm:$0xf]
    %v1266 = vld [vmem:[%s1 + $0x28] sm:$0xf]
    %v1267 = vld [vmem:[%s1 + $0x48] sm:$0xf]
    %v1268 = vld [vmem:[%s1 + $0x68] sm:$0xf]
    %v1269 = vld [vmem:[%s1 + $0x88] sm:$0xf]
    %v1270 = vld [vmem:[%s1 + $0xa8] sm:$0xf]
    %v1271 = vld [vmem:[%s1 + $0xc8] sm:$0xf]
    %v1272 = vld [vmem:[%s1 + $0xe8] sm:$0xf]
    %v1273 = vpack.c.bf16 %v1262, %v1261
    %v1274 = vpack.c.bf16 %v1264, %v1263
    %v1283 = vunpack.c.l.b16 %v1265
    %v1284 = vunpack.c.l.b16 %v1266
    %v1285 = vunpack.c.l.b16 %v1267
    %v1286 = vunpack.c.l.b16 %v1268
    %v1287 = vunpack.c.l.b16 %v1269
    %v1288 = vunpack.c.l.b16 %v1270
    %v1289 = vunpack.c.l.b16 %v1271
    %v1290 = vunpack.c.l.b16 %v1272
    %v1291 = vpack.c.b16 %v1284, %v1283
    %v1292 = vpack.c.b16 %v1286, %v1285
    %v1293 = vpack.c.b16 %v1288, %v1287
    %v1294 = vpack.c.b16 %v1290, %v1289
    %v1300 = vsel %vm211, %v1273, 0
    %v1303 = vsel %vm211, %v1274, 0
    %1305 = vmatprep.subr.bf16.mxu0 0
    %1306 = vmatpush1.bf16.msra.mxu0 0
    %1307 = vmatprep.subr.bf16.mxu0 0
    %1308 = vmatpush1.bf16.msra.mxu0 0
    %1309 = vmatprep.subr.bf16.mxu0 0
    %1310 = vmatpush1.bf16.msra.mxu0 0
    %1311 = vmatprep.subr.bf16.mxu0 0
    %1312 = vmatpush1.bf16.msra.mxu0 0
    %1313 = vmatprep.subr.bf16.mxu0 0
    %1314 = vmatpush1.bf16.msra.mxu0 %v1294
    %1315 = vmatprep.subr.bf16.mxu0 0
    %1316 = vmatpush1.bf16.msra.mxu0 %v1293
    %1317 = vmatprep.subr.bf16.mxu0 0
    %1318 = vmatpush1.bf16.msra.mxu0 %v1292
    %1319 = vmatprep.subr.bf16.mxu0 0
    %1320 = vmatpush1.bf16.msra.mxu0 %v1291
    %1321 = vmatprep.subr.bf16.mxu0 0
    %1322 = vmatpush2.bf16.msra.mxu0 0
    %1323 = vmatprep.subr.bf16.mxu0 0
    %1324 = vmatpush2.bf16.msra.mxu0 0
    %1325 = vmatprep.subr.bf16.mxu0 0
    %1326 = vmatpush2.bf16.msra.mxu0 0
    %1327 = vmatprep.subr.bf16.mxu0 0
    %1328 = vmatpush2.bf16.msra.mxu0 0
    %1329 = vmatprep.subr.bf16.mxu0 0
    %1330 = vmatpush2.bf16.msra.mxu0 0
    %1331 = vmatprep.subr.bf16.mxu0 0
    %1332 = vmatpush2.bf16.msra.mxu0 0
    %1333 = vmatprep.subr.bf16.mxu0 0
    %1334 = vmatpush2.bf16.msra.mxu0 0
    %1335 = vmatprep.subr.bf16.mxu0 0
    %1336 = vmatpush2.bf16.msra.mxu0 0
    %1337 = vmatprep.mubr.bf16.mxu0 0
    %1338 = vmatmul.mubr.bf16.gmra.mxu0 %v1300
    %v1339 = vpop.f32.mrf.mxu0
    %v1340 = vadd.f32 0.0, %v1339
    %v1341 = vpop.f32.mrf.mxu0
    %v1342 = vpop.f32.mrf.mxu0
    %v1343 = vadd.f32 0.0, %v1342
    %v1344 = vpop.f32.mrf.mxu0
    %1345 = vmatprep.mubr.bf16.mxu0 0
    %1346 = vmatmul.mubr.bf16.gmra.mxu0 %v1303
    %v1347 = vpop.f32.mrf.mxu0
    %v1348 = vadd.f32 0.0, %v1347
    %v1349 = vpop.f32.mrf.mxu0
    %v1350 = vpop.f32.mrf.mxu0
    %v1351 = vadd.f32 0.0, %v1350
    %v1352 = vpop.f32.mrf.mxu0
    %1353 = vdwg.mxu0
    %v1354 = vmax.f32 %v1340, 0.0
    %v1355 = vmax.f32 %v1343, 0.0
    %v1356 = vmax.f32 %v1348, 0.0
    %v1357 = vmax.f32 %v1351, 0.0
    %v1358 = vpack.c.bf16 %v1355, %v1354
    %v1359 = vpack.c.bf16 %v1357, %v1356
    %1360 = vrot.lane.b32.xlu0 %v141, 64
    %v1361 = vpop.permute.xlu0 %1360
    %1362 = vrot.lane.b32.xlu0 %v142, 64
    %v1363 = vpop.permute.xlu0 %1362
    %1364 = vrot.lane.b32.xlu0 %v143, 64
    %v1365 = vpop.permute.xlu0 %1364
    %1366 = vrot.lane.b32.xlu0 %v144, 64
    %v1367 = vpop.permute.xlu0 %1366
    %1368 = vrot.lane.b32.xlu0 %v145, 64
    %v1369 = vpop.permute.xlu0 %1368
    %1370 = vrot.lane.b32.xlu0 %v146, 64
    %v1371 = vpop.permute.xlu0 %1370
    %1372 = vrot.lane.b32.xlu0 %v147, 64
    %v1373 = vpop.permute.xlu0 %1372
    %1374 = vrot.lane.b32.xlu0 %v148, 64
    %v1375 = vpop.permute.xlu0 %1374
    %1384 = vmatprep.subr.bf16.mxu0 0
    %1385 = vmatpush1.bf16.msra.mxu0 %v1375
    %1386 = vmatprep.subr.bf16.mxu0 0
    %1387 = vmatpush1.bf16.msra.mxu0 %v1373
    %1388 = vmatprep.subr.bf16.mxu0 0
    %1389 = vmatpush1.bf16.msra.mxu0 %v1371
    %1390 = vmatprep.subr.bf16.mxu0 0
    %1391 = vmatpush1.bf16.msra.mxu0 %v1369
    %1392 = vmatprep.subr.bf16.mxu0 0
    %1393 = vmatpush1.bf16.msra.mxu0 %v1367
    %1394 = vmatprep.subr.bf16.mxu0 0
    %1395 = vmatpush1.bf16.msra.mxu0 %v1365
    %1396 = vmatprep.subr.bf16.mxu0 0
    %1397 = vmatpush1.bf16.msra.mxu0 %v1363
    %1398 = vmatprep.subr.bf16.mxu0 0
    %1399 = vmatpush1.bf16.msra.mxu0 %v1361
    %1400 = vmatprep.subr.bf16.mxu0 0
    %1401 = vmatpush2.bf16.msra.mxu0 0
    %1402 = vmatprep.subr.bf16.mxu0 0
    %1403 = vmatpush2.bf16.msra.mxu0 0
    %1404 = vmatprep.subr.bf16.mxu0 0
    %1405 = vmatpush2.bf16.msra.mxu0 0
    %1406 = vmatprep.subr.bf16.mxu0 0
    %1407 = vmatpush2.bf16.msra.mxu0 0
    %1408 = vmatprep.subr.bf16.mxu0 0
    %1409 = vmatpush2.bf16.msra.mxu0 0
    %1410 = vmatprep.subr.bf16.mxu0 0
    %1411 = vmatpush2.bf16.msra.mxu0 0
    %1412 = vmatprep.subr.bf16.mxu0 0
    %1413 = vmatpush2.bf16.msra.mxu0 0
    %1414 = vmatprep.subr.bf16.mxu0 0
    %1415 = vmatpush2.bf16.msra.mxu0 0
    %1416 = vmatprep.mubr.bf16.mxu0 0
    %1417 = vmatmul.mubr.bf16.gmra.mxu0 %v1358
    %v1418 = vpop.f32.mrf.mxu0
    %v1419 = vadd.f32 0.0, %v1418
    %v1420 = vpop.f32.mrf.mxu0
    %v1421 = vpop.f32.mrf.mxu0
    %v1422 = vadd.f32 0.0, %v1421
    %v1423 = vpop.f32.mrf.mxu0
    %1424 = vmatprep.mubr.bf16.mxu0 0
    %1425 = vmatmul.mubr.bf16.gmra.mxu0 %v1359
    %v1426 = vpop.f32.mrf.mxu0
    %v1427 = vadd.f32 0.0, %v1426
    %v1428 = vpop.f32.mrf.mxu0
    %v1429 = vpop.f32.mrf.mxu0
    %v1430 = vadd.f32 0.0, %v1429
    %v1431 = vpop.f32.mrf.mxu0
    %1432 = vdwg.mxu0
    %v1433 = vadd.f32 %v1220, %v1419
    %v1434 = vadd.f32 %v1221, %v1422
    %v1435 = vadd.f32 %v1222, %v1427
    %v1436 = vadd.f32 %v1223, %v1430
    %v1437 = vld [vmem:[%s3 + $0x2] sm:$0x1]
    %v1438 = vmul.f32 %v1433, %v1433
    %v1439 = vmul.f32 %v1434, %v1434
    %v1440 = vmul.f32 %v1435, %v1435
    %v1441 = vmul.f32 %v1436, %v1436
    %v1442 = vsel %vm211, %v1438, 0.0
    %1443 = vadd.xlane.f32.xlu0 %v1442
    %v1444 = vpop.xlane.xlu0 %1443
    %v1445 = vsel %vm211, %v1439, 0.0
    %1446 = vadd.xlane.f32.xlu0 %v1445
    %v1447 = vpop.xlane.xlu0 %1446
    %v1448 = vsel %vm211, %v1440, 0.0
    %1449 = vadd.xlane.f32.xlu0 %v1448
    %v1450 = vpop.xlane.xlu0 %1449
    %v1451 = vsel %vm211, %v1441, 0.0
    %1452 = vadd.xlane.f32.xlu0 %v1451
    %v1453 = vpop.xlane.xlu0 %1452
    %v1454 = vmul.f32 %v1444, %v224
    %v1455 = vmul.f32 %v1447, %v224
    %v1456 = vmul.f32 %v1450, %v224
    %v1457 = vmul.f32 %v1453, %v224
    %v1458 = vadd.f32 %v1454, 1e-06
    %v1459 = vadd.f32 %v1455, 1e-06
    %v1460 = vadd.f32 %v1456, 1e-06
    %v1461 = vadd.f32 %v1457, 1e-06
    %v1462 = vrsqrt.pop %v1458
    %v1463 = vrsqrt.pop %v1459
    %v1464 = vrsqrt.pop %v1460
    %v1465 = vrsqrt.pop %v1461
    %v1466 = vmul.f32 %v1433, %v1462
    %v1467 = vmul.f32 %v1434, %v1463
    %v1468 = vmul.f32 %v1435, %v1464
    %v1469 = vmul.f32 %v1436, %v1465
    %v1470 = vlaneseq
    %v1471 = vshrl.u32 %v1470, 7
    %v1472 = vsub.s32 0, %v1471
    %v1473 = vrot.slane %v1437, %v1472
    %v1474 = vmul.f32 %v1466, %v1473
    %v1475 = vmul.f32 %v1467, %v1473
    %v1476 = vmul.f32 %v1468, %v1473
    %v1477 = vmul.f32 %v1469, %v1473
    %1478 = vset.pattern.permute.xlu0 0
    %1479 = vperm.xlu0 %1478, %v35
    %v1480 = vpop.permute.xlu0 %1479
    %1481 = vset.pattern.permute.xlu0 0
    %1482 = vperm.xlu0 %1481, %v36
    %v1483 = vpop.permute.xlu0 %1482
    %vm1484 = vcmp.eq.s32.totalorder %v82, %v1480
    %vm1485 = vcmp.eq.s32.totalorder %v82, %v1483
    %v1486 = vsel %vm1484, 1, 0
    %v1487 = vsel %vm1485, 1, 0
    %v1488 = vcvt.s32.f32 %v1486
    %v1489 = vcvt.s32.f32 %v1487
    %v1490 = vpack.c.bf16 %v1489, %v1488
    %1491 = vmatprep.subr.bf16.mxu0 0
    %1492 = vmatpush1.bf16.msra.mxu0 %v148
    %1493 = vmatprep.subr.bf16.mxu0 0
    %1494 = vmatpush1.bf16.msra.mxu0 %v147
    %1495 = vmatprep.subr.bf16.mxu0 0
    %1496 = vmatpush1.bf16.msra.mxu0 %v146
    %1497 = vmatprep.subr.bf16.mxu0 0
    %1498 = vmatpush1.bf16.msra.mxu0 %v145
    %1499 = vmatprep.subr.bf16.mxu0 0
    %1500 = vmatpush1.bf16.msra.mxu0 %v144
    %1501 = vmatprep.subr.bf16.mxu0 0
    %1502 = vmatpush1.bf16.msra.mxu0 %v143
    %1503 = vmatprep.subr.bf16.mxu0 0
    %1504 = vmatpush1.bf16.msra.mxu0 %v142
    %1505 = vmatprep.subr.bf16.mxu0 0
    %1506 = vmatpush1.bf16.msra.mxu0 %v141
    %1507 = vmatprep.subr.bf16.mxu0 0
    %1508 = vmatpush2.bf16.msra.mxu0 0
    %1509 = vmatprep.subr.bf16.mxu0 0
    %1510 = vmatpush2.bf16.msra.mxu0 0
    %1511 = vmatprep.subr.bf16.mxu0 0
    %1512 = vmatpush2.bf16.msra.mxu0 0
    %1513 = vmatprep.subr.bf16.mxu0 0
    %1514 = vmatpush2.bf16.msra.mxu0 0
    %1515 = vmatprep.subr.bf16.mxu0 0
    %1516 = vmatpush2.bf16.msra.mxu0 0
    %1517 = vmatprep.subr.bf16.mxu0 0
    %1518 = vmatpush2.bf16.msra.mxu0 0
    %1519 = vmatprep.subr.bf16.mxu0 0
    %1520 = vmatpush2.bf16.msra.mxu0 0
    %1521 = vmatprep.subr.bf16.mxu0 0
    %1522 = vmatpush2.bf16.msra.mxu0 0
    %1523 = vmatprep.mubr.bf16.mxu0 0
    %1524 = vmatmul.mubr.bf16.gmra.mxu0 %v1490
    %v1525 = vpop.f32.mrf.mxu0
    %v1526 = vadd.f32 0.0, %v1525
    %v1527 = vpop.f32.mrf.mxu0
    %v1528 = vpop.f32.mrf.mxu0
    %v1529 = vadd.f32 0.0, %v1528
    %v1530 = vpop.f32.mrf.mxu0
    %1531 = vdwg.mxu0
    %v1532 = vld [vmem:[%s3 + $0x3] sm:$0x1]
    %v1533 = vmul.f32 %v1526, %v1526
    %v1534 = vmul.f32 %v1529, %v1529
    %v1535 = vsel %vm211, %v1533, 0.0
    %1536 = vadd.xlane.f32.xlu0 %v1535
    %v1537 = vpop.xlane.xlu0 %1536
    %v1538 = vsel %vm211, %v1534, 0.0
    %1539 = vadd.xlane.f32.xlu0 %v1538
    %v1540 = vpop.xlane.xlu0 %1539
    %v1541 = vmul.f32 %v1537, %v224
    %v1542 = vmul.f32 %v1540, %v224
    %v1543 = vadd.f32 %v1541, 1e-06
    %v1544 = vadd.f32 %v1542, 1e-06
    %v1545 = vrsqrt.pop %v1543
    %v1546 = vrsqrt.pop %v1544
    %v1547 = vmul.f32 %v1526, %v1545
    %v1548 = vmul.f32 %v1529, %v1546
    %v1549 = vlaneseq
    %v1550 = vshrl.u32 %v1549, 7
    %v1551 = vsub.s32 0, %v1550
    %v1552 = vrot.slane %v1532, %v1551
    %v1553 = vmul.f32 %v1547, %v1552
    %v1554 = vmul.f32 %v1548, %v1552
    %v1555 = vld [vmem:[%s1 + $0xc] sm:$0xff]
    %v1556 = vld [vmem:[%s1 + $0x2c] sm:$0xff]
    %v1557 = vld [vmem:[%s1 + $0x4c] sm:$0xff]
    %v1558 = vld [vmem:[%s1 + $0x6c] sm:$0xff]
    %v1559 = vld [vmem:[%s1 + $0x8c] sm:$0xff]
    %v1560 = vld [vmem:[%s1 + $0xac] sm:$0xff]
    %v1561 = vld [vmem:[%s1 + $0xcc] sm:$0xff]
    %v1562 = vld [vmem:[%s1 + $0xec] sm:$0xff]
    %v1563 = vpack.c.bf16 %v1554, %v1553
    %v1572 = vunpack.c.l.b16 %v1555
    %v1573 = vunpack.c.h.b16 %v1555
    %v1574 = vunpack.c.l.b16 %v1556
    %v1575 = vunpack.c.h.b16 %v1556
    %v1576 = vunpack.c.l.b16 %v1557
    %v1577 = vunpack.c.h.b16 %v1557
    %v1578 = vunpack.c.l.b16 %v1558
    %v1579 = vunpack.c.h.b16 %v1558
    %v1580 = vunpack.c.l.b16 %v1559
    %v1581 = vunpack.c.h.b16 %v1559
    %v1582 = vunpack.c.l.b16 %v1560
    %v1583 = vunpack.c.h.b16 %v1560
    %v1584 = vunpack.c.l.b16 %v1561
    %v1585 = vunpack.c.h.b16 %v1561
    %v1586 = vunpack.c.l.b16 %v1562
    %v1587 = vunpack.c.h.b16 %v1562
    %v1588 = vpack.c.b16 %v1574, %v1572
    %v1589 = vpack.c.b16 %v1575, %v1573
    %v1590 = vpack.c.b16 %v1578, %v1576
    %v1591 = vpack.c.b16 %v1579, %v1577
    %v1592 = vpack.c.b16 %v1582, %v1580
    %v1593 = vpack.c.b16 %v1583, %v1581
    %v1594 = vpack.c.b16 %v1586, %v1584
    %v1595 = vpack.c.b16 %v1587, %v1585
    %v1605 = vsel %vm211, %v1563, 0
    %1607 = vmatprep.subr.bf16.mxu0 0
    %1608 = vmatpush1.bf16.msra.mxu0 0
    %1609 = vmatprep.subr.bf16.mxu0 0
    %1610 = vmatpush1.bf16.msra.mxu0 0
    %1611 = vmatprep.subr.bf16.mxu0 0
    %1612 = vmatpush1.bf16.msra.mxu0 0
    %1613 = vmatprep.subr.bf16.mxu0 0
    %1614 = vmatpush1.bf16.msra.mxu0 0
    %1615 = vmatprep.subr.bf16.mxu0 %v1595
    %1616 = vmatpush1.bf16.msra.mxu0 %v1594
    %1617 = vmatprep.subr.bf16.mxu0 %v1593
    %1618 = vmatpush1.bf16.msra.mxu0 %v1592
    %1619 = vmatprep.subr.bf16.mxu0 %v1591
    %1620 = vmatpush1.bf16.msra.mxu0 %v1590
    %1621 = vmatprep.subr.bf16.mxu0 %v1589
    %1622 = vmatpush1.bf16.msra.mxu0 %v1588
    %1623 = vmatprep.subr.bf16.mxu0 0
    %1624 = vmatpush2.bf16.msra.mxu0 0
    %1625 = vmatprep.subr.bf16.mxu0 0
    %1626 = vmatpush2.bf16.msra.mxu0 0
    %1627 = vmatprep.subr.bf16.mxu0 0
    %1628 = vmatpush2.bf16.msra.mxu0 0
    %1629 = vmatprep.subr.bf16.mxu0 0
    %1630 = vmatpush2.bf16.msra.mxu0 0
    %1631 = vmatprep.subr.bf16.mxu0 0
    %1632 = vmatpush2.bf16.msra.mxu0 0
    %1633 = vmatprep.subr.bf16.mxu0 0
    %1634 = vmatpush2.bf16.msra.mxu0 0
    %1635 = vmatprep.subr.bf16.mxu0 0
    %1636 = vmatpush2.bf16.msra.mxu0 0
    %1637 = vmatprep.subr.bf16.mxu0 0
    %1638 = vmatpush2.bf16.msra.mxu0 0
    %1639 = vmatprep.mubr.bf16.mxu0 0
    %1640 = vmatmul.mubr.bf16.gmra.mxu0 %v1605
    %v1641 = vpop.f32.mrf.mxu0
    %v1642 = vadd.f32 0.0, %v1641
    %v1643 = vpop.f32.mrf.mxu0
    %v1644 = vadd.f32 0.0, %v1643
    %v1645 = vpop.f32.mrf.mxu0
    %v1646 = vadd.f32 0.0, %v1645
    %v1647 = vpop.f32.mrf.mxu0
    %v1648 = vadd.f32 0.0, %v1647
    %1649 = vdwg.mxu0
    %v1650 = vld [vmem:[%s1 + $0x10] sm:$0xf]
    %v1651 = vld [vmem:[%s1 + $0x30] sm:$0xf]
    %v1652 = vld [vmem:[%s1 + $0x50] sm:$0xf]
    %v1653 = vld [vmem:[%s1 + $0x70] sm:$0xf]
    %v1654 = vld [vmem:[%s1 + $0x90] sm:$0xf]
    %v1655 = vld [vmem:[%s1 + $0xb0] sm:$0xf]
    %v1656 = vld [vmem:[%s1 + $0xd0] sm:$0xf]
    %v1657 = vld [vmem:[%s1 + $0xf0] sm:$0xf]
    %v1658 = vpack.c.bf16 %v1646, %v1642
    %1660 = vrot.lane.b32.xlu0 %v1658, 64
    %v1661 = vpop.permute.xlu0 %1660
    %v1663 = vsel %vm374, %v1658, 0
    %v1666 = vsel %vm374, %v1661, 0
    %1668 = vmatprep.subr.bf16.mxu0 0
    %1669 = vmatpush1.bf16.xpose.msra.mxu0 0
    %1670 = vmatprep.subr.bf16.mxu0 0
    %1671 = vmatpush1.bf16.xpose.msra.mxu0 0
    %1672 = vmatprep.subr.bf16.mxu0 0
    %1673 = vmatpush1.bf16.xpose.msra.mxu0 0
    %1674 = vmatprep.subr.bf16.mxu0 0
    %1675 = vmatpush1.bf16.xpose.msra.mxu0 0
    %1676 = vmatprep.subr.bf16.mxu0 0
    %1677 = vmatpush1.bf16.xpose.msra.mxu0 0
    %1678 = vmatprep.subr.bf16.mxu0 0
    %1679 = vmatpush1.bf16.xpose.msra.mxu0 0
    %1680 = vmatprep.subr.bf16.mxu0 0
    %1681 = vmatpush1.bf16.xpose.msra.mxu0 0
    %1682 = vmatprep.subr.bf16.mxu0 0
    %1683 = vmatpush1.bf16.xpose.msra.mxu0 %v1666
    %1684 = vmatprep.subr.bf16.mxu0 0
    %1685 = vmatpush2.bf16.xpose.msra.mxu0 0
    %1686 = vmatprep.subr.bf16.mxu0 0
    %1687 = vmatpush2.bf16.xpose.msra.mxu0 0
    %1688 = vmatprep.subr.bf16.mxu0 0
    %1689 = vmatpush2.bf16.xpose.msra.mxu0 0
    %1690 = vmatprep.subr.bf16.mxu0 0
    %1691 = vmatpush2.bf16.xpose.msra.mxu0 0
    %1692 = vmatprep.subr.bf16.mxu0 0
    %1693 = vmatpush2.bf16.xpose.msra.mxu0 0
    %1694 = vmatprep.subr.bf16.mxu0 0
    %1695 = vmatpush2.bf16.xpose.msra.mxu0 0
    %1696 = vmatprep.subr.bf16.mxu0 0
    %1697 = vmatpush2.bf16.xpose.msra.mxu0 0
    %1698 = vmatprep.subr.bf16.mxu0 0
    %1699 = vmatpush2.bf16.xpose.msra.mxu0 0
    %1700 = vmatprep.mubr.bf16.mxu0 0
    %1701 = vmatmul.mubr.bf16.gmra.mxu0 %v1663
    %v1702 = vpop.f32.mrf.mxu0
    %v1703 = vadd.f32 %v71, %v1702
    %v1704 = vpop.f32.mrf.mxu0
    %v1705 = vpop.f32.mrf.mxu0
    %v1706 = vadd.f32 %v72, %v1705
    %v1707 = vpop.f32.mrf.mxu0
    %1708 = vdwg.mxu0
    %v1709 = vsel %vm374, %v1703, -inf
    %1710 = vmax.xlane.f32.xlu0 %v1709
    %v1711 = vpop.xlane.xlu0 %1710
    %v1712 = vsel %vm374, %v1706, -inf
    %1713 = vmax.xlane.f32.xlu0 %v1712
    %v1714 = vpop.xlane.xlu0 %1713
    %v1715 = vsub.f32 %v1703, %v1711
    %v1716 = vsub.f32 %v1706, %v1714
    %v1717 = vmul.f32 %v1715, 1.442695
    %v1718 = vpow.pop %v1717
    %v1719 = vmul.f32 %v1716, 1.442695
    %v1720 = vpow.pop %v1719
    %v1721 = vsel %vm374, %v1718, 0.0
    %1722 = vadd.xlane.f32.xlu0 %v1721
    %v1723 = vpop.xlane.xlu0 %1722
    %v1724 = vsel %vm374, %v1720, 0.0
    %1725 = vadd.xlane.f32.xlu0 %v1724
    %v1726 = vpop.xlane.xlu0 %1725
    %v1727 = vrcp.pop %v1723
    %v1728 = vrcp.pop %v1726
    %v1729 = vmul.f32 %v1718, %v1727
    %v1730 = vmul.f32 %v1720, %v1728
    %v1731 = vpack.c.bf16 %v1730, %v1729
    %v1732 = vpack.c.bf16 %v1648, %v1644
    %v1734 = vsel %vm374, %v1731, 0
    %1736 = vmatprep.subr.bf16.mxu0 0
    %1737 = vmatpush1.bf16.msra.mxu0 0
    %1738 = vmatprep.subr.bf16.mxu0 0
    %1739 = vmatpush1.bf16.msra.mxu0 0
    %1740 = vmatprep.subr.bf16.mxu0 0
    %1741 = vmatpush1.bf16.msra.mxu0 0
    %1742 = vmatprep.subr.bf16.mxu0 0
    %1743 = vmatpush1.bf16.msra.mxu0 0
    %1744 = vmatprep.subr.bf16.mxu0 0
    %1745 = vmatpush1.bf16.msra.mxu0 0
    %1746 = vmatprep.subr.bf16.mxu0 0
    %1747 = vmatpush1.bf16.msra.mxu0 0
    %1748 = vmatprep.subr.bf16.mxu0 0
    %1749 = vmatpush1.bf16.msra.mxu0 0
    %1750 = vmatprep.subr.bf16.mxu0 0
    %1751 = vmatpush1.bf16.msra.mxu0 %v1732
    %1752 = vmatprep.subr.bf16.mxu0 0
    %1753 = vmatpush2.bf16.msra.mxu0 0
    %1754 = vmatprep.subr.bf16.mxu0 0
    %1755 = vmatpush2.bf16.msra.mxu0 0
    %1756 = vmatprep.subr.bf16.mxu0 0
    %1757 = vmatpush2.bf16.msra.mxu0 0
    %1758 = vmatprep.subr.bf16.mxu0 0
    %1759 = vmatpush2.bf16.msra.mxu0 0
    %1760 = vmatprep.subr.bf16.mxu0 0
    %1761 = vmatpush2.bf16.msra.mxu0 0
    %1762 = vmatprep.subr.bf16.mxu0 0
    %1763 = vmatpush2.bf16.msra.mxu0 0
    %1764 = vmatprep.subr.bf16.mxu0 0
    %1765 = vmatpush2.bf16.msra.mxu0 0
    %1766 = vmatprep.subr.bf16.mxu0 0
    %1767 = vmatpush2.bf16.msra.mxu0 0
    %1768 = vmatprep.mubr.bf16.mxu0 0
    %1769 = vmatmul.mubr.bf16.gmra.mxu0 %v1734
    %v1770 = vpop.f32.mrf.mxu0
    %v1771 = vadd.f32 0.0, %v1770
    %v1772 = vpop.f32.mrf.mxu0
    %v1773 = vpop.f32.mrf.mxu0
    %v1774 = vadd.f32 0.0, %v1773
    %v1775 = vpop.f32.mrf.mxu0
    %1776 = vdwg.mxu0
    %1777 = vrot.lane.b32.xlu0 %v1658, 112
    %v1778 = vpop.permute.xlu0 %1777
    %1779 = vrot.lane.b32.xlu0 %v1658, 48
    %v1780 = vpop.permute.xlu0 %1779
    %v1782 = vsel %vm374, %v1778, 0
    %v1785 = vsel %vm374, %v1780, 0
    %1787 = vmatprep.subr.bf16.mxu0 0
    %1788 = vmatpush1.bf16.xpose.msra.mxu0 0
    %1789 = vmatprep.subr.bf16.mxu0 0
    %1790 = vmatpush1.bf16.xpose.msra.mxu0 0
    %1791 = vmatprep.subr.bf16.mxu0 0
    %1792 = vmatpush1.bf16.xpose.msra.mxu0 0
    %1793 = vmatprep.subr.bf16.mxu0 0
    %1794 = vmatpush1.bf16.xpose.msra.mxu0 0
    %1795 = vmatprep.subr.bf16.mxu0 0
    %1796 = vmatpush1.bf16.xpose.msra.mxu0 0
    %1797 = vmatprep.subr.bf16.mxu0 0
    %1798 = vmatpush1.bf16.xpose.msra.mxu0 0
    %1799 = vmatprep.subr.bf16.mxu0 0
    %1800 = vmatpush1.bf16.xpose.msra.mxu0 0
    %1801 = vmatprep.subr.bf16.mxu0 0
    %1802 = vmatpush1.bf16.xpose.msra.mxu0 %v1785
    %1803 = vmatprep.subr.bf16.mxu0 0
    %1804 = vmatpush2.bf16.xpose.msra.mxu0 0
    %1805 = vmatprep.subr.bf16.mxu0 0
    %1806 = vmatpush2.bf16.xpose.msra.mxu0 0
    %1807 = vmatprep.subr.bf16.mxu0 0
    %1808 = vmatpush2.bf16.xpose.msra.mxu0 0
    %1809 = vmatprep.subr.bf16.mxu0 0
    %1810 = vmatpush2.bf16.xpose.msra.mxu0 0
    %1811 = vmatprep.subr.bf16.mxu0 0
    %1812 = vmatpush2.bf16.xpose.msra.mxu0 0
    %1813 = vmatprep.subr.bf16.mxu0 0
    %1814 = vmatpush2.bf16.xpose.msra.mxu0 0
    %1815 = vmatprep.subr.bf16.mxu0 0
    %1816 = vmatpush2.bf16.xpose.msra.mxu0 0
    %1817 = vmatprep.subr.bf16.mxu0 0
    %1818 = vmatpush2.bf16.xpose.msra.mxu0 0
    %1819 = vmatprep.mubr.bf16.mxu0 0
    %1820 = vmatmul.mubr.bf16.gmra.mxu0 %v1782
    %v1821 = vpop.f32.mrf.mxu0
    %v1822 = vadd.f32 %v73, %v1821
    %v1823 = vpop.f32.mrf.mxu0
    %v1824 = vpop.f32.mrf.mxu0
    %v1825 = vadd.f32 %v74, %v1824
    %v1826 = vpop.f32.mrf.mxu0
    %1827 = vdwg.mxu0
    %v1828 = vsel %vm374, %v1822, -inf
    %1829 = vmax.xlane.f32.xlu0 %v1828
    %v1830 = vpop.xlane.xlu0 %1829
    %v1831 = vsel %vm374, %v1825, -inf
    %1832 = vmax.xlane.f32.xlu0 %v1831
    %v1833 = vpop.xlane.xlu0 %1832
    %v1834 = vsub.f32 %v1822, %v1830
    %v1835 = vsub.f32 %v1825, %v1833
    %v1836 = vmul.f32 %v1834, 1.442695
    %v1837 = vpow.pop %v1836
    %v1838 = vmul.f32 %v1835, 1.442695
    %v1839 = vpow.pop %v1838
    %v1840 = vsel %vm374, %v1837, 0.0
    %1841 = vadd.xlane.f32.xlu0 %v1840
    %v1842 = vpop.xlane.xlu0 %1841
    %v1843 = vsel %vm374, %v1839, 0.0
    %1844 = vadd.xlane.f32.xlu0 %v1843
    %v1845 = vpop.xlane.xlu0 %1844
    %v1846 = vrcp.pop %v1842
    %v1847 = vrcp.pop %v1845
    %v1848 = vmul.f32 %v1837, %v1846
    %v1849 = vmul.f32 %v1839, %v1847
    %v1850 = vpack.c.bf16 %v1849, %v1848
    %1852 = vrot.lane.b32.xlu0 %v1732, 112
    %v1853 = vpop.permute.xlu0 %1852
    %v1856 = vsel %vm374, %v1850, 0
    %1858 = vmatprep.subr.bf16.mxu0 0
    %1859 = vmatpush1.bf16.msra.mxu0 0
    %1860 = vmatprep.subr.bf16.mxu0 0
    %1861 = vmatpush1.bf16.msra.mxu0 0
    %1862 = vmatprep.subr.bf16.mxu0 0
    %1863 = vmatpush1.bf16.msra.mxu0 0
    %1864 = vmatprep.subr.bf16.mxu0 0
    %1865 = vmatpush1.bf16.msra.mxu0 0
    %1866 = vmatprep.subr.bf16.mxu0 0
    %1867 = vmatpush1.bf16.msra.mxu0 0
    %1868 = vmatprep.subr.bf16.mxu0 0
    %1869 = vmatpush1.bf16.msra.mxu0 0
    %1870 = vmatprep.subr.bf16.mxu0 0
    %1871 = vmatpush1.bf16.msra.mxu0 0
    %1872 = vmatprep.subr.bf16.mxu0 0
    %1873 = vmatpush1.bf16.msra.mxu0 %v1853
    %1874 = vmatprep.subr.bf16.mxu0 0
    %1875 = vmatpush2.bf16.msra.mxu0 0
    %1876 = vmatprep.subr.bf16.mxu0 0
    %1877 = vmatpush2.bf16.msra.mxu0 0
    %1878 = vmatprep.subr.bf16.mxu0 0
    %1879 = vmatpush2.bf16.msra.mxu0 0
    %1880 = vmatprep.subr.bf16.mxu0 0
    %1881 = vmatpush2.bf16.msra.mxu0 0
    %1882 = vmatprep.subr.bf16.mxu0 0
    %1883 = vmatpush2.bf16.msra.mxu0 0
    %1884 = vmatprep.subr.bf16.mxu0 0
    %1885 = vmatpush2.bf16.msra.mxu0 0
    %1886 = vmatprep.subr.bf16.mxu0 0
    %1887 = vmatpush2.bf16.msra.mxu0 0
    %1888 = vmatprep.subr.bf16.mxu0 0
    %1889 = vmatpush2.bf16.msra.mxu0 0
    %1890 = vmatprep.mubr.bf16.mxu0 0
    %1891 = vmatmul.mubr.bf16.gmra.mxu0 %v1856
    %v1892 = vpop.f32.mrf.mxu0
    %v1893 = vadd.f32 0.0, %v1892
    %v1894 = vpop.f32.mrf.mxu0
    %v1895 = vpop.f32.mrf.mxu0
    %v1896 = vadd.f32 0.0, %v1895
    %v1897 = vpop.f32.mrf.mxu0
    %1898 = vdwg.mxu0
    %1899 = vrot.lane.b32.xlu0 %v1658, 96
    %v1900 = vpop.permute.xlu0 %1899
    %1901 = vrot.lane.b32.xlu0 %v1658, 32
    %v1902 = vpop.permute.xlu0 %1901
    %v1904 = vsel %vm374, %v1900, 0
    %v1907 = vsel %vm374, %v1902, 0
    %1909 = vmatprep.subr.bf16.mxu0 0
    %1910 = vmatpush1.bf16.xpose.msra.mxu0 0
    %1911 = vmatprep.subr.bf16.mxu0 0
    %1912 = vmatpush1.bf16.xpose.msra.mxu0 0
    %1913 = vmatprep.subr.bf16.mxu0 0
    %1914 = vmatpush1.bf16.xpose.msra.mxu0 0
    %1915 = vmatprep.subr.bf16.mxu0 0
    %1916 = vmatpush1.bf16.xpose.msra.mxu0 0
    %1917 = vmatprep.subr.bf16.mxu0 0
    %1918 = vmatpush1.bf16.xpose.msra.mxu0 0
    %1919 = vmatprep.subr.bf16.mxu0 0
    %1920 = vmatpush1.bf16.xpose.msra.mxu0 0
    %1921 = vmatprep.subr.bf16.mxu0 0
    %1922 = vmatpush1.bf16.xpose.msra.mxu0 0
    %1923 = vmatprep.subr.bf16.mxu0 0
    %1924 = vmatpush1.bf16.xpose.msra.mxu0 %v1907
    %1925 = vmatprep.subr.bf16.mxu0 0
    %1926 = vmatpush2.bf16.xpose.msra.mxu0 0
    %1927 = vmatprep.subr.bf16.mxu0 0
    %1928 = vmatpush2.bf16.xpose.msra.mxu0 0
    %1929 = vmatprep.subr.bf16.mxu0 0
    %1930 = vmatpush2.bf16.xpose.msra.mxu0 0
    %1931 = vmatprep.subr.bf16.mxu0 0
    %1932 = vmatpush2.bf16.xpose.msra.mxu0 0
    %1933 = vmatprep.subr.bf16.mxu0 0
    %1934 = vmatpush2.bf16.xpose.msra.mxu0 0
    %1935 = vmatprep.subr.bf16.mxu0 0
    %1936 = vmatpush2.bf16.xpose.msra.mxu0 0
    %1937 = vmatprep.subr.bf16.mxu0 0
    %1938 = vmatpush2.bf16.xpose.msra.mxu0 0
    %1939 = vmatprep.subr.bf16.mxu0 0
    %1940 = vmatpush2.bf16.xpose.msra.mxu0 0
    %1941 = vmatprep.mubr.bf16.mxu0 0
    %1942 = vmatmul.mubr.bf16.gmra.mxu0 %v1904
    %v1943 = vpop.f32.mrf.mxu0
    %v1944 = vadd.f32 %v75, %v1943
    %v1945 = vpop.f32.mrf.mxu0
    %v1946 = vpop.f32.mrf.mxu0
    %v1947 = vadd.f32 %v76, %v1946
    %v1948 = vpop.f32.mrf.mxu0
    %1949 = vdwg.mxu0
    %v1950 = vsel %vm374, %v1944, -inf
    %1951 = vmax.xlane.f32.xlu0 %v1950
    %v1952 = vpop.xlane.xlu0 %1951
    %v1953 = vsel %vm374, %v1947, -inf
    %1954 = vmax.xlane.f32.xlu0 %v1953
    %v1955 = vpop.xlane.xlu0 %1954
    %v1956 = vsub.f32 %v1944, %v1952
    %v1957 = vsub.f32 %v1947, %v1955
    %v1958 = vmul.f32 %v1956, 1.442695
    %v1959 = vpow.pop %v1958
    %v1960 = vmul.f32 %v1957, 1.442695
    %v1961 = vpow.pop %v1960
    %v1962 = vsel %vm374, %v1959, 0.0
    %1963 = vadd.xlane.f32.xlu0 %v1962
    %v1964 = vpop.xlane.xlu0 %1963
    %v1965 = vsel %vm374, %v1961, 0.0
    %1966 = vadd.xlane.f32.xlu0 %v1965
    %v1967 = vpop.xlane.xlu0 %1966
    %v1968 = vrcp.pop %v1964
    %v1969 = vrcp.pop %v1967
    %v1970 = vmul.f32 %v1959, %v1968
    %v1971 = vmul.f32 %v1961, %v1969
    %v1972 = vpack.c.bf16 %v1971, %v1970
    %1973 = vrot.lane.b32.xlu0 %v1732, 96
    %v1974 = vpop.permute.xlu0 %1973
    %v1977 = vsel %vm374, %v1972, 0
    %1979 = vmatprep.subr.bf16.mxu0 0
    %1980 = vmatpush1.bf16.msra.mxu0 0
    %1981 = vmatprep.subr.bf16.mxu0 0
    %1982 = vmatpush1.bf16.msra.mxu0 0
    %1983 = vmatprep.subr.bf16.mxu0 0
    %1984 = vmatpush1.bf16.msra.mxu0 0
    %1985 = vmatprep.subr.bf16.mxu0 0
    %1986 = vmatpush1.bf16.msra.mxu0 0
    %1987 = vmatprep.subr.bf16.mxu0 0
    %1988 = vmatpush1.bf16.msra.mxu0 0
    %1989 = vmatprep.subr.bf16.mxu0 0
    %1990 = vmatpush1.bf16.msra.mxu0 0
    %1991 = vmatprep.subr.bf16.mxu0 0
    %1992 = vmatpush1.bf16.msra.mxu0 0
    %1993 = vmatprep.subr.bf16.mxu0 0
    %1994 = vmatpush1.bf16.msra.mxu0 %v1974
    %1995 = vmatprep.subr.bf16.mxu0 0
    %1996 = vmatpush2.bf16.msra.mxu0 0
    %1997 = vmatprep.subr.bf16.mxu0 0
    %1998 = vmatpush2.bf16.msra.mxu0 0
    %1999 = vmatprep.subr.bf16.mxu0 0
    %2000 = vmatpush2.bf16.msra.mxu0 0
    %2001 = vmatprep.subr.bf16.mxu0 0
    %2002 = vmatpush2.bf16.msra.mxu0 0
    %2003 = vmatprep.subr.bf16.mxu0 0
    %2004 = vmatpush2.bf16.msra.mxu0 0
    %2005 = vmatprep.subr.bf16.mxu0 0
    %2006 = vmatpush2.bf16.msra.mxu0 0
    %2007 = vmatprep.subr.bf16.mxu0 0
    %2008 = vmatpush2.bf16.msra.mxu0 0
    %2009 = vmatprep.subr.bf16.mxu0 0
    %2010 = vmatpush2.bf16.msra.mxu0 0
    %2011 = vmatprep.mubr.bf16.mxu0 0
    %2012 = vmatmul.mubr.bf16.gmra.mxu0 %v1977
    %v2013 = vpop.f32.mrf.mxu0
    %v2014 = vadd.f32 0.0, %v2013
    %v2015 = vpop.f32.mrf.mxu0
    %v2016 = vpop.f32.mrf.mxu0
    %v2017 = vadd.f32 0.0, %v2016
    %v2018 = vpop.f32.mrf.mxu0
    %2019 = vdwg.mxu0
    %2020 = vrot.lane.b32.xlu0 %v1658, 80
    %v2021 = vpop.permute.xlu0 %2020
    %2022 = vrot.lane.b32.xlu0 %v1658, 16
    %v2023 = vpop.permute.xlu0 %2022
    %v2025 = vsel %vm374, %v2021, 0
    %v2028 = vsel %vm374, %v2023, 0
    %2030 = vmatprep.subr.bf16.mxu0 0
    %2031 = vmatpush1.bf16.xpose.msra.mxu0 0
    %2032 = vmatprep.subr.bf16.mxu0 0
    %2033 = vmatpush1.bf16.xpose.msra.mxu0 0
    %2034 = vmatprep.subr.bf16.mxu0 0
    %2035 = vmatpush1.bf16.xpose.msra.mxu0 0
    %2036 = vmatprep.subr.bf16.mxu0 0
    %2037 = vmatpush1.bf16.xpose.msra.mxu0 0
    %2038 = vmatprep.subr.bf16.mxu0 0
    %2039 = vmatpush1.bf16.xpose.msra.mxu0 0
    %2040 = vmatprep.subr.bf16.mxu0 0
    %2041 = vmatpush1.bf16.xpose.msra.mxu0 0
    %2042 = vmatprep.subr.bf16.mxu0 0
    %2043 = vmatpush1.bf16.xpose.msra.mxu0 0
    %2044 = vmatprep.subr.bf16.mxu0 0
    %2045 = vmatpush1.bf16.xpose.msra.mxu0 %v2028
    %2046 = vmatprep.subr.bf16.mxu0 0
    %2047 = vmatpush2.bf16.xpose.msra.mxu0 0
    %2048 = vmatprep.subr.bf16.mxu0 0
    %2049 = vmatpush2.bf16.xpose.msra.mxu0 0
    %2050 = vmatprep.subr.bf16.mxu0 0
    %2051 = vmatpush2.bf16.xpose.msra.mxu0 0
    %2052 = vmatprep.subr.bf16.mxu0 0
    %2053 = vmatpush2.bf16.xpose.msra.mxu0 0
    %2054 = vmatprep.subr.bf16.mxu0 0
    %2055 = vmatpush2.bf16.xpose.msra.mxu0 0
    %2056 = vmatprep.subr.bf16.mxu0 0
    %2057 = vmatpush2.bf16.xpose.msra.mxu0 0
    %2058 = vmatprep.subr.bf16.mxu0 0
    %2059 = vmatpush2.bf16.xpose.msra.mxu0 0
    %2060 = vmatprep.subr.bf16.mxu0 0
    %2061 = vmatpush2.bf16.xpose.msra.mxu0 0
    %2062 = vmatprep.mubr.bf16.mxu0 0
    %2063 = vmatmul.mubr.bf16.gmra.mxu0 %v2025
    %v2064 = vpop.f32.mrf.mxu0
    %v2065 = vadd.f32 %v77, %v2064
    %v2066 = vpop.f32.mrf.mxu0
    %v2067 = vpop.f32.mrf.mxu0
    %v2068 = vadd.f32 %v78, %v2067
    %v2069 = vpop.f32.mrf.mxu0
    %2070 = vdwg.mxu0
    %v2071 = vsel %vm374, %v2065, -inf
    %2072 = vmax.xlane.f32.xlu0 %v2071
    %v2073 = vpop.xlane.xlu0 %2072
    %v2074 = vsel %vm374, %v2068, -inf
    %2075 = vmax.xlane.f32.xlu0 %v2074
    %v2076 = vpop.xlane.xlu0 %2075
    %v2077 = vsub.f32 %v2065, %v2073
    %v2078 = vsub.f32 %v2068, %v2076
    %v2079 = vmul.f32 %v2077, 1.442695
    %v2080 = vpow.pop %v2079
    %v2081 = vmul.f32 %v2078, 1.442695
    %v2082 = vpow.pop %v2081
    %v2083 = vsel %vm374, %v2080, 0.0
    %2084 = vadd.xlane.f32.xlu0 %v2083
    %v2085 = vpop.xlane.xlu0 %2084
    %v2086 = vsel %vm374, %v2082, 0.0
    %2087 = vadd.xlane.f32.xlu0 %v2086
    %v2088 = vpop.xlane.xlu0 %2087
    %v2089 = vrcp.pop %v2085
    %v2090 = vrcp.pop %v2088
    %v2091 = vmul.f32 %v2080, %v2089
    %v2092 = vmul.f32 %v2082, %v2090
    %v2093 = vpack.c.bf16 %v2092, %v2091
    %2094 = vrot.lane.b32.xlu0 %v1732, 80
    %v2095 = vpop.permute.xlu0 %2094
    %v2098 = vsel %vm374, %v2093, 0
    %2100 = vmatprep.subr.bf16.mxu0 0
    %2101 = vmatpush1.bf16.msra.mxu0 0
    %2102 = vmatprep.subr.bf16.mxu0 0
    %2103 = vmatpush1.bf16.msra.mxu0 0
    %2104 = vmatprep.subr.bf16.mxu0 0
    %2105 = vmatpush1.bf16.msra.mxu0 0
    %2106 = vmatprep.subr.bf16.mxu0 0
    %2107 = vmatpush1.bf16.msra.mxu0 0
    %2108 = vmatprep.subr.bf16.mxu0 0
    %2109 = vmatpush1.bf16.msra.mxu0 0
    %2110 = vmatprep.subr.bf16.mxu0 0
    %2111 = vmatpush1.bf16.msra.mxu0 0
    %2112 = vmatprep.subr.bf16.mxu0 0
    %2113 = vmatpush1.bf16.msra.mxu0 0
    %2114 = vmatprep.subr.bf16.mxu0 0
    %2115 = vmatpush1.bf16.msra.mxu0 %v2095
    %2116 = vmatprep.subr.bf16.mxu0 0
    %2117 = vmatpush2.bf16.msra.mxu0 0
    %2118 = vmatprep.subr.bf16.mxu0 0
    %2119 = vmatpush2.bf16.msra.mxu0 0
    %2120 = vmatprep.subr.bf16.mxu0 0
    %2121 = vmatpush2.bf16.msra.mxu0 0
    %2122 = vmatprep.subr.bf16.mxu0 0
    %2123 = vmatpush2.bf16.msra.mxu0 0
    %2124 = vmatprep.subr.bf16.mxu0 0
    %2125 = vmatpush2.bf16.msra.mxu0 0
    %2126 = vmatprep.subr.bf16.mxu0 0
    %2127 = vmatpush2.bf16.msra.mxu0 0
    %2128 = vmatprep.subr.bf16.mxu0 0
    %2129 = vmatpush2.bf16.msra.mxu0 0
    %2130 = vmatprep.subr.bf16.mxu0 0
    %2131 = vmatpush2.bf16.msra.mxu0 0
    %2132 = vmatprep.mubr.bf16.mxu0 0
    %2133 = vmatmul.mubr.bf16.gmra.mxu0 %v2098
    %v2134 = vpop.f32.mrf.mxu0
    %v2135 = vadd.f32 0.0, %v2134
    %v2136 = vpop.f32.mrf.mxu0
    %v2137 = vpop.f32.mrf.mxu0
    %v2138 = vadd.f32 0.0, %v2137
    %v2139 = vpop.f32.mrf.mxu0
    %2140 = vdwg.mxu0
    %2143 = vrot.lane.b32.xlu0 %v1893, 16
    %v2144 = vpop.permute.xlu0 %2143
    %2145 = vrot.lane.b32.xlu0 %v1896, 16
    %v2146 = vpop.permute.xlu0 %2145
    %2151 = vrot.lane.b32.xlu0 %v2014, 32
    %v2152 = vpop.permute.xlu0 %2151
    %2153 = vrot.lane.b32.xlu0 %v2017, 32
    %v2154 = vpop.permute.xlu0 %2153
    %2159 = vrot.lane.b32.xlu0 %v2135, 48
    %v2160 = vpop.permute.xlu0 %2159
    %2161 = vrot.lane.b32.xlu0 %v2138, 48
    %v2162 = vpop.permute.xlu0 %2161
    %v2165 = vsel %vm374, %v1771, %v2144
    %v2166 = vsel %vm374, %v1774, %v2146
    %v2167 = vsel %vm436, %v2165, %v2152
    %v2168 = vsel %vm436, %v2166, %v2154
    %v2169 = vsel %vm1126, %v2167, %v2160
    %v2170 = vsel %vm1126, %v2168, %v2162
    %v2171 = vpack.c.bf16 %v2170, %v2169
    %v2180 = vunpack.c.l.b16 %v1650
    %v2181 = vunpack.c.l.b16 %v1651
    %v2182 = vunpack.c.l.b16 %v1652
    %v2183 = vunpack.c.l.b16 %v1653
    %v2184 = vunpack.c.l.b16 %v1654
    %v2185 = vunpack.c.l.b16 %v1655
    %v2186 = vunpack.c.l.b16 %v1656
    %v2187 = vunpack.c.l.b16 %v1657
    %v2188 = vpack.c.b16 %v2181, %v2180
    %v2189 = vpack.c.b16 %v2183, %v2182
    %v2190 = vpack.c.b16 %v2185, %v2184
    %v2191 = vpack.c.b16 %v2187, %v2186
    %2192 = vrot.lane.b32.xlu0 %v2188, 64
    %v2193 = vpop.permute.xlu0 %2192
    %2194 = vrot.lane.b32.xlu0 %v2189, 64
    %v2195 = vpop.permute.xlu0 %2194
    %2196 = vrot.lane.b32.xlu0 %v2190, 64
    %v2197 = vpop.permute.xlu0 %2196
    %2198 = vrot.lane.b32.xlu0 %v2191, 64
    %v2199 = vpop.permute.xlu0 %2198
    %v2205 = vsel %vm211, %v2171, 0
    %2207 = vmatprep.subr.bf16.mxu0 0
    %2208 = vmatpush1.bf16.msra.mxu0 0
    %2209 = vmatprep.subr.bf16.mxu0 0
    %2210 = vmatpush1.bf16.msra.mxu0 0
    %2211 = vmatprep.subr.bf16.mxu0 0
    %2212 = vmatpush1.bf16.msra.mxu0 0
    %2213 = vmatprep.subr.bf16.mxu0 0
    %2214 = vmatpush1.bf16.msra.mxu0 0
    %2215 = vmatprep.subr.bf16.mxu0 0
    %2216 = vmatpush1.bf16.msra.mxu0 %v2199
    %2217 = vmatprep.subr.bf16.mxu0 0
    %2218 = vmatpush1.bf16.msra.mxu0 %v2197
    %2219 = vmatprep.subr.bf16.mxu0 0
    %2220 = vmatpush1.bf16.msra.mxu0 %v2195
    %2221 = vmatprep.subr.bf16.mxu0 0
    %2222 = vmatpush1.bf16.msra.mxu0 %v2193
    %2223 = vmatprep.subr.bf16.mxu0 0
    %2224 = vmatpush2.bf16.msra.mxu0 0
    %2225 = vmatprep.subr.bf16.mxu0 0
    %2226 = vmatpush2.bf16.msra.mxu0 0
    %2227 = vmatprep.subr.bf16.mxu0 0
    %2228 = vmatpush2.bf16.msra.mxu0 0
    %2229 = vmatprep.subr.bf16.mxu0 0
    %2230 = vmatpush2.bf16.msra.mxu0 0
    %2231 = vmatprep.subr.bf16.mxu0 0
    %2232 = vmatpush2.bf16.msra.mxu0 0
    %2233 = vmatprep.subr.bf16.mxu0 0
    %2234 = vmatpush2.bf16.msra.mxu0 0
    %2235 = vmatprep.subr.bf16.mxu0 0
    %2236 = vmatpush2.bf16.msra.mxu0 0
    %2237 = vmatprep.subr.bf16.mxu0 0
    %2238 = vmatpush2.bf16.msra.mxu0 0
    %2239 = vmatprep.mubr.bf16.mxu0 0
    %2240 = vmatmul.mubr.bf16.gmra.mxu0 %v2205
    %v2241 = vpop.f32.mrf.mxu0
    %v2242 = vadd.f32 0.0, %v2241
    %v2243 = vpop.f32.mrf.mxu0
    %v2244 = vpop.f32.mrf.mxu0
    %v2245 = vadd.f32 0.0, %v2244
    %v2246 = vpop.f32.mrf.mxu0
    %2247 = vdwg.mxu0
    %v2248 = vadd.f32 %v1526, %v2242
    %v2249 = vadd.f32 %v1529, %v2245
    %v2250 = vld [vmem:[%s3 + $0x4] sm:$0x1]
    %v2251 = vmul.f32 %v2248, %v2248
    %v2252 = vmul.f32 %v2249, %v2249
    %v2253 = vsel %vm211, %v2251, 0.0
    %2254 = vadd.xlane.f32.xlu0 %v2253
    %v2255 = vpop.xlane.xlu0 %2254
    %v2256 = vsel %vm211, %v2252, 0.0
    %2257 = vadd.xlane.f32.xlu0 %v2256
    %v2258 = vpop.xlane.xlu0 %2257
    %v2259 = vmul.f32 %v2255, %v224
    %v2260 = vmul.f32 %v2258, %v224
    %v2261 = vadd.f32 %v2259, 1e-06
    %v2262 = vadd.f32 %v2260, 1e-06
    %v2263 = vrsqrt.pop %v2261
    %v2264 = vrsqrt.pop %v2262
    %v2265 = vmul.f32 %v2248, %v2263
    %v2266 = vmul.f32 %v2249, %v2264
    %v2267 = vlaneseq
    %v2268 = vshrl.u32 %v2267, 7
    %v2269 = vsub.s32 0, %v2268
    %v2270 = vrot.slane %v2250, %v2269
    %v2271 = vmul.f32 %v2265, %v2270
    %v2272 = vmul.f32 %v2266, %v2270
    %v2273 = vld [vmem:[%s1 + $0x14] sm:$0xf]
    %v2274 = vld [vmem:[%s1 + $0x34] sm:$0xf]
    %v2275 = vld [vmem:[%s1 + $0x54] sm:$0xf]
    %v2276 = vld [vmem:[%s1 + $0x74] sm:$0xf]
    %v2277 = vld [vmem:[%s1 + $0x94] sm:$0xf]
    %v2278 = vld [vmem:[%s1 + $0xb4] sm:$0xf]
    %v2279 = vld [vmem:[%s1 + $0xd4] sm:$0xf]
    %v2280 = vld [vmem:[%s1 + $0xf4] sm:$0xf]
    %v2281 = vpack.c.bf16 %v2272, %v2271
    %v2290 = vunpack.c.l.b16 %v2273
    %v2291 = vunpack.c.l.b16 %v2274
    %v2292 = vunpack.c.l.b16 %v2275
    %v2293 = vunpack.c.l.b16 %v2276
    %v2294 = vunpack.c.l.b16 %v2277
    %v2295 = vunpack.c.l.b16 %v2278
    %v2296 = vunpack.c.l.b16 %v2279
    %v2297 = vunpack.c.l.b16 %v2280
    %v2298 = vpack.c.b16 %v2291, %v2290
    %v2299 = vpack.c.b16 %v2293, %v2292
    %v2300 = vpack.c.b16 %v2295, %v2294
    %v2301 = vpack.c.b16 %v2297, %v2296
    %v2307 = vsel %vm211, %v2281, 0
    %2309 = vmatprep.subr.bf16.mxu0 0
    %2310 = vmatpush1.bf16.msra.mxu0 0
    %2311 = vmatprep.subr.bf16.mxu0 0
    %2312 = vmatpush1.bf16.msra.mxu0 0
    %2313 = vmatprep.subr.bf16.mxu0 0
    %2314 = vmatpush1.bf16.msra.mxu0 0
    %2315 = vmatprep.subr.bf16.mxu0 0
    %2316 = vmatpush1.bf16.msra.mxu0 0
    %2317 = vmatprep.subr.bf16.mxu0 0
    %2318 = vmatpush1.bf16.msra.mxu0 %v2301
    %2319 = vmatprep.subr.bf16.mxu0 0
    %2320 = vmatpush1.bf16.msra.mxu0 %v2300
    %2321 = vmatprep.subr.bf16.mxu0 0
    %2322 = vmatpush1.bf16.msra.mxu0 %v2299
    %2323 = vmatprep.subr.bf16.mxu0 0
    %2324 = vmatpush1.bf16.msra.mxu0 %v2298
    %2325 = vmatprep.subr.bf16.mxu0 0
    %2326 = vmatpush2.bf16.msra.mxu0 0
    %2327 = vmatprep.subr.bf16.mxu0 0
    %2328 = vmatpush2.bf16.msra.mxu0 0
    %2329 = vmatprep.subr.bf16.mxu0 0
    %2330 = vmatpush2.bf16.msra.mxu0 0
    %2331 = vmatprep.subr.bf16.mxu0 0
    %2332 = vmatpush2.bf16.msra.mxu0 0
    %2333 = vmatprep.subr.bf16.mxu0 0
    %2334 = vmatpush2.bf16.msra.mxu0 0
    %2335 = vmatprep.subr.bf16.mxu0 0
    %2336 = vmatpush2.bf16.msra.mxu0 0
    %2337 = vmatprep.subr.bf16.mxu0 0
    %2338 = vmatpush2.bf16.msra.mxu0 0
    %2339 = vmatprep.subr.bf16.mxu0 0
    %2340 = vmatpush2.bf16.msra.mxu0 0
    %2341 = vmatprep.mubr.bf16.mxu0 0
    %2342 = vmatmul.mubr.bf16.gmra.mxu0 %v2307
    %v2343 = vpop.f32.mrf.mxu0
    %v2344 = vadd.f32 0.0, %v2343
    %v2345 = vpop.f32.mrf.mxu0
    %v2346 = vpop.f32.mrf.mxu0
    %v2347 = vadd.f32 0.0, %v2346
    %v2348 = vpop.f32.mrf.mxu0
    %2349 = vdwg.mxu0
    %v2350 = vld [vmem:[%s1 + $0x14] sm:$0xff]
    %v2351 = vld [vmem:[%s1 + $0x34] sm:$0xff]
    %v2352 = vld [vmem:[%s1 + $0x54] sm:$0xff]
    %v2353 = vld [vmem:[%s1 + $0x74] sm:$0xff]
    %v2354 = vld [vmem:[%s1 + $0x94] sm:$0xff]
    %v2355 = vld [vmem:[%s1 + $0xb4] sm:$0xff]
    %v2356 = vld [vmem:[%s1 + $0xd4] sm:$0xff]
    %v2357 = vld [vmem:[%s1 + $0xf4] sm:$0xff]
    %v2358 = vpack.c.bf16 %v1475, %v1474
    %v2359 = vpack.c.bf16 %v1477, %v1476
    %v2368 = vunpack.c.l.b16 %v2350
    %v2369 = vunpack.c.h.b16 %v2350
    %v2370 = vunpack.c.l.b16 %v2351
    %v2371 = vunpack.c.h.b16 %v2351
    %v2372 = vunpack.c.l.b16 %v2352
    %v2373 = vunpack.c.h.b16 %v2352
    %v2374 = vunpack.c.l.b16 %v2353
    %v2375 = vunpack.c.h.b16 %v2353
    %v2376 = vunpack.c.l.b16 %v2354
    %v2377 = vunpack.c.h.b16 %v2354
    %v2378 = vunpack.c.l.b16 %v2355
    %v2379 = vunpack.c.h.b16 %v2355
    %v2380 = vunpack.c.l.b16 %v2356
    %v2381 = vunpack.c.h.b16 %v2356
    %v2382 = vunpack.c.l.b16 %v2357
    %v2383 = vunpack.c.h.b16 %v2357
    %v2384 = vpack.c.b16 %v2370, %v2368
    %v2385 = vpack.c.b16 %v2371, %v2369
    %v2386 = vpack.c.b16 %v2374, %v2372
    %v2387 = vpack.c.b16 %v2375, %v2373
    %v2388 = vpack.c.b16 %v2378, %v2376
    %v2389 = vpack.c.b16 %v2379, %v2377
    %v2390 = vpack.c.b16 %v2382, %v2380
    %v2391 = vpack.c.b16 %v2383, %v2381
    %2392 = vrot.lane.b32.xlu0 %v2384, 64
    %v2393 = vpop.permute.xlu0 %2392
    %2394 = vrot.lane.b32.xlu0 %v2385, 64
    %v2395 = vpop.permute.xlu0 %2394
    %2396 = vrot.lane.b32.xlu0 %v2386, 64
    %v2397 = vpop.permute.xlu0 %2396
    %2398 = vrot.lane.b32.xlu0 %v2387, 64
    %v2399 = vpop.permute.xlu0 %2398
    %2400 = vrot.lane.b32.xlu0 %v2388, 64
    %v2401 = vpop.permute.xlu0 %2400
    %2402 = vrot.lane.b32.xlu0 %v2389, 64
    %v2403 = vpop.permute.xlu0 %2402
    %2404 = vrot.lane.b32.xlu0 %v2390, 64
    %v2405 = vpop.permute.xlu0 %2404
    %2406 = vrot.lane.b32.xlu0 %v2391, 64
    %v2407 = vpop.permute.xlu0 %2406
    %vm2408 = vcmask 523264
    %v2409 = vsel %vm2408, %v2393, %v2395
    %v2410 = vsel %vm2408, %v2397, %v2399
    %v2411 = vsel %vm2408, %v2401, %v2403
    %v2412 = vsel %vm2408, %v2405, %v2407
    %v2418 = vsel %vm211, %v2358, 0
    %v2421 = vsel %vm211, %v2359, 0
    %2423 = vmatprep.subr.bf16.mxu0 0
    %2424 = vmatpush1.bf16.msra.mxu0 0
    %2425 = vmatprep.subr.bf16.mxu0 0
    %2426 = vmatpush1.bf16.msra.mxu0 0
    %2427 = vmatprep.subr.bf16.mxu0 0
    %2428 = vmatpush1.bf16.msra.mxu0 0
    %2429 = vmatprep.subr.bf16.mxu0 0
    %2430 = vmatpush1.bf16.msra.mxu0 0
    %2431 = vmatprep.subr.bf16.mxu0 0
    %2432 = vmatpush1.bf16.msra.mxu0 %v2412
    %2433 = vmatprep.subr.bf16.mxu0 0
    %2434 = vmatpush1.bf16.msra.mxu0 %v2411
    %2435 = vmatprep.subr.bf16.mxu0 0
    %2436 = vmatpush1.bf16.msra.mxu0 %v2410
    %2437 = vmatprep.subr.bf16.mxu0 0
    %2438 = vmatpush1.bf16.msra.mxu0 %v2409
    %2439 = vmatprep.subr.bf16.mxu0 0
    %2440 = vmatpush2.bf16.msra.mxu0 0
    %2441 = vmatprep.subr.bf16.mxu0 0
    %2442 = vmatpush2.bf16.msra.mxu0 0
    %2443 = vmatprep.subr.bf16.mxu0 0
    %2444 = vmatpush2.bf16.msra.mxu0 0
    %2445 = vmatprep.subr.bf16.mxu0 0
    %2446 = vmatpush2.bf16.msra.mxu0 0
    %2447 = vmatprep.subr.bf16.mxu0 0
    %2448 = vmatpush2.bf16.msra.mxu0 0
    %2449 = vmatprep.subr.bf16.mxu0 0
    %2450 = vmatpush2.bf16.msra.mxu0 0
    %2451 = vmatprep.subr.bf16.mxu0 0
    %2452 = vmatpush2.bf16.msra.mxu0 0
    %2453 = vmatprep.subr.bf16.mxu0 0
    %2454 = vmatpush2.bf16.msra.mxu0 0
    %2455 = vmatprep.mubr.bf16.mxu0 0
    %2456 = vmatmul.mubr.bf16.gmra.mxu0 %v2418
    %v2457 = vpop.f32.mrf.mxu0
    %v2458 = vadd.f32 0.0, %v2457
    %v2459 = vpop.f32.mrf.mxu0
    %v2460 = vpop.f32.mrf.mxu0
    %v2461 = vadd.f32 0.0, %v2460
    %v2462 = vpop.f32.mrf.mxu0
    %2463 = vmatprep.mubr.bf16.mxu0 0
    %2464 = vmatmul.mubr.bf16.gmra.mxu0 %v2421
    %v2465 = vpop.f32.mrf.mxu0
    %v2466 = vadd.f32 0.0, %v2465
    %v2467 = vpop.f32.mrf.mxu0
    %v2468 = vpop.f32.mrf.mxu0
    %v2469 = vadd.f32 0.0, %v2468
    %v2470 = vpop.f32.mrf.mxu0
    %2471 = vdwg.mxu0
    %v2472 = vld [vmem:[%s1 + $0x18] sm:$0xf]
    %v2473 = vld [vmem:[%s1 + $0x38] sm:$0xf]
    %v2474 = vld [vmem:[%s1 + $0x58] sm:$0xf]
    %v2475 = vld [vmem:[%s1 + $0x78] sm:$0xf]
    %v2476 = vld [vmem:[%s1 + $0x98] sm:$0xf]
    %v2477 = vld [vmem:[%s1 + $0xb8] sm:$0xf]
    %v2478 = vld [vmem:[%s1 + $0xd8] sm:$0xf]
    %v2479 = vld [vmem:[%s1 + $0xf8] sm:$0xf]
    %v2480 = vpack.c.bf16 %v2347, %v2344
    %v2481 = vpack.c.bf16 %v2461, %v2458
    %v2482 = vpack.c.bf16 %v2469, %v2466
    %v2484 = vsel %vm374, %v2480, 0
    %v2487 = vsel %vm374, %v2481, 0
    %v2490 = vsel %vm374, %v2482, 0
    %2492 = vmatprep.subr.bf16.mxu0 0
    %2493 = vmatpush1.bf16.xpose.msra.mxu0 0
    %2494 = vmatprep.subr.bf16.mxu0 0
    %2495 = vmatpush1.bf16.xpose.msra.mxu0 0
    %2496 = vmatprep.subr.bf16.mxu0 0
    %2497 = vmatpush1.bf16.xpose.msra.mxu0 0
    %2498 = vmatprep.subr.bf16.mxu0 0
    %2499 = vmatpush1.bf16.xpose.msra.mxu0 0
    %2500 = vmatprep.subr.bf16.mxu0 0
    %2501 = vmatpush1.bf16.xpose.msra.mxu0 0
    %2502 = vmatprep.subr.bf16.mxu0 0
    %2503 = vmatpush1.bf16.xpose.msra.mxu0 0
    %2504 = vmatprep.subr.bf16.mxu0 0
    %2505 = vmatpush1.bf16.xpose.msra.mxu0 %v2490
    %2506 = vmatprep.subr.bf16.mxu0 0
    %2507 = vmatpush1.bf16.xpose.msra.mxu0 %v2487
    %2508 = vmatprep.subr.bf16.mxu0 0
    %2509 = vmatpush2.bf16.xpose.msra.mxu0 0
    %2510 = vmatprep.subr.bf16.mxu0 0
    %2511 = vmatpush2.bf16.xpose.msra.mxu0 0
    %2512 = vmatprep.subr.bf16.mxu0 0
    %2513 = vmatpush2.bf16.xpose.msra.mxu0 0
    %2514 = vmatprep.subr.bf16.mxu0 0
    %2515 = vmatpush2.bf16.xpose.msra.mxu0 0
    %2516 = vmatprep.subr.bf16.mxu0 0
    %2517 = vmatpush2.bf16.xpose.msra.mxu0 0
    %2518 = vmatprep.subr.bf16.mxu0 0
    %2519 = vmatpush2.bf16.xpose.msra.mxu0 0
    %2520 = vmatprep.subr.bf16.mxu0 0
    %2521 = vmatpush2.bf16.xpose.msra.mxu0 0
    %2522 = vmatprep.subr.bf16.mxu0 0
    %2523 = vmatpush2.bf16.xpose.msra.mxu0 0
    %2524 = vmatprep.mubr.bf16.mxu0 0
    %2525 = vmatmul.mubr.bf16.gmra.mxu0 %v2484
    %v2526 = vpop.f32.mrf.mxu0
    %v2527 = vadd.f32 %v79, %v2526
    %v2528 = vpop.f32.mrf.mxu0
    %v2529 = vpop.f32.mrf.mxu0
    %v2530 = vadd.f32 %v80, %v2529
    %v2531 = vpop.f32.mrf.mxu0
    %2532 = vdwg.mxu0
    %v2533 = vsel %vm436, %v2527, -inf
    %2534 = vmax.xlane.f32.xlu0 %v2533
    %v2535 = vpop.xlane.xlu0 %2534
    %v2536 = vsel %vm436, %v2530, -inf
    %2537 = vmax.xlane.f32.xlu0 %v2536
    %v2538 = vpop.xlane.xlu0 %2537
    %v2539 = vsub.f32 %v2527, %v2535
    %v2540 = vsub.f32 %v2530, %v2538
    %v2541 = vmul.f32 %v2539, 1.442695
    %v2542 = vpow.pop %v2541
    %v2543 = vmul.f32 %v2540, 1.442695
    %v2544 = vpow.pop %v2543
    %v2545 = vsel %vm436, %v2542, 0.0
    %2546 = vadd.xlane.f32.xlu0 %v2545
    %v2547 = vpop.xlane.xlu0 %2546
    %v2548 = vsel %vm436, %v2544, 0.0
    %2549 = vadd.xlane.f32.xlu0 %v2548
    %v2550 = vpop.xlane.xlu0 %2549
    %v2551 = vrcp.pop %v2547
    %v2552 = vrcp.pop %v2550
    %v2553 = vmul.f32 %v2542, %v2551
    %v2554 = vmul.f32 %v2544, %v2552
    %v2555 = vpack.c.bf16 %v2554, %v2553
    %2558 = vrot.lane.b32.xlu0 %v2481, 64
    %v2559 = vpop.permute.xlu0 %2558
    %2560 = vrot.lane.b32.xlu0 %v2482, 64
    %v2561 = vpop.permute.xlu0 %2560
    %v2565 = vsel %vm436, %v2555, 0
    %2567 = vmatprep.subr.bf16.mxu0 0
    %2568 = vmatpush1.bf16.msra.mxu0 0
    %2569 = vmatprep.subr.bf16.mxu0 0
    %2570 = vmatpush1.bf16.msra.mxu0 0
    %2571 = vmatprep.subr.bf16.mxu0 0
    %2572 = vmatpush1.bf16.msra.mxu0 0
    %2573 = vmatprep.subr.bf16.mxu0 0
    %2574 = vmatpush1.bf16.msra.mxu0 0
    %2575 = vmatprep.subr.bf16.mxu0 0
    %2576 = vmatpush1.bf16.msra.mxu0 0
    %2577 = vmatprep.subr.bf16.mxu0 0
    %2578 = vmatpush1.bf16.msra.mxu0 0
    %2579 = vmatprep.subr.bf16.mxu0 0
    %2580 = vmatpush1.bf16.msra.mxu0 %v2561
    %2581 = vmatprep.subr.bf16.mxu0 0
    %2582 = vmatpush1.bf16.msra.mxu0 %v2559
    %2583 = vmatprep.subr.bf16.mxu0 0
    %2584 = vmatpush2.bf16.msra.mxu0 0
    %2585 = vmatprep.subr.bf16.mxu0 0
    %2586 = vmatpush2.bf16.msra.mxu0 0
    %2587 = vmatprep.subr.bf16.mxu0 0
    %2588 = vmatpush2.bf16.msra.mxu0 0
    %2589 = vmatprep.subr.bf16.mxu0 0
    %2590 = vmatpush2.bf16.msra.mxu0 0
    %2591 = vmatprep.subr.bf16.mxu0 0
    %2592 = vmatpush2.bf16.msra.mxu0 0
    %2593 = vmatprep.subr.bf16.mxu0 0
    %2594 = vmatpush2.bf16.msra.mxu0 0
    %2595 = vmatprep.subr.bf16.mxu0 0
    %2596 = vmatpush2.bf16.msra.mxu0 0
    %2597 = vmatprep.subr.bf16.mxu0 0
    %2598 = vmatpush2.bf16.msra.mxu0 0
    %2599 = vmatprep.mubr.bf16.mxu0 0
    %2600 = vmatmul.mubr.bf16.gmra.mxu0 %v2565
    %v2601 = vpop.f32.mrf.mxu0
    %v2602 = vadd.f32 0.0, %v2601
    %v2603 = vpop.f32.mrf.mxu0
    %v2604 = vpop.f32.mrf.mxu0
    %v2605 = vadd.f32 0.0, %v2604
    %v2606 = vpop.f32.mrf.mxu0
    %2607 = vdwg.mxu0
    %2609 = vrot.lane.b32.xlu0 %v2480, 112
    %v2610 = vpop.permute.xlu0 %2609
    %2611 = vrot.lane.b32.xlu0 %v2481, 112
    %v2612 = vpop.permute.xlu0 %2611
    %2613 = vrot.lane.b32.xlu0 %v2482, 112
    %v2614 = vpop.permute.xlu0 %2613
    %v2616 = vsel %vm374, %v2610, 0
    %v2619 = vsel %vm374, %v2612, 0
    %v2622 = vsel %vm374, %v2614, 0
    %2624 = vmatprep.subr.bf16.mxu0 0
    %2625 = vmatpush1.bf16.xpose.msra.mxu0 0
    %2626 = vmatprep.subr.bf16.mxu0 0
    %2627 = vmatpush1.bf16.xpose.msra.mxu0 0
    %2628 = vmatprep.subr.bf16.mxu0 0
    %2629 = vmatpush1.bf16.xpose.msra.mxu0 0
    %2630 = vmatprep.subr.bf16.mxu0 0
    %2631 = vmatpush1.bf16.xpose.msra.mxu0 0
    %2632 = vmatprep.subr.bf16.mxu0 0
    %2633 = vmatpush1.bf16.xpose.msra.mxu0 0
    %2634 = vmatprep.subr.bf16.mxu0 0
    %2635 = vmatpush1.bf16.xpose.msra.mxu0 0
    %2636 = vmatprep.subr.bf16.mxu0 0
    %2637 = vmatpush1.bf16.xpose.msra.mxu0 %v2622
    %2638 = vmatprep.subr.bf16.mxu0 0
    %2639 = vmatpush1.bf16.xpose.msra.mxu0 %v2619
    %2640 = vmatprep.subr.bf16.mxu0 0
    %2641 = vmatpush2.bf16.xpose.msra.mxu0 0
    %2642 = vmatprep.subr.bf16.mxu0 0
    %2643 = vmatpush2.bf16.xpose.msra.mxu0 0
    %2644 = vmatprep.subr.bf16.mxu0 0
    %2645 = vmatpush2.bf16.xpose.msra.mxu0 0
    %2646 = vmatprep.subr.bf16.mxu0 0
    %2647 = vmatpush2.bf16.xpose.msra.mxu0 0
    %2648 = vmatprep.subr.bf16.mxu0 0
    %2649 = vmatpush2.bf16.xpose.msra.mxu0 0
    %2650 = vmatprep.subr.bf16.mxu0 0
    %2651 = vmatpush2.bf16.xpose.msra.mxu0 0
    %2652 = vmatprep.subr.bf16.mxu0 0
    %2653 = vmatpush2.bf16.xpose.msra.mxu0 0
    %2654 = vmatprep.subr.bf16.mxu0 0
    %2655 = vmatpush2.bf16.xpose.msra.mxu0 0
    %2656 = vmatprep.mubr.bf16.mxu0 0
    %2657 = vmatmul.mubr.bf16.gmra.mxu0 %v2616
    %v2658 = vpop.f32.mrf.mxu0
    %v2659 = vadd.f32 %v79, %v2658
    %v2660 = vpop.f32.mrf.mxu0
    %v2661 = vpop.f32.mrf.mxu0
    %v2662 = vadd.f32 %v80, %v2661
    %v2663 = vpop.f32.mrf.mxu0
    %2664 = vdwg.mxu0
    %v2665 = vsel %vm436, %v2659, -inf
    %2666 = vmax.xlane.f32.xlu0 %v2665
    %v2667 = vpop.xlane.xlu0 %2666
    %v2668 = vsel %vm436, %v2662, -inf
    %2669 = vmax.xlane.f32.xlu0 %v2668
    %v2670 = vpop.xlane.xlu0 %2669
    %v2671 = vsub.f32 %v2659, %v2667
    %v2672 = vsub.f32 %v2662, %v2670
    %v2673 = vmul.f32 %v2671, 1.442695
    %v2674 = vpow.pop %v2673
    %v2675 = vmul.f32 %v2672, 1.442695
    %v2676 = vpow.pop %v2675
    %v2677 = vsel %vm436, %v2674, 0.0
    %2678 = vadd.xlane.f32.xlu0 %v2677
    %v2679 = vpop.xlane.xlu0 %2678
    %v2680 = vsel %vm436, %v2676, 0.0
    %2681 = vadd.xlane.f32.xlu0 %v2680
    %v2682 = vpop.xlane.xlu0 %2681
    %v2683 = vrcp.pop %v2679
    %v2684 = vrcp.pop %v2682
    %v2685 = vmul.f32 %v2674, %v2683
    %v2686 = vmul.f32 %v2676, %v2684
    %v2687 = vpack.c.bf16 %v2686, %v2685
    %2688 = vrot.lane.b32.xlu0 %v2481, 48
    %v2689 = vpop.permute.xlu0 %2688
    %2690 = vrot.lane.b32.xlu0 %v2482, 48
    %v2691 = vpop.permute.xlu0 %2690
    %v2695 = vsel %vm436, %v2687, 0
    %2697 = vmatprep.subr.bf16.mxu0 0
    %2698 = vmatpush1.bf16.msra.mxu0 0
    %2699 = vmatprep.subr.bf16.mxu0 0
    %2700 = vmatpush1.bf16.msra.mxu0 0
    %2701 = vmatprep.subr.bf16.mxu0 0
    %2702 = vmatpush1.bf16.msra.mxu0 0
    %2703 = vmatprep.subr.bf16.mxu0 0
    %2704 = vmatpush1.bf16.msra.mxu0 0
    %2705 = vmatprep.subr.bf16.mxu0 0
    %2706 = vmatpush1.bf16.msra.mxu0 0
    %2707 = vmatprep.subr.bf16.mxu0 0
    %2708 = vmatpush1.bf16.msra.mxu0 0
    %2709 = vmatprep.subr.bf16.mxu0 0
    %2710 = vmatpush1.bf16.msra.mxu0 %v2691
    %2711 = vmatprep.subr.bf16.mxu0 0
    %2712 = vmatpush1.bf16.msra.mxu0 %v2689
    %2713 = vmatprep.subr.bf16.mxu0 0
    %2714 = vmatpush2.bf16.msra.mxu0 0
    %2715 = vmatprep.subr.bf16.mxu0 0
    %2716 = vmatpush2.bf16.msra.mxu0 0
    %2717 = vmatprep.subr.bf16.mxu0 0
    %2718 = vmatpush2.bf16.msra.mxu0 0
    %2719 = vmatprep.subr.bf16.mxu0 0
    %2720 = vmatpush2.bf16.msra.mxu0 0
    %2721 = vmatprep.subr.bf16.mxu0 0
    %2722 = vmatpush2.bf16.msra.mxu0 0
    %2723 = vmatprep.subr.bf16.mxu0 0
    %2724 = vmatpush2.bf16.msra.mxu0 0
    %2725 = vmatprep.subr.bf16.mxu0 0
    %2726 = vmatpush2.bf16.msra.mxu0 0
    %2727 = vmatprep.subr.bf16.mxu0 0
    %2728 = vmatpush2.bf16.msra.mxu0 0
    %2729 = vmatprep.mubr.bf16.mxu0 0
    %2730 = vmatmul.mubr.bf16.gmra.mxu0 %v2695
    %v2731 = vpop.f32.mrf.mxu0
    %v2732 = vadd.f32 0.0, %v2731
    %v2733 = vpop.f32.mrf.mxu0
    %v2734 = vpop.f32.mrf.mxu0
    %v2735 = vadd.f32 0.0, %v2734
    %v2736 = vpop.f32.mrf.mxu0
    %2737 = vdwg.mxu0
    %2738 = vrot.lane.b32.xlu0 %v2480, 96
    %v2739 = vpop.permute.xlu0 %2738
    %2740 = vrot.lane.b32.xlu0 %v2481, 96
    %v2741 = vpop.permute.xlu0 %2740
    %2742 = vrot.lane.b32.xlu0 %v2482, 96
    %v2743 = vpop.permute.xlu0 %2742
    %v2745 = vsel %vm374, %v2739, 0
    %v2748 = vsel %vm374, %v2741, 0
    %v2751 = vsel %vm374, %v2743, 0
    %2753 = vmatprep.subr.bf16.mxu0 0
    %2754 = vmatpush1.bf16.xpose.msra.mxu0 0
    %2755 = vmatprep.subr.bf16.mxu0 0
    %2756 = vmatpush1.bf16.xpose.msra.mxu0 0
    %2757 = vmatprep.subr.bf16.mxu0 0
    %2758 = vmatpush1.bf16.xpose.msra.mxu0 0
    %2759 = vmatprep.subr.bf16.mxu0 0
    %2760 = vmatpush1.bf16.xpose.msra.mxu0 0
    %2761 = vmatprep.subr.bf16.mxu0 0
    %2762 = vmatpush1.bf16.xpose.msra.mxu0 0
    %2763 = vmatprep.subr.bf16.mxu0 0
    %2764 = vmatpush1.bf16.xpose.msra.mxu0 0
    %2765 = vmatprep.subr.bf16.mxu0 0
    %2766 = vmatpush1.bf16.xpose.msra.mxu0 %v2751
    %2767 = vmatprep.subr.bf16.mxu0 0
    %2768 = vmatpush1.bf16.xpose.msra.mxu0 %v2748
    %2769 = vmatprep.subr.bf16.mxu0 0
    %2770 = vmatpush2.bf16.xpose.msra.mxu0 0
    %2771 = vmatprep.subr.bf16.mxu0 0
    %2772 = vmatpush2.bf16.xpose.msra.mxu0 0
    %2773 = vmatprep.subr.bf16.mxu0 0
    %2774 = vmatpush2.bf16.xpose.msra.mxu0 0
    %2775 = vmatprep.subr.bf16.mxu0 0
    %2776 = vmatpush2.bf16.xpose.msra.mxu0 0
    %2777 = vmatprep.subr.bf16.mxu0 0
    %2778 = vmatpush2.bf16.xpose.msra.mxu0 0
    %2779 = vmatprep.subr.bf16.mxu0 0
    %2780 = vmatpush2.bf16.xpose.msra.mxu0 0
    %2781 = vmatprep.subr.bf16.mxu0 0
    %2782 = vmatpush2.bf16.xpose.msra.mxu0 0
    %2783 = vmatprep.subr.bf16.mxu0 0
    %2784 = vmatpush2.bf16.xpose.msra.mxu0 0
    %2785 = vmatprep.mubr.bf16.mxu0 0
    %2786 = vmatmul.mubr.bf16.gmra.mxu0 %v2745
    %v2787 = vpop.f32.mrf.mxu0
    %v2788 = vadd.f32 %v79, %v2787
    %v2789 = vpop.f32.mrf.mxu0
    %v2790 = vpop.f32.mrf.mxu0
    %v2791 = vadd.f32 %v80, %v2790
    %v2792 = vpop.f32.mrf.mxu0
    %2793 = vdwg.mxu0
    %v2794 = vsel %vm436, %v2788, -inf
    %2795 = vmax.xlane.f32.xlu0 %v2794
    %v2796 = vpop.xlane.xlu0 %2795
    %v2797 = vsel %vm436, %v2791, -inf
    %2798 = vmax.xlane.f32.xlu0 %v2797
    %v2799 = vpop.xlane.xlu0 %2798
    %v2800 = vsub.f32 %v2788, %v2796
    %v2801 = vsub.f32 %v2791, %v2799
    %v2802 = vmul.f32 %v2800, 1.442695
    %v2803 = vpow.pop %v2802
    %v2804 = vmul.f32 %v2801, 1.442695
    %v2805 = vpow.pop %v2804
    %v2806 = vsel %vm436, %v2803, 0.0
    %2807 = vadd.xlane.f32.xlu0 %v2806
    %v2808 = vpop.xlane.xlu0 %2807
    %v2809 = vsel %vm436, %v2805, 0.0
    %2810 = vadd.xlane.f32.xlu0 %v2809
    %v2811 = vpop.xlane.xlu0 %2810
    %v2812 = vrcp.pop %v2808
    %v2813 = vrcp.pop %v2811
    %v2814 = vmul.f32 %v2803, %v2812
    %v2815 = vmul.f32 %v2805, %v2813
    %v2816 = vpack.c.bf16 %v2815, %v2814
    %2817 = vrot.lane.b32.xlu0 %v2481, 32
    %v2818 = vpop.permute.xlu0 %2817
    %2819 = vrot.lane.b32.xlu0 %v2482, 32
    %v2820 = vpop.permute.xlu0 %2819
    %v2824 = vsel %vm436, %v2816, 0
    %2826 = vmatprep.subr.bf16.mxu0 0
    %2827 = vmatpush1.bf16.msra.mxu0 0
    %2828 = vmatprep.subr.bf16.mxu0 0
    %2829 = vmatpush1.bf16.msra.mxu0 0
    %2830 = vmatprep.subr.bf16.mxu0 0
    %2831 = vmatpush1.bf16.msra.mxu0 0
    %2832 = vmatprep.subr.bf16.mxu0 0
    %2833 = vmatpush1.bf16.msra.mxu0 0
    %2834 = vmatprep.subr.bf16.mxu0 0
    %2835 = vmatpush1.bf16.msra.mxu0 0
    %2836 = vmatprep.subr.bf16.mxu0 0
    %2837 = vmatpush1.bf16.msra.mxu0 0
    %2838 = vmatprep.subr.bf16.mxu0 0
    %2839 = vmatpush1.bf16.msra.mxu0 %v2820
    %2840 = vmatprep.subr.bf16.mxu0 0
    %2841 = vmatpush1.bf16.msra.mxu0 %v2818
    %2842 = vmatprep.subr.bf16.mxu0 0
    %2843 = vmatpush2.bf16.msra.mxu0 0
    %2844 = vmatprep.subr.bf16.mxu0 0
    %2845 = vmatpush2.bf16.msra.mxu0 0
    %2846 = vmatprep.subr.bf16.mxu0 0
    %2847 = vmatpush2.bf16.msra.mxu0 0
    %2848 = vmatprep.subr.bf16.mxu0 0
    %2849 = vmatpush2.bf16.msra.mxu0 0
    %2850 = vmatprep.subr.bf16.mxu0 0
    %2851 = vmatpush2.bf16.msra.mxu0 0
    %2852 = vmatprep.subr.bf16.mxu0 0
    %2853 = vmatpush2.bf16.msra.mxu0 0
    %2854 = vmatprep.subr.bf16.mxu0 0
    %2855 = vmatpush2.bf16.msra.mxu0 0
    %2856 = vmatprep.subr.bf16.mxu0 0
    %2857 = vmatpush2.bf16.msra.mxu0 0
    %2858 = vmatprep.mubr.bf16.mxu0 0
    %2859 = vmatmul.mubr.bf16.gmra.mxu0 %v2824
    %v2860 = vpop.f32.mrf.mxu0
    %v2861 = vadd.f32 0.0, %v2860
    %v2862 = vpop.f32.mrf.mxu0
    %v2863 = vpop.f32.mrf.mxu0
    %v2864 = vadd.f32 0.0, %v2863
    %v2865 = vpop.f32.mrf.mxu0
    %2866 = vdwg.mxu0
    %2867 = vrot.lane.b32.xlu0 %v2480, 80
    %v2868 = vpop.permute.xlu0 %2867
    %2869 = vrot.lane.b32.xlu0 %v2481, 80
    %v2870 = vpop.permute.xlu0 %2869
    %2871 = vrot.lane.b32.xlu0 %v2482, 80
    %v2872 = vpop.permute.xlu0 %2871
    %v2874 = vsel %vm374, %v2868, 0
    %v2877 = vsel %vm374, %v2870, 0
    %v2880 = vsel %vm374, %v2872, 0
    %2882 = vmatprep.subr.bf16.mxu0 0
    %2883 = vmatpush1.bf16.xpose.msra.mxu0 0
    %2884 = vmatprep.subr.bf16.mxu0 0
    %2885 = vmatpush1.bf16.xpose.msra.mxu0 0
    %2886 = vmatprep.subr.bf16.mxu0 0
    %2887 = vmatpush1.bf16.xpose.msra.mxu0 0
    %2888 = vmatprep.subr.bf16.mxu0 0
    %2889 = vmatpush1.bf16.xpose.msra.mxu0 0
    %2890 = vmatprep.subr.bf16.mxu0 0
    %2891 = vmatpush1.bf16.xpose.msra.mxu0 0
    %2892 = vmatprep.subr.bf16.mxu0 0
    %2893 = vmatpush1.bf16.xpose.msra.mxu0 0
    %2894 = vmatprep.subr.bf16.mxu0 0
    %2895 = vmatpush1.bf16.xpose.msra.mxu0 %v2880
    %2896 = vmatprep.subr.bf16.mxu0 0
    %2897 = vmatpush1.bf16.xpose.msra.mxu0 %v2877
    %2898 = vmatprep.subr.bf16.mxu0 0
    %2899 = vmatpush2.bf16.xpose.msra.mxu0 0
    %2900 = vmatprep.subr.bf16.mxu0 0
    %2901 = vmatpush2.bf16.xpose.msra.mxu0 0
    %2902 = vmatprep.subr.bf16.mxu0 0
    %2903 = vmatpush2.bf16.xpose.msra.mxu0 0
    %2904 = vmatprep.subr.bf16.mxu0 0
    %2905 = vmatpush2.bf16.xpose.msra.mxu0 0
    %2906 = vmatprep.subr.bf16.mxu0 0
    %2907 = vmatpush2.bf16.xpose.msra.mxu0 0
    %2908 = vmatprep.subr.bf16.mxu0 0
    %2909 = vmatpush2.bf16.xpose.msra.mxu0 0
    %2910 = vmatprep.subr.bf16.mxu0 0
    %2911 = vmatpush2.bf16.xpose.msra.mxu0 0
    %2912 = vmatprep.subr.bf16.mxu0 0
    %2913 = vmatpush2.bf16.xpose.msra.mxu0 0
    %2914 = vmatprep.mubr.bf16.mxu0 0
    %2915 = vmatmul.mubr.bf16.gmra.mxu0 %v2874
    %v2916 = vpop.f32.mrf.mxu0
    %v2917 = vadd.f32 %v79, %v2916
    %v2918 = vpop.f32.mrf.mxu0
    %v2919 = vpop.f32.mrf.mxu0
    %v2920 = vadd.f32 %v80, %v2919
    %v2921 = vpop.f32.mrf.mxu0
    %2922 = vdwg.mxu0
    %v2923 = vsel %vm436, %v2917, -inf
    %2924 = vmax.xlane.f32.xlu0 %v2923
    %v2925 = vpop.xlane.xlu0 %2924
    %v2926 = vsel %vm436, %v2920, -inf
    %2927 = vmax.xlane.f32.xlu0 %v2926
    %v2928 = vpop.xlane.xlu0 %2927
    %v2929 = vsub.f32 %v2917, %v2925
    %v2930 = vsub.f32 %v2920, %v2928
    %v2931 = vmul.f32 %v2929, 1.442695
    %v2932 = vpow.pop %v2931
    %v2933 = vmul.f32 %v2930, 1.442695
    %v2934 = vpow.pop %v2933
    %v2935 = vsel %vm436, %v2932, 0.0
    %2936 = vadd.xlane.f32.xlu0 %v2935
    %v2937 = vpop.xlane.xlu0 %2936
    %v2938 = vsel %vm436, %v2934, 0.0
    %2939 = vadd.xlane.f32.xlu0 %v2938
    %v2940 = vpop.xlane.xlu0 %2939
    %v2941 = vrcp.pop %v2937
    %v2942 = vrcp.pop %v2940
    %v2943 = vmul.f32 %v2932, %v2941
    %v2944 = vmul.f32 %v2934, %v2942
    %v2945 = vpack.c.bf16 %v2944, %v2943
    %2946 = vrot.lane.b32.xlu0 %v2481, 16
    %v2947 = vpop.permute.xlu0 %2946
    %2948 = vrot.lane.b32.xlu0 %v2482, 16
    %v2949 = vpop.permute.xlu0 %2948
    %v2953 = vsel %vm436, %v2945, 0
    %2955 = vmatprep.subr.bf16.mxu0 0
    %2956 = vmatpush1.bf16.msra.mxu0 0
    %2957 = vmatprep.subr.bf16.mxu0 0
    %2958 = vmatpush1.bf16.msra.mxu0 0
    %2959 = vmatprep.subr.bf16.mxu0 0
    %2960 = vmatpush1.bf16.msra.mxu0 0
    %2961 = vmatprep.subr.bf16.mxu0 0
    %2962 = vmatpush1.bf16.msra.mxu0 0
    %2963 = vmatprep.subr.bf16.mxu0 0
    %2964 = vmatpush1.bf16.msra.mxu0 0
    %2965 = vmatprep.subr.bf16.mxu0 0
    %2966 = vmatpush1.bf16.msra.mxu0 0
    %2967 = vmatprep.subr.bf16.mxu0 0
    %2968 = vmatpush1.bf16.msra.mxu0 %v2949
    %2969 = vmatprep.subr.bf16.mxu0 0
    %2970 = vmatpush1.bf16.msra.mxu0 %v2947
    %2971 = vmatprep.subr.bf16.mxu0 0
    %2972 = vmatpush2.bf16.msra.mxu0 0
    %2973 = vmatprep.subr.bf16.mxu0 0
    %2974 = vmatpush2.bf16.msra.mxu0 0
    %2975 = vmatprep.subr.bf16.mxu0 0
    %2976 = vmatpush2.bf16.msra.mxu0 0
    %2977 = vmatprep.subr.bf16.mxu0 0
    %2978 = vmatpush2.bf16.msra.mxu0 0
    %2979 = vmatprep.subr.bf16.mxu0 0
    %2980 = vmatpush2.bf16.msra.mxu0 0
    %2981 = vmatprep.subr.bf16.mxu0 0
    %2982 = vmatpush2.bf16.msra.mxu0 0
    %2983 = vmatprep.subr.bf16.mxu0 0
    %2984 = vmatpush2.bf16.msra.mxu0 0
    %2985 = vmatprep.subr.bf16.mxu0 0
    %2986 = vmatpush2.bf16.msra.mxu0 0
    %2987 = vmatprep.mubr.bf16.mxu0 0
    %2988 = vmatmul.mubr.bf16.gmra.mxu0 %v2953
    %v2989 = vpop.f32.mrf.mxu0
    %v2990 = vadd.f32 0.0, %v2989
    %v2991 = vpop.f32.mrf.mxu0
    %v2992 = vpop.f32.mrf.mxu0
    %v2993 = vadd.f32 0.0, %v2992
    %v2994 = vpop.f32.mrf.mxu0
    %2995 = vdwg.mxu0
    %2998 = vrot.lane.b32.xlu0 %v2732, 16
    %v2999 = vpop.permute.xlu0 %2998
    %3000 = vrot.lane.b32.xlu0 %v2735, 16
    %v3001 = vpop.permute.xlu0 %3000
    %3006 = vrot.lane.b32.xlu0 %v2861, 32
    %v3007 = vpop.permute.xlu0 %3006
    %3008 = vrot.lane.b32.xlu0 %v2864, 32
    %v3009 = vpop.permute.xlu0 %3008
    %3014 = vrot.lane.b32.xlu0 %v2990, 48
    %v3015 = vpop.permute.xlu0 %3014
    %3016 = vrot.lane.b32.xlu0 %v2993, 48
    %v3017 = vpop.permute.xlu0 %3016
    %v3020 = vsel %vm374, %v2602, %v2999
    %v3021 = vsel %vm374, %v2605, %v3001
    %v3022 = vsel %vm436, %v3020, %v3007
    %v3023 = vsel %vm436, %v3021, %v3009
    %v3024 = vsel %vm1126, %v3022, %v3015
    %v3025 = vsel %vm1126, %v3023, %v3017
    %v3026 = vpack.c.bf16 %v3025, %v3024
    %v3035 = vunpack.c.l.b16 %v2472
    %v3036 = vunpack.c.l.b16 %v2473
    %v3037 = vunpack.c.l.b16 %v2474
    %v3038 = vunpack.c.l.b16 %v2475
    %v3039 = vunpack.c.l.b16 %v2476
    %v3040 = vunpack.c.l.b16 %v2477
    %v3041 = vunpack.c.l.b16 %v2478
    %v3042 = vunpack.c.l.b16 %v2479
    %v3043 = vpack.c.b16 %v3036, %v3035
    %v3044 = vpack.c.b16 %v3038, %v3037
    %v3045 = vpack.c.b16 %v3040, %v3039
    %v3046 = vpack.c.b16 %v3042, %v3041
    %3047 = vrot.lane.b32.xlu0 %v3043, 64
    %v3048 = vpop.permute.xlu0 %3047
    %3049 = vrot.lane.b32.xlu0 %v3044, 64
    %v3050 = vpop.permute.xlu0 %3049
    %3051 = vrot.lane.b32.xlu0 %v3045, 64
    %v3052 = vpop.permute.xlu0 %3051
    %3053 = vrot.lane.b32.xlu0 %v3046, 64
    %v3054 = vpop.permute.xlu0 %3053
    %v3060 = vsel %vm211, %v3026, 0
    %3062 = vmatprep.subr.bf16.mxu0 0
    %3063 = vmatpush1.bf16.msra.mxu0 0
    %3064 = vmatprep.subr.bf16.mxu0 0
    %3065 = vmatpush1.bf16.msra.mxu0 0
    %3066 = vmatprep.subr.bf16.mxu0 0
    %3067 = vmatpush1.bf16.msra.mxu0 0
    %3068 = vmatprep.subr.bf16.mxu0 0
    %3069 = vmatpush1.bf16.msra.mxu0 0
    %3070 = vmatprep.subr.bf16.mxu0 0
    %3071 = vmatpush1.bf16.msra.mxu0 %v3054
    %3072 = vmatprep.subr.bf16.mxu0 0
    %3073 = vmatpush1.bf16.msra.mxu0 %v3052
    %3074 = vmatprep.subr.bf16.mxu0 0
    %3075 = vmatpush1.bf16.msra.mxu0 %v3050
    %3076 = vmatprep.subr.bf16.mxu0 0
    %3077 = vmatpush1.bf16.msra.mxu0 %v3048
    %3078 = vmatprep.subr.bf16.mxu0 0
    %3079 = vmatpush2.bf16.msra.mxu0 0
    %3080 = vmatprep.subr.bf16.mxu0 0
    %3081 = vmatpush2.bf16.msra.mxu0 0
    %3082 = vmatprep.subr.bf16.mxu0 0
    %3083 = vmatpush2.bf16.msra.mxu0 0
    %3084 = vmatprep.subr.bf16.mxu0 0
    %3085 = vmatpush2.bf16.msra.mxu0 0
    %3086 = vmatprep.subr.bf16.mxu0 0
    %3087 = vmatpush2.bf16.msra.mxu0 0
    %3088 = vmatprep.subr.bf16.mxu0 0
    %3089 = vmatpush2.bf16.msra.mxu0 0
    %3090 = vmatprep.subr.bf16.mxu0 0
    %3091 = vmatpush2.bf16.msra.mxu0 0
    %3092 = vmatprep.subr.bf16.mxu0 0
    %3093 = vmatpush2.bf16.msra.mxu0 0
    %3094 = vmatprep.mubr.bf16.mxu0 0
    %3095 = vmatmul.mubr.bf16.gmra.mxu0 %v3060
    %v3096 = vpop.f32.mrf.mxu0
    %v3097 = vadd.f32 0.0, %v3096
    %v3098 = vpop.f32.mrf.mxu0
    %v3099 = vpop.f32.mrf.mxu0
    %v3100 = vadd.f32 0.0, %v3099
    %v3101 = vpop.f32.mrf.mxu0
    %3102 = vdwg.mxu0
    %v3103 = vadd.f32 %v2248, %v3097
    %v3104 = vadd.f32 %v2249, %v3100
    %v3105 = vld [vmem:[%s3 + $0x5] sm:$0x1]
    %v3106 = vmul.f32 %v3103, %v3103
    %v3107 = vmul.f32 %v3104, %v3104
    %v3108 = vsel %vm211, %v3106, 0.0
    %3109 = vadd.xlane.f32.xlu0 %v3108
    %v3110 = vpop.xlane.xlu0 %3109
    %v3111 = vsel %vm211, %v3107, 0.0
    %3112 = vadd.xlane.f32.xlu0 %v3111
    %v3113 = vpop.xlane.xlu0 %3112
    %v3114 = vmul.f32 %v3110, %v224
    %v3115 = vmul.f32 %v3113, %v224
    %v3116 = vadd.f32 %v3114, 1e-06
    %v3117 = vadd.f32 %v3115, 1e-06
    %v3118 = vrsqrt.pop %v3116
    %v3119 = vrsqrt.pop %v3117
    %v3120 = vmul.f32 %v3103, %v3118
    %v3121 = vmul.f32 %v3104, %v3119
    %v3122 = vlaneseq
    %v3123 = vshrl.u32 %v3122, 7
    %v3124 = vsub.s32 0, %v3123
    %v3125 = vrot.slane %v3105, %v3124
    %v3126 = vmul.f32 %v3120, %v3125
    %v3127 = vmul.f32 %v3121, %v3125
    %v3128 = vld [vmem:[%s1 + $0x1c] sm:$0xf]
    %v3129 = vld [vmem:[%s1 + $0x3c] sm:$0xf]
    %v3130 = vld [vmem:[%s1 + $0x5c] sm:$0xf]
    %v3131 = vld [vmem:[%s1 + $0x7c] sm:$0xf]
    %v3132 = vld [vmem:[%s1 + $0x9c] sm:$0xf]
    %v3133 = vld [vmem:[%s1 + $0xbc] sm:$0xf]
    %v3134 = vld [vmem:[%s1 + $0xdc] sm:$0xf]
    %v3135 = vld [vmem:[%s1 + $0xfc] sm:$0xf]
    %v3136 = vpack.c.bf16 %v3127, %v3126
    %v3145 = vunpack.c.l.b16 %v3128
    %v3146 = vunpack.c.l.b16 %v3129
    %v3147 = vunpack.c.l.b16 %v3130
    %v3148 = vunpack.c.l.b16 %v3131
    %v3149 = vunpack.c.l.b16 %v3132
    %v3150 = vunpack.c.l.b16 %v3133
    %v3151 = vunpack.c.l.b16 %v3134
    %v3152 = vunpack.c.l.b16 %v3135
    %v3153 = vpack.c.b16 %v3146, %v3145
    %v3154 = vpack.c.b16 %v3148, %v3147
    %v3155 = vpack.c.b16 %v3150, %v3149
    %v3156 = vpack.c.b16 %v3152, %v3151
    %v3162 = vsel %vm211, %v3136, 0
    %3164 = vmatprep.subr.bf16.mxu0 0
    %3165 = vmatpush1.bf16.msra.mxu0 0
    %3166 = vmatprep.subr.bf16.mxu0 0
    %3167 = vmatpush1.bf16.msra.mxu0 0
    %3168 = vmatprep.subr.bf16.mxu0 0
    %3169 = vmatpush1.bf16.msra.mxu0 0
    %3170 = vmatprep.subr.bf16.mxu0 0
    %3171 = vmatpush1.bf16.msra.mxu0 0
    %3172 = vmatprep.subr.bf16.mxu0 0
    %3173 = vmatpush1.bf16.msra.mxu0 %v3156
    %3174 = vmatprep.subr.bf16.mxu0 0
    %3175 = vmatpush1.bf16.msra.mxu0 %v3155
    %3176 = vmatprep.subr.bf16.mxu0 0
    %3177 = vmatpush1.bf16.msra.mxu0 %v3154
    %3178 = vmatprep.subr.bf16.mxu0 0
    %3179 = vmatpush1.bf16.msra.mxu0 %v3153
    %3180 = vmatprep.subr.bf16.mxu0 0
    %3181 = vmatpush2.bf16.msra.mxu0 0
    %3182 = vmatprep.subr.bf16.mxu0 0
    %3183 = vmatpush2.bf16.msra.mxu0 0
    %3184 = vmatprep.subr.bf16.mxu0 0
    %3185 = vmatpush2.bf16.msra.mxu0 0
    %3186 = vmatprep.subr.bf16.mxu0 0
    %3187 = vmatpush2.bf16.msra.mxu0 0
    %3188 = vmatprep.subr.bf16.mxu0 0
    %3189 = vmatpush2.bf16.msra.mxu0 0
    %3190 = vmatprep.subr.bf16.mxu0 0
    %3191 = vmatpush2.bf16.msra.mxu0 0
    %3192 = vmatprep.subr.bf16.mxu0 0
    %3193 = vmatpush2.bf16.msra.mxu0 0
    %3194 = vmatprep.subr.bf16.mxu0 0
    %3195 = vmatpush2.bf16.msra.mxu0 0
    %3196 = vmatprep.mubr.bf16.mxu0 0
    %3197 = vmatmul.mubr.bf16.gmra.mxu0 %v3162
    %v3198 = vpop.f32.mrf.mxu0
    %v3199 = vadd.f32 0.0, %v3198
    %v3200 = vpop.f32.mrf.mxu0
    %v3201 = vpop.f32.mrf.mxu0
    %v3202 = vadd.f32 0.0, %v3201
    %v3203 = vpop.f32.mrf.mxu0
    %3204 = vdwg.mxu0
    %v3205 = vmax.f32 %v3199, 0.0
    %v3206 = vmax.f32 %v3202, 0.0
    %v3207 = vld [vmem:[%s2 + $0x4] sm:$0xf]
    %v3208 = vld [vmem:[%s2 + $0xc] sm:$0xf]
    %v3209 = vld [vmem:[%s2 + $0x14] sm:$0xf]
    %v3210 = vld [vmem:[%s2 + $0x1c] sm:$0xf]
    %v3211 = vld [vmem:[%s2 + $0x24] sm:$0xf]
    %v3212 = vld [vmem:[%s2 + $0x2c] sm:$0xf]
    %v3213 = vld [vmem:[%s2 + $0x34] sm:$0xf]
    %v3214 = vld [vmem:[%s2 + $0x3c] sm:$0xf]
    %v3215 = vld [vmem:[%s2 + $0x44] sm:$0xf]
    %v3216 = vld [vmem:[%s2 + $0x4c] sm:$0xf]
    %v3217 = vld [vmem:[%s2 + $0x54] sm:$0xf]
    %v3218 = vld [vmem:[%s2 + $0x5c] sm:$0xf]
    %v3219 = vld [vmem:[%s2 + $0x64] sm:$0xf]
    %v3220 = vld [vmem:[%s2 + $0x6c] sm:$0xf]
    %v3221 = vld [vmem:[%s2 + $0x74] sm:$0xf]
    %v3222 = vld [vmem:[%s2 + $0x7c] sm:$0xf]
    %v3223 = vpack.c.bf16 %v3206, %v3205
    %v3240 = vunpack.c.l.b16 %v3207
    %v3241 = vunpack.c.l.b16 %v3208
    %v3242 = vunpack.c.l.b16 %v3209
    %v3243 = vunpack.c.l.b16 %v3210
    %v3244 = vunpack.c.l.b16 %v3211
    %v3245 = vunpack.c.l.b16 %v3212
    %v3246 = vunpack.c.l.b16 %v3213
    %v3247 = vunpack.c.l.b16 %v3214
    %v3248 = vunpack.c.l.b16 %v3215
    %v3249 = vunpack.c.l.b16 %v3216
    %v3250 = vunpack.c.l.b16 %v3217
    %v3251 = vunpack.c.l.b16 %v3218
    %v3252 = vunpack.c.l.b16 %v3219
    %v3253 = vunpack.c.l.b16 %v3220
    %v3254 = vunpack.c.l.b16 %v3221
    %v3255 = vunpack.c.l.b16 %v3222
    %v3256 = vpack.c.b16 %v3241, %v3240
    %v3257 = vpack.c.b16 %v3243, %v3242
    %v3258 = vpack.c.b16 %v3245, %v3244
    %v3259 = vpack.c.b16 %v3247, %v3246
    %v3260 = vpack.c.b16 %v3249, %v3248
    %v3261 = vpack.c.b16 %v3251, %v3250
    %v3262 = vpack.c.b16 %v3253, %v3252
    %v3263 = vpack.c.b16 %v3255, %v3254
    %3272 = vmatprep.subr.bf16.mxu0 0
    %3273 = vmatpush1.bf16.msra.mxu0 %v3263
    %3274 = vmatprep.subr.bf16.mxu0 0
    %3275 = vmatpush1.bf16.msra.mxu0 %v3262
    %3276 = vmatprep.subr.bf16.mxu0 0
    %3277 = vmatpush1.bf16.msra.mxu0 %v3261
    %3278 = vmatprep.subr.bf16.mxu0 0
    %3279 = vmatpush1.bf16.msra.mxu0 %v3260
    %3280 = vmatprep.subr.bf16.mxu0 0
    %3281 = vmatpush1.bf16.msra.mxu0 %v3259
    %3282 = vmatprep.subr.bf16.mxu0 0
    %3283 = vmatpush1.bf16.msra.mxu0 %v3258
    %3284 = vmatprep.subr.bf16.mxu0 0
    %3285 = vmatpush1.bf16.msra.mxu0 %v3257
    %3286 = vmatprep.subr.bf16.mxu0 0
    %3287 = vmatpush1.bf16.msra.mxu0 %v3256
    %3288 = vmatprep.subr.bf16.mxu0 0
    %3289 = vmatpush2.bf16.msra.mxu0 0
    %3290 = vmatprep.subr.bf16.mxu0 0
    %3291 = vmatpush2.bf16.msra.mxu0 0
    %3292 = vmatprep.subr.bf16.mxu0 0
    %3293 = vmatpush2.bf16.msra.mxu0 0
    %3294 = vmatprep.subr.bf16.mxu0 0
    %3295 = vmatpush2.bf16.msra.mxu0 0
    %3296 = vmatprep.subr.bf16.mxu0 0
    %3297 = vmatpush2.bf16.msra.mxu0 0
    %3298 = vmatprep.subr.bf16.mxu0 0
    %3299 = vmatpush2.bf16.msra.mxu0 0
    %3300 = vmatprep.subr.bf16.mxu0 0
    %3301 = vmatpush2.bf16.msra.mxu0 0
    %3302 = vmatprep.subr.bf16.mxu0 0
    %3303 = vmatpush2.bf16.msra.mxu0 0
    %3304 = vmatprep.mubr.bf16.mxu0 0
    %3305 = vmatmul.mubr.bf16.gmra.mxu0 %v3223
    %v3306 = vpop.f32.mrf.mxu0
    %v3307 = vadd.f32 0.0, %v3306
    %v3308 = vpop.f32.mrf.mxu0
    %v3309 = vpop.f32.mrf.mxu0
    %v3310 = vadd.f32 0.0, %v3309
    %v3311 = vpop.f32.mrf.mxu0
    %3312 = vdwg.mxu0
    %v3313 = vadd.f32 %v3103, %v3307
    %v3314 = vadd.f32 %v3104, %v3310
    %v3315 = vld [vmem:[%s3 + $0x6] sm:$0x1]
    %v3316 = vmul.f32 %v3313, %v3313
    %v3317 = vmul.f32 %v3314, %v3314
    %v3318 = vsel %vm211, %v3316, 0.0
    %3319 = vadd.xlane.f32.xlu0 %v3318
    %v3320 = vpop.xlane.xlu0 %3319
    %v3321 = vsel %vm211, %v3317, 0.0
    %3322 = vadd.xlane.f32.xlu0 %v3321
    %v3323 = vpop.xlane.xlu0 %3322
    %v3324 = vmul.f32 %v3320, %v224
    %v3325 = vmul.f32 %v3323, %v224
    %v3326 = vadd.f32 %v3324, 1e-06
    %v3327 = vadd.f32 %v3325, 1e-06
    %v3328 = vrsqrt.pop %v3326
    %v3329 = vrsqrt.pop %v3327
    %v3330 = vmul.f32 %v3313, %v3328
    %v3331 = vmul.f32 %v3314, %v3329
    %v3332 = vlaneseq
    %v3333 = vshrl.u32 %v3332, 7
    %v3334 = vsub.s32 0, %v3333
    %v3335 = vrot.slane %v3315, %v3334
    %v3336 = vmul.f32 %v3330, %v3335
    %v3337 = vmul.f32 %v3331, %v3335
    %v3338 = vmul.f32 %v3336, 0.125
    %v3339 = vmul.f32 %v3337, 0.125
    %v3340 = vpack.c.bf16 %v3339, %v3338
    %v3342 = vsel %vm211, %v3340, 0
    %v3345 = vsel %vm211, %v141, 0
    %v3348 = vsel %vm211, %v142, 0
    %v3351 = vsel %vm211, %v143, 0
    %v3354 = vsel %vm211, %v144, 0
    %v3357 = vsel %vm211, %v145, 0
    %v3360 = vsel %vm211, %v146, 0
    %v3363 = vsel %vm211, %v147, 0
    %v3366 = vsel %vm211, %v148, 0
    %3368 = vmatprep.subr.bf16.mxu0 0
    %3369 = vmatpush1.bf16.xpose.msra.mxu0 %v3366
    %3370 = vmatprep.subr.bf16.mxu0 0
    %3371 = vmatpush1.bf16.xpose.msra.mxu0 %v3363
    %3372 = vmatprep.subr.bf16.mxu0 0
    %3373 = vmatpush1.bf16.xpose.msra.mxu0 %v3360
    %3374 = vmatprep.subr.bf16.mxu0 0
    %3375 = vmatpush1.bf16.xpose.msra.mxu0 %v3357
    %3376 = vmatprep.subr.bf16.mxu0 0
    %3377 = vmatpush1.bf16.xpose.msra.mxu0 %v3354
    %3378 = vmatprep.subr.bf16.mxu0 0
    %3379 = vmatpush1.bf16.xpose.msra.mxu0 %v3351
    %3380 = vmatprep.subr.bf16.mxu0 0
    %3381 = vmatpush1.bf16.xpose.msra.mxu0 %v3348
    %3382 = vmatprep.subr.bf16.mxu0 0
    %3383 = vmatpush1.bf16.xpose.msra.mxu0 %v3345
    %3384 = vmatprep.subr.bf16.mxu0 0
    %3385 = vmatpush2.bf16.xpose.msra.mxu0 0
    %3386 = vmatprep.subr.bf16.mxu0 0
    %3387 = vmatpush2.bf16.xpose.msra.mxu0 0
    %3388 = vmatprep.subr.bf16.mxu0 0
    %3389 = vmatpush2.bf16.xpose.msra.mxu0 0
    %3390 = vmatprep.subr.bf16.mxu0 0
    %3391 = vmatpush2.bf16.xpose.msra.mxu0 0
    %3392 = vmatprep.subr.bf16.mxu0 0
    %3393 = vmatpush2.bf16.xpose.msra.mxu0 0
    %3394 = vmatprep.subr.bf16.mxu0 0
    %3395 = vmatpush2.bf16.xpose.msra.mxu0 0
    %3396 = vmatprep.subr.bf16.mxu0 0
    %3397 = vmatpush2.bf16.xpose.msra.mxu0 0
    %3398 = vmatprep.subr.bf16.mxu0 0
    %3399 = vmatpush2.bf16.xpose.msra.mxu0 0
    %3400 = vmatprep.mubr.bf16.mxu0 0
    %3401 = vmatmul.mubr.bf16.gmra.mxu0 %v3342
    %v3402 = vpop.f32.mrf.mxu0
    %v3403 = vadd.f32 0.0, %v3402
    %v3404 = vpop.f32.mrf.mxu0
    %v3405 = vpop.f32.mrf.mxu0
    %v3406 = vadd.f32 0.0, %v3405
    %v3407 = vpop.f32.mrf.mxu0
    %3408 = vdwg.mxu0
    %3409 = vmax.xlane.f32.xlu0 %v3403
    %v3410 = vpop.xlane.xlu0 %3409
    %3411 = vmax.xlane.f32.xlu0 %v3406
    %v3412 = vpop.xlane.xlu0 %3411
    %v3413 = vsub.f32 %v3403, %v3410
    %v3414 = vsub.f32 %v3406, %v3412
    %v3415 = vmul.f32 %v3413, 1.442695
    %v3416 = vpow.pop %v3415
    %v3417 = vmul.f32 %v3414, 1.442695
    %v3418 = vpow.pop %v3417
    %3419 = vadd.xlane.f32.xlu0 %v3416
    %v3420 = vpop.xlane.xlu0 %3419
    %3421 = vadd.xlane.f32.xlu0 %v3418
    %v3422 = vpop.xlane.xlu0 %3421
    %v3423 = vlog2.pop %v3420
    %v3424 = vmul.f32 %v3423, 0.6931472
    %v3425 = vlog2.pop %v3422
    %v3426 = vmul.f32 %v3425, 0.6931472
    %v3427 = vadd.f32 %v3410, %v3424
    %v3428 = vadd.f32 %v3412, %v3426
    %3429 = vset.pattern.permute.xlu0 0
    %3430 = vperm.xlu0 %3429, %v37
    %v3431 = vpop.permute.xlu0 %3430
    %3432 = vset.pattern.permute.xlu0 0
    %3433 = vperm.xlu0 %3432, %v38
    %v3434 = vpop.permute.xlu0 %3433
    %vm3435 = vcmp.eq.s32.totalorder %v82, %v3431
    %vm3436 = vcmp.eq.s32.totalorder %v82, %v3434
    %v3437 = vsel %vm3435, 1, 0
    %v3438 = vsel %vm3436, 1, 0
    %v3439 = vcvt.s32.f32 %v3437
    %v3440 = vcvt.s32.f32 %v3438
    %v3441 = vmul.f32 %v3439, %v3403
    %v3442 = vmul.f32 %v3440, %v3406
    %3443 = vadd.xlane.f32.xlu0 %v3441
    %v3444 = vpop.xlane.xlu0 %3443
    %3445 = vadd.xlane.f32.xlu0 %v3442
    %v3446 = vpop.xlane.xlu0 %3445
    %3447 = vst [vmem:[#allocation2] sm:$0xff] %v3403
    %3448 = vst [vmem:[#allocation2 + $0x8] sm:$0xff] %v3406
    %v3449 = vsub.f32 %v3427, %v3444
    %v3450 = vsub.f32 %v3428, %v3446
    %vm3451 = vcmask 7168
    %v3452 = vsel %vm3451, %v3449, 0.0
    %v3453 = vsel %vm3451, %v3450, 0.0
    %v3454 = vadd.f32 %v3452, %v3453
    %3455 = vadd.xlane.f32.xlu0 %v3454
    %v3456 = vpop.xlane.xlu0 %3455
    %v3457 = vrot.slane %v3456, 4
    %v3458 = vadd.f32 %v3456, %v3457
    %v3459 = vrot.slane %v3458, 2
    %v3460 = vadd.f32 %v3458, %v3459
    %v3461 = vrot.slane %v3460, 1
    %v3462 = vadd.f32 %v3460, %v3461
    %s3463 = vtos %v3462
    %s3464 = scalar_lea.smem [#allocation5], 0
    %3465 = sst [smem:[%s3464]] %s3463
    // Predicated region
    $region30: #{code_summary_forward.1} parent=1 // pred_check
      _
    $region31: #{code_summary_forward.1} parent=1 // pred_check_branch
      %3467 = sbr.rel (0) target = $region33
    $region32: #{code_summary_forward.1} parent=1 // pred_region
      %s3469 = ssub.s32 256, 256
      %3470 = vsyncadd [#allocation3], %s3469
      %s3471 = sshll.u32 [#allocation2], 4
      %s3472 = int_to_ptr.vmem [resolvable:$true] %s3471
      %3477 = dma.vmem_to_hbm [thread:$0]  %s3472, 256, %s7, [#allocation3], 128, 128, 8
    $region33: #{code_summary_forward.1} parent=1 // pred_fallthru
      _
    // Predicated region
    $region34: #{code_summary_forward.1} parent=1 // pred_check
      _
    $region35: #{code_summary_forward.1} parent=1 // pred_check_branch
      %3479 = sbr.rel (0) target = $region37
    $region36: #{code_summary_forward.1} parent=1 // pred_region
      %s3481 = ssub.s32 16, 16
      %3482 = vsyncadd [#allocation4], %s3481
      %3485 = dma.smem_to_hbm [#allocation5], 16, %s8, [#allocation4]
    $region37: #{code_summary_forward.1} parent=1 // pred_fallthru
      _
    // Predicated region
    $region38: #{code_summary_forward.1} parent=1 // pred_check
      _
    $region39: #{code_summary_forward.1} parent=1 // pred_check_branch
      %3487 = sbr.rel (0) target = $region41
    $region40: #{code_summary_forward.1} parent=1 // pred_region
      %3488 = dma.done [#allocation3], 256
    $region41: #{code_summary_forward.1} parent=1 // pred_fallthru
      _
    // Predicated region
    $region42: #{code_summary_forward.1} parent=1 // pred_check
      _
    $region43: #{code_summary_forward.1} parent=1 // pred_check_branch
      %3490 = sbr.rel (0) target = $region45
    $region44: #{code_summary_forward.1} parent=1 // pred_region
      %3491 = dma.done [#allocation4], 16
    $region45: #{code_summary_forward.1} parent=1 // pred_fallthru
      _
    %3492 = sfence
    %3493 = vsyncpa [#allocation3], 1
    %3494 = vsyncpa [#allocation4], 1

</llo_original>
